<compile_context>
chip_gen: v7x
topology: tpu7x:2x2x1
jax: 0.10.0
libtpu: 0.0.40
codegen_flags: <defaults>
</compile_context>

<pallas_src>
import functools

import jax
import jax.numpy as jnp
from jax import lax
from jax.experimental import pallas as pl
from jax.experimental.pallas import tpu as pltpu


_BN_EPS = 1e-5


# ----------------------------- in-kernel helpers -----------------------------

def _bn_conv(y, gamma, beta, e_mat, et_mat):
    """Training-mode BatchNorm2d on a (B, C*S) activation whose lane axis is
    channel-blocked (S = H*W).  gamma/beta: (1, C); e_mat: (C, C*S);
    et_mat: (C*S, C).  Per-channel sums via a matmul with the constant block
    matrix (lane reduce -> MXU/XLU, no reshapes)."""
    n = float(y.shape[0] * (y.shape[1] // gamma.shape[1]))            # B*H*W
    s = jnp.dot(y, et_mat, preferred_element_type=jnp.float32)        # (B, C)
    q = jnp.dot(y * y, et_mat, preferred_element_type=jnp.float32)    # (B, C)
    mean = jnp.sum(s, axis=0, keepdims=True) / n                      # (1, C)
    var = jnp.sum(q, axis=0, keepdims=True) / n - mean * mean         # biased
    var = jnp.maximum(var, 0.0)
    scale = gamma * lax.rsqrt(var + _BN_EPS)                          # (1, C)
    shift = beta - mean * scale                                       # (1, C)
    scale_cols = jnp.dot(scale, e_mat, preferred_element_type=jnp.float32)
    shift_cols = jnp.dot(shift, e_mat, preferred_element_type=jnp.float32)
    return y * scale_cols + shift_cols


def _bn_1d(y, gamma, beta):
    """Training-mode BatchNorm1d on a (B, F) activation (stats over batch)."""
    n = float(y.shape[0])
    mean = jnp.sum(y, axis=0, keepdims=True) / n
    var = jnp.sum(y * y, axis=0, keepdims=True) / n - mean * mean
    var = jnp.maximum(var, 0.0)
    scale = gamma * lax.rsqrt(var + _BN_EPS)
    return y * scale + (beta - mean * scale)


# ------------------------------- the kernel ----------------------------------

def _generator_kernel(
    # data
    x_ref, eps_ref,
    # encoder conv1 (+BN)
    m1_ref, g1_ref, b1_ref, e1_ref, e1t_ref,
    # encoder conv2 (+BN)
    m2_ref, g2_ref, b2_ref, e2_ref, e2t_ref,
    # encoder heads (Linear + BN1d)
    wm_ref, bm_ref, gm_ref, bmn_ref,
    wc_ref, bc_ref, gc_ref, bcn_ref,
    # decoder convT1 (+BN)
    d1_ref, gd1_ref, bd1_ref, ed1_ref, ed1t_ref,
    # decoder convT2 (+BN)
    d2_ref, gd2_ref, bd2_ref, ed2_ref, ed2t_ref,
    # decoder convT3
    d3_ref,
    # outputs
    recon_ref, m_ref, c_ref,
):
    relu = lambda v: jnp.maximum(v, 0.0)

    # ---------------- Encoder ----------------
    h = jnp.dot(x_ref[...], m1_ref[...], preferred_element_type=jnp.float32)
    h = relu(_bn_conv(h, g1_ref[...], b1_ref[...], e1_ref[...], e1t_ref[...]))

    h = jnp.dot(h, m2_ref[...], preferred_element_type=jnp.float32)
    h = relu(_bn_conv(h, g2_ref[...], b2_ref[...], e2_ref[...], e2t_ref[...]))

    # heads (columns of h are already the PyTorch view(-1, C*H*W) flattening)
    m = jnp.dot(h, wm_ref[...], preferred_element_type=jnp.float32) + bm_ref[...]
    m = relu(_bn_1d(m, gm_ref[...], bmn_ref[...]))
    c = jnp.dot(h, wc_ref[...], preferred_element_type=jnp.float32) + bc_ref[...]
    c = relu(_bn_1d(c, gc_ref[...], bcn_ref[...]))
    m_ref[...] = m
    c_ref[...] = c

    # ------------- Parameterizer (reparameterization, fused) -------------
    z = eps_ref[...] * jnp.exp(0.5 * c) + m                 # (B, n_z) == (B,n_z,1,1)

    # ---------------- Decoder ----------------
    d = jnp.dot(z, d1_ref[...], preferred_element_type=jnp.float32)   # ConvT1 == linear
    d = relu(_bn_conv(d, gd1_ref[...], bd1_ref[...], ed1_ref[...], ed1t_ref[...]))

    d = jnp.dot(d, d2_ref[...], preferred_element_type=jnp.float32)
    d = relu(_bn_conv(d, gd2_ref[...], bd2_ref[...], ed2_ref[...], ed2t_ref[...]))

    d = jnp.dot(d, d3_ref[...], preferred_element_type=jnp.float32)
    recon_ref[...] = jnp.tanh(d)


# -------------------- one-time parameter preprocessing -----------------------
# (Weight-only work, done once outside the jitted forward; the forward itself is
#  a single Pallas kernel.)

def _conv_dense_operator(w, in_chw, stride, padding):
    """Dense per-sample operator M (C_in*H*W, C_out*OH*OW) for a PyTorch
    Conv2d(bias=False) with weight w (C_out, C_in, k, k): out_flat = in_flat @ M."""
    c_in, h, wd = in_chw
    n_in = c_in * h * wd
    eye = jnp.eye(n_in, dtype=jnp.float32).reshape(n_in, c_in, h, wd)
    out = lax.conv_general_dilated(
        eye, w.astype(jnp.float32),
        window_strides=(stride, stride),
        padding=[(padding, padding), (padding, padding)],
        dimension_numbers=("NCHW", "OIHW", "NCHW"),
        precision=lax.Precision.HIGHEST)
    _, c_out, oh, ow = out.shape
    return out.reshape(n_in, c_out * oh * ow), (c_out, oh, ow)


def _conv_transpose_dense_operator(w_t, in_chw, stride, padding):
    """Dense per-sample operator for PyTorch ConvTranspose2d(bias=False) with
    weight w_t (C_in, C_out, k, k)."""
    k = w_t.shape[2]
    w_conv = jnp.flip(w_t, axis=(2, 3)).transpose(1, 0, 2, 3)   # (C_out, C_in, k, k)
    c_in, h, wd = in_chw
    n_in = c_in * h * wd
    eye = jnp.eye(n_in, dtype=jnp.float32).reshape(n_in, c_in, h, wd)
    out = lax.conv_general_dilated(
        eye, w_conv.astype(jnp.float32),
        window_strides=(1, 1),
        padding=[(k - 1 - padding, k - 1 - padding)] * 2,
        lhs_dilation=(stride, stride),
        dimension_numbers=("NCHW", "OIHW", "NCHW"),
        precision=lax.Precision.HIGHEST)
    _, c_out, oh, ow = out.shape
    return out.reshape(n_in, c_out * oh * ow), (c_out, oh, ow)


def _channel_expand(c, s):
    """E (C, C*S) with E[ch, ch*S + j] = 1; pools/broadcasts channel blocks."""
    return jnp.kron(jnp.eye(c, dtype=jnp.float32), jnp.ones((1, s), jnp.float32))


def prepare_generator_params(params, image_size, n_chan, n_z):
    M1, (c1, h1, w1) = _conv_dense_operator(
        params["enc_conv1_w"], (n_chan, image_size, image_size), stride=2, padding=1)
    E1 = _channel_expand(c1, h1 * w1)

    M2, (c2, h2, w2) = _conv_dense_operator(
        params["enc_conv2_w"], (c1, h1, w1), stride=1, padding=0)
    E2 = _channel_expand(c2, h2 * w2)

    D1, (cd1, hd1, wd1) = _conv_transpose_dense_operator(
        params["dec_ct1_w"], (n_z, 1, 1), stride=1, padding=0)
    Ed1 = _channel_expand(cd1, hd1 * wd1)

    D2, (cd2, hd2, wd2) = _conv_transpose_dense_operator(
        params["dec_ct2_w"], (cd1, hd1, wd1), stride=2, padding=1)
    Ed2 = _channel_expand(cd2, hd2 * wd2)

    D3, _ = _conv_transpose_dense_operator(
        params["dec_ct3_w"], (cd2, hd2, wd2), stride=2, padding=1)

    row = lambda v: v.reshape(1, -1).astype(jnp.float32)
    return {
        "M1": M1, "g1": row(params["enc_bn1_g"]), "b1": row(params["enc_bn1_b"]),
        "E1": E1, "E1t": E1.T,
        "M2": M2, "g2": row(params["enc_bn2_g"]), "b2": row(params["enc_bn2_b"]),
        "E2": E2, "E2t": E2.T,
        "Wm": params["enc_m_w"].T.astype(jnp.float32), "bm": row(params["enc_m_b"]),
        "gm": row(params["enc_m_bn_g"]), "bm_bn": row(params["enc_m_bn_b"]),
        "Wc": params["enc_c_w"].T.astype(jnp.float32), "bc": row(params["enc_c_b"]),
        "gc": row(params["enc_c_bn_g"]), "bc_bn": row(params["enc_c_bn_b"]),
        "D1": D1, "gd1": row(params["dec_bn1_g"]), "bd1": row(params["dec_bn1_b"]),
        "Ed1": Ed1, "Ed1t": Ed1.T,
        "D2": D2, "gd2": row(params["dec_bn2_g"]), "bd2": row(params["dec_bn2_b"]),
        "Ed2": Ed2, "Ed2t": Ed2.T,
        "D3": D3,
    }


# ------------------------------- forward pass ---------------------------------

def generator_forward(prep, x, eps_noise):
    """Single fused Pallas forward: returns (reconstruction NCHW, means, logcovs)."""
    B = x.shape[0]
    n_z = eps_noise.shape[1]
    x_flat = x.reshape(B, -1).astype(jnp.float32)          # (B, C*H*W), chw order

    operands = (
        x_flat, eps_noise.astype(jnp.float32),
        prep["M1"], prep["g1"], prep["b1"], prep["E1"], prep["E1t"],
        prep["M2"], prep["g2"], prep["b2"], prep["E2"], prep["E2t"],
        prep["Wm"], prep["bm"], prep["gm"], prep["bm_bn"],
        prep["Wc"], prep["bc"], prep["gc"], prep["bc_bn"],
        prep["D1"], prep["gd1"], prep["bd1"], prep["Ed1"], prep["Ed1t"],
        prep["D2"], prep["gd2"], prep["bd2"], prep["Ed2"], prep["Ed2t"],
        prep["D3"],
    )
    out_dim = prep["D3"].shape[1]

    recon_flat, m, c = pl.pallas_call(
        _generator_kernel,
        out_shape=(
            jax.ShapeDtypeStruct((B, out_dim), jnp.float32),
            jax.ShapeDtypeStruct((B, n_z), jnp.float32),
            jax.ShapeDtypeStruct((B, n_z), jnp.float32),
        ),
        grid=(1,),
        in_specs=[pl.BlockSpec(a.shape, lambda i: (0, 0)) for a in operands],
        out_specs=(
            pl.BlockSpec((B, out_dim), lambda i: (0, 0)),
            pl.BlockSpec((B, n_z), lambda i: (0, 0)),
            pl.BlockSpec((B, n_z), lambda i: (0, 0)),
        ),
        compiler_params=pltpu.CompilerParams(dimension_semantics=("arbitrary",)),
    )(*operands)

    recon = recon_flat.reshape(x.shape)                    # decoder output == input shape
    return recon, m, c


# --------------------------- parameter initialization -------------------------

def init_generator_params(key, image_size, n_chan, n_enc_hidden, n_dec_hidden, n_z):
    assert image_size % 16 == 0
    # Mirrors the PyTorch module for image_size == 16:
    #   Encoder: Conv(n_chan->He,4,2,1)+BN+ReLU ; Conv(He->2He,4,1,0)+BN+ReLU
    #            Linear(2He*5*5 -> n_z)+BN1d+ReLU  (means and covs heads)
    #   Decoder: ConvT(n_z->Hd,4,1,0)+BN+ReLU ; ConvT(Hd->Hd/2,4,2,1)+BN+ReLU
    #            ConvT(Hd/2->n_chan,4,2,1)+Tanh
    He, Hd = n_enc_hidden, n_dec_hidden
    ks = jax.random.split(key, 9)
    enc_out_spatial = (image_size // 2 - 4) // 1 + 1     # 5 for image_size=16
    fc_in = 2 * He * enc_out_spatial * enc_out_spatial
    return {
        "enc_conv1_w": 0.05 * jax.random.normal(ks[0], (He, n_chan, 4, 4), jnp.float32),
        "enc_bn1_g": jnp.ones((He,), jnp.float32),
        "enc_bn1_b": jnp.zeros((He,), jnp.float32),
        "enc_conv2_w": 0.05 * jax.random.normal(ks[1], (2 * He, He, 4, 4), jnp.float32),
        "enc_bn2_g": jnp.ones((2 * He,), jnp.float32),
        "enc_bn2_b": jnp.zeros((2 * He,), jnp.float32),
        "enc_m_w": 0.05 * jax.random.normal(ks[2], (n_z, fc_in), jnp.float32),
        "enc_m_b": 0.05 * jax.random.normal(ks[3], (n_z,), jnp.float32),
        "enc_m_bn_g": jnp.ones((n_z,), jnp.float32),
        "enc_m_bn_b": jnp.zeros((n_z,), jnp.float32),
        "enc_c_w": 0.05 * jax.random.normal(ks[4], (n_z, fc_in), jnp.float32),
        "enc_c_b": 0.05 * jax.random.normal(ks[5], (n_z,), jnp.float32),
        "enc_c_bn_g": jnp.ones((n_z,), jnp.float32),
        "enc_c_bn_b": jnp.zeros((n_z,), jnp.float32),
        "dec_ct1_w": 0.05 * jax.random.normal(ks[6], (n_z, Hd, 4, 4), jnp.float32),
        "dec_bn1_g": jnp.ones((Hd,), jnp.float32),
        "dec_bn1_b": jnp.zeros((Hd,), jnp.float32),
        "dec_ct2_w": 0.05 * jax.random.normal(ks[7], (Hd, Hd // 2, 4, 4), jnp.float32),
        "dec_bn2_g": jnp.ones((Hd // 2,), jnp.float32),
        "dec_bn2_b": jnp.zeros((Hd // 2,), jnp.float32),
        "dec_ct3_w": 0.05 * jax.random.normal(ks[8], (Hd // 2, n_chan, 4, 4), jnp.float32),
    }


# ------------------------------------ main ------------------------------------

if __name__ == "__main__":
    image_size = 16
    n_chan = 3
    n_enc_hidden = 8
    n_dec_hidden = 8
    n_z = 8
    batch = 2

    key = jax.random.PRNGKey(0)
    k_param, k_x, k_eps = jax.random.split(key, 3)

    params = init_generator_params(k_param, image_size, n_chan,
                                   n_enc_hidden, n_dec_hidden, n_z)
    # One-time weight preprocessing (conv -> dense operator, BN block matrices).
    prep = prepare_generator_params(params, image_size, n_chan, n_z)

    x = jax.random.normal(k_x, (batch, n_chan, image_size, image_size), jnp.float32)
    # TODO(synk): PyTorch draws epsilon from torch RNG inside Parameterizer; here a
    # deterministic jax.random normal draw is supplied by the caller (same distribution).
    eps_noise = jax.random.normal(k_eps, (batch, n_z), jnp.float32)

    fwd = jax.jit(generator_forward)
    recon, m, c = fwd(prep, x, eps_noise)
    jax.block_until_ready((recon, m, c))

    assert recon.shape == (batch, n_chan, image_size, image_size)
    assert m.shape == (batch, n_z) and c.shape == (batch, n_z)
    assert bool(jnp.all(jnp.isfinite(recon))) and bool(jnp.all(jnp.isfinite(m)))
    print("KERNEL_OK")
</pallas_src>

<mosaic_0001>
module attributes {stable_mosaic.version = 11 : i64} {
  func.func @_generator_kernel(%arg0: i32, %arg1: memref<2x768xf32, #tpu.memory_space<vmem>>, %arg2: memref<2x8xf32, #tpu.memory_space<vmem>>, %arg3: memref<768x512xf32, #tpu.memory_space<vmem>>, %arg4: memref<1x8xf32, #tpu.memory_space<vmem>>, %arg5: memref<1x8xf32, #tpu.memory_space<vmem>>, %arg6: memref<8x512xf32, #tpu.memory_space<vmem>>, %arg7: memref<512x8xf32, #tpu.memory_space<vmem>>, %arg8: memref<512x400xf32, #tpu.memory_space<vmem>>, %arg9: memref<1x16xf32, #tpu.memory_space<vmem>>, %arg10: memref<1x16xf32, #tpu.memory_space<vmem>>, %arg11: memref<16x400xf32, #tpu.memory_space<vmem>>, %arg12: memref<400x16xf32, #tpu.memory_space<vmem>>, %arg13: memref<400x8xf32, #tpu.memory_space<vmem>>, %arg14: memref<1x8xf32, #tpu.memory_space<vmem>>, %arg15: memref<1x8xf32, #tpu.memory_space<vmem>>, %arg16: memref<1x8xf32, #tpu.memory_space<vmem>>, %arg17: memref<400x8xf32, #tpu.memory_space<vmem>>, %arg18: memref<1x8xf32, #tpu.memory_space<vmem>>, %arg19: memref<1x8xf32, #tpu.memory_space<vmem>>, %arg20: memref<1x8xf32, #tpu.memory_space<vmem>>, %arg21: memref<8x128xf32, #tpu.memory_space<vmem>>, %arg22: memref<1x8xf32, #tpu.memory_space<vmem>>, %arg23: memref<1x8xf32, #tpu.memory_space<vmem>>, %arg24: memref<8x128xf32, #tpu.memory_space<vmem>>, %arg25: memref<128x8xf32, #tpu.memory_space<vmem>>, %arg26: memref<128x256xf32, #tpu.memory_space<vmem>>, %arg27: memref<1x4xf32, #tpu.memory_space<vmem>>, %arg28: memref<1x4xf32, #tpu.memory_space<vmem>>, %arg29: memref<4x256xf32, #tpu.memory_space<vmem>>, %arg30: memref<256x4xf32, #tpu.memory_space<vmem>>, %arg31: memref<256x768xf32, #tpu.memory_space<vmem>>, %arg32: memref<2x768xf32, #tpu.memory_space<vmem>>, %arg33: memref<2x8xf32, #tpu.memory_space<vmem>>, %arg34: memref<2x8xf32, #tpu.memory_space<vmem>>) attributes {dimension_semantics = [#tpu.dimension_semantics<arbitrary>], iteration_bounds = array<i64: 1>, scalar_prefetch = 0 : i64, scratch_operands = 0 : i64, tpu.core_type = #tpu.core_type<tc>, window_params = [{pipeline_mode = #tpu.pipeline_mode<synchronous>, transform_indices = @transform_0, window_bounds = array<i64: 2, 768>}, {pipeline_mode = #tpu.pipeline_mode<synchronous>, transform_indices = @transform_1, window_bounds = array<i64: 2, 8>}, {pipeline_mode = #tpu.pipeline_mode<synchronous>, transform_indices = @transform_2, window_bounds = array<i64: 768, 512>}, {pipeline_mode = #tpu.pipeline_mode<synchronous>, transform_indices = @transform_3, window_bounds = array<i64: 1, 8>}, {pipeline_mode = #tpu.pipeline_mode<synchronous>, transform_indices = @transform_4, window_bounds = array<i64: 1, 8>}, {pipeline_mode = #tpu.pipeline_mode<synchronous>, transform_indices = @transform_5, window_bounds = array<i64: 8, 512>}, {pipeline_mode = #tpu.pipeline_mode<synchronous>, transform_indices = @transform_6, window_bounds = array<i64: 512, 8>}, {pipeline_mode = #tpu.pipeline_mode<synchronous>, transform_indices = @transform_7, window_bounds = array<i64: 512, 400>}, {pipeline_mode = #tpu.pipeline_mode<synchronous>, transform_indices = @transform_8, window_bounds = array<i64: 1, 16>}, {pipeline_mode = #tpu.pipeline_mode<synchronous>, transform_indices = @transform_9, window_bounds = array<i64: 1, 16>}, {pipeline_mode = #tpu.pipeline_mode<synchronous>, transform_indices = @transform_10, window_bounds = array<i64: 16, 400>}, {pipeline_mode = #tpu.pipeline_mode<synchronous>, transform_indices = @transform_11, window_bounds = array<i64: 400, 16>}, {pipeline_mode = #tpu.pipeline_mode<synchronous>, transform_indices = @transform_12, window_bounds = array<i64: 400, 8>}, {pipeline_mode = #tpu.pipeline_mode<synchronous>, transform_indices = @transform_13, window_bounds = array<i64: 1, 8>}, {pipeline_mode = #tpu.pipeline_mode<synchronous>, transform_indices = @transform_14, window_bounds = array<i64: 1, 8>}, {pipeline_mode = #tpu.pipeline_mode<synchronous>, transform_indices = @transform_15, window_bounds = array<i64: 1, 8>}, {pipeline_mode = #tpu.pipeline_mode<synchronous>, transform_indices = @transform_16, window_bounds = array<i64: 400, 8>}, {pipeline_mode = #tpu.pipeline_mode<synchronous>, transform_indices = @transform_17, window_bounds = array<i64: 1, 8>}, {pipeline_mode = #tpu.pipeline_mode<synchronous>, transform_indices = @transform_18, window_bounds = array<i64: 1, 8>}, {pipeline_mode = #tpu.pipeline_mode<synchronous>, transform_indices = @transform_19, window_bounds = array<i64: 1, 8>}, {pipeline_mode = #tpu.pipeline_mode<synchronous>, transform_indices = @transform_20, window_bounds = array<i64: 8, 128>}, {pipeline_mode = #tpu.pipeline_mode<synchronous>, transform_indices = @transform_21, window_bounds = array<i64: 1, 8>}, {pipeline_mode = #tpu.pipeline_mode<synchronous>, transform_indices = @transform_22, window_bounds = array<i64: 1, 8>}, {pipeline_mode = #tpu.pipeline_mode<synchronous>, transform_indices = @transform_23, window_bounds = array<i64: 8, 128>}, {pipeline_mode = #tpu.pipeline_mode<synchronous>, transform_indices = @transform_24, window_bounds = array<i64: 128, 8>}, {pipeline_mode = #tpu.pipeline_mode<synchronous>, transform_indices = @transform_25, window_bounds = array<i64: 128, 256>}, {pipeline_mode = #tpu.pipeline_mode<synchronous>, transform_indices = @transform_26, window_bounds = array<i64: 1, 4>}, {pipeline_mode = #tpu.pipeline_mode<synchronous>, transform_indices = @transform_27, window_bounds = array<i64: 1, 4>}, {pipeline_mode = #tpu.pipeline_mode<synchronous>, transform_indices = @transform_28, window_bounds = array<i64: 4, 256>}, {pipeline_mode = #tpu.pipeline_mode<synchronous>, transform_indices = @transform_29, window_bounds = array<i64: 256, 4>}, {pipeline_mode = #tpu.pipeline_mode<synchronous>, transform_indices = @transform_30, window_bounds = array<i64: 256, 768>}, {pipeline_mode = #tpu.pipeline_mode<synchronous>, transform_indices = @transform_31, window_bounds = array<i64: 2, 768>}, {pipeline_mode = #tpu.pipeline_mode<synchronous>, transform_indices = @transform_32, window_bounds = array<i64: 2, 8>}, {pipeline_mode = #tpu.pipeline_mode<synchronous>, transform_indices = @transform_33, window_bounds = array<i64: 2, 8>}]} {
    %c0 = arith.constant 0 : index
    %c0_0 = arith.constant 0 : index
    %0 = vector.load %arg1[%c0, %c0_0] : memref<2x768xf32, #tpu.memory_space<vmem>>, vector<2x768xf32>
    %c0_1 = arith.constant 0 : index
    %c0_2 = arith.constant 0 : index
    %1 = vector.load %arg3[%c0_1, %c0_2] : memref<768x512xf32, #tpu.memory_space<vmem>>, vector<768x512xf32>
    %cst = arith.constant dense<0.000000e+00> : vector<2x512xf32>
    %2 = tpu.matmul %0, %1, %cst {dimension_numbers = #tpu.dot_dimension_numbers<[1], [0], [0], [1], [0, 0, 1, 1], [], []>} : vector<2x768xf32>, vector<768x512xf32>, vector<2x512xf32> -> vector<2x512xf32>
    %c0_3 = arith.constant 0 : index
    %c0_4 = arith.constant 0 : index
    %3 = vector.load %arg4[%c0_3, %c0_4] : memref<1x8xf32, #tpu.memory_space<vmem>>, vector<1x8xf32>
    %c0_5 = arith.constant 0 : index
    %c0_6 = arith.constant 0 : index
    %4 = vector.load %arg5[%c0_5, %c0_6] : memref<1x8xf32, #tpu.memory_space<vmem>>, vector<1x8xf32>
    %c0_7 = arith.constant 0 : index
    %c0_8 = arith.constant 0 : index
    %5 = vector.load %arg6[%c0_7, %c0_8] : memref<8x512xf32, #tpu.memory_space<vmem>>, vector<8x512xf32>
    %c0_9 = arith.constant 0 : index
    %c0_10 = arith.constant 0 : index
    %6 = vector.load %arg7[%c0_9, %c0_10] : memref<512x8xf32, #tpu.memory_space<vmem>>, vector<512x8xf32>
    %cst_11 = arith.constant dense<0.000000e+00> : vector<2x8xf32>
    %7 = tpu.matmul %2, %6, %cst_11 {dimension_numbers = #tpu.dot_dimension_numbers<[1], [0], [0], [1], [0, 0, 1, 1], [], []>} : vector<2x512xf32>, vector<512x8xf32>, vector<2x8xf32> -> vector<2x8xf32>
    %8 = arith.mulf %2, %2 : vector<2x512xf32>
    %cst_12 = arith.constant dense<0.000000e+00> : vector<2x8xf32>
    %9 = tpu.matmul %8, %6, %cst_12 {dimension_numbers = #tpu.dot_dimension_numbers<[1], [0], [0], [1], [0, 0, 1, 1], [], []>} : vector<2x512xf32>, vector<512x8xf32>, vector<2x8xf32> -> vector<2x8xf32>
    %cst_13 = arith.constant dense<0.000000e+00> : vector<8xf32>
    %10 = vector.multi_reduction <add>, %7, %cst_13 [0] : vector<2x8xf32> to vector<8xf32>
    %11 = vector.shape_cast %10 : vector<8xf32> to vector<1x8xf32>
    %cst_14 = arith.constant 1.280000e+02 : f32
    %12 = vector.broadcast %cst_14 : f32 to vector<1x8xf32>
    %13 = arith.divf %11, %12 : vector<1x8xf32>
    %cst_15 = arith.constant dense<0.000000e+00> : vector<8xf32>
    %14 = vector.multi_reduction <add>, %9, %cst_15 [0] : vector<2x8xf32> to vector<8xf32>
    %15 = vector.shape_cast %14 : vector<8xf32> to vector<1x8xf32>
    %cst_16 = arith.constant 1.280000e+02 : f32
    %16 = vector.broadcast %cst_16 : f32 to vector<1x8xf32>
    %17 = arith.divf %15, %16 : vector<1x8xf32>
    %18 = arith.mulf %13, %13 : vector<1x8xf32>
    %19 = arith.subf %17, %18 : vector<1x8xf32>
    %cst_17 = arith.constant 0.000000e+00 : f32
    %20 = vector.broadcast %cst_17 : f32 to vector<1x8xf32>
    %21 = arith.maximumf %19, %20 : vector<1x8xf32>
    %cst_18 = arith.constant 9.99999974E-6 : f32
    %22 = vector.broadcast %cst_18 : f32 to vector<1x8xf32>
    %23 = arith.addf %21, %22 : vector<1x8xf32>
    %24 = math.rsqrt %23 : vector<1x8xf32>
    %25 = arith.mulf %3, %24 : vector<1x8xf32>
    %26 = arith.mulf %13, %25 : vector<1x8xf32>
    %27 = arith.subf %4, %26 : vector<1x8xf32>
    %cst_19 = arith.constant dense<0.000000e+00> : vector<1x512xf32>
    %28 = tpu.matmul %25, %5, %cst_19 {dimension_numbers = #tpu.dot_dimension_numbers<[1], [0], [0], [1], [0, 0, 1, 1], [], []>} : vector<1x8xf32>, vector<8x512xf32>, vector<1x512xf32> -> vector<1x512xf32>
    %cst_20 = arith.constant dense<0.000000e+00> : vector<1x512xf32>
    %29 = tpu.matmul %27, %5, %cst_20 {dimension_numbers = #tpu.dot_dimension_numbers<[1], [0], [0], [1], [0, 0, 1, 1], [], []>} : vector<1x8xf32>, vector<8x512xf32>, vector<1x512xf32> -> vector<1x512xf32>
    %30 = vector.broadcast %28 : vector<1x512xf32> to vector<2x512xf32>
    %31 = arith.mulf %2, %30 : vector<2x512xf32>
    %32 = vector.broadcast %29 : vector<1x512xf32> to vector<2x512xf32>
    %33 = arith.addf %31, %32 : vector<2x512xf32>
    %cst_21 = arith.constant 0.000000e+00 : f32
    %34 = vector.broadcast %cst_21 : f32 to vector<2x512xf32>
    %35 = arith.maximumf %33, %34 : vector<2x512xf32>
    %c0_22 = arith.constant 0 : index
    %c0_23 = arith.constant 0 : index
    %36 = vector.load %arg8[%c0_22, %c0_23] : memref<512x400xf32, #tpu.memory_space<vmem>>, vector<512x400xf32>
    %cst_24 = arith.constant dense<0.000000e+00> : vector<2x400xf32>
    %37 = tpu.matmul %35, %36, %cst_24 {dimension_numbers = #tpu.dot_dimension_numbers<[1], [0], [0], [1], [0, 0, 1, 1], [], []>} : vector<2x512xf32>, vector<512x400xf32>, vector<2x400xf32> -> vector<2x400xf32>
    %c0_25 = arith.constant 0 : index
    %c0_26 = arith.constant 0 : index
    %38 = vector.load %arg9[%c0_25, %c0_26] : memref<1x16xf32, #tpu.memory_space<vmem>>, vector<1x16xf32>
    %c0_27 = arith.constant 0 : index
    %c0_28 = arith.constant 0 : index
    %39 = vector.load %arg10[%c0_27, %c0_28] : memref<1x16xf32, #tpu.memory_space<vmem>>, vector<1x16xf32>
    %c0_29 = arith.constant 0 : index
    %c0_30 = arith.constant 0 : index
    %40 = vector.load %arg11[%c0_29, %c0_30] : memref<16x400xf32, #tpu.memory_space<vmem>>, vector<16x400xf32>
    %c0_31 = arith.constant 0 : index
    %c0_32 = arith.constant 0 : index
    %41 = vector.load %arg12[%c0_31, %c0_32] : memref<400x16xf32, #tpu.memory_space<vmem>>, vector<400x16xf32>
    %cst_33 = arith.constant dense<0.000000e+00> : vector<2x16xf32>
    %42 = tpu.matmul %37, %41, %cst_33 {dimension_numbers = #tpu.dot_dimension_numbers<[1], [0], [0], [1], [0, 0, 1, 1], [], []>} : vector<2x400xf32>, vector<400x16xf32>, vector<2x16xf32> -> vector<2x16xf32>
    %43 = arith.mulf %37, %37 : vector<2x400xf32>
    %cst_34 = arith.constant dense<0.000000e+00> : vector<2x16xf32>
    %44 = tpu.matmul %43, %41, %cst_34 {dimension_numbers = #tpu.dot_dimension_numbers<[1], [0], [0], [1], [0, 0, 1, 1], [], []>} : vector<2x400xf32>, vector<400x16xf32>, vector<2x16xf32> -> vector<2x16xf32>
    %cst_35 = arith.constant dense<0.000000e+00> : vector<16xf32>
    %45 = vector.multi_reduction <add>, %42, %cst_35 [0] : vector<2x16xf32> to vector<16xf32>
    %46 = vector.shape_cast %45 : vector<16xf32> to vector<1x16xf32>
    %cst_36 = arith.constant 5.000000e+01 : f32
    %47 = vector.broadcast %cst_36 : f32 to vector<1x16xf32>
    %48 = arith.divf %46, %47 : vector<1x16xf32>
    %cst_37 = arith.constant dense<0.000000e+00> : vector<16xf32>
    %49 = vector.multi_reduction <add>, %44, %cst_37 [0] : vector<2x16xf32> to vector<16xf32>
    %50 = vector.shape_cast %49 : vector<16xf32> to vector<1x16xf32>
    %cst_38 = arith.constant 5.000000e+01 : f32
    %51 = vector.broadcast %cst_38 : f32 to vector<1x16xf32>
    %52 = arith.divf %50, %51 : vector<1x16xf32>
    %53 = arith.mulf %48, %48 : vector<1x16xf32>
    %54 = arith.subf %52, %53 : vector<1x16xf32>
    %cst_39 = arith.constant 0.000000e+00 : f32
    %55 = vector.broadcast %cst_39 : f32 to vector<1x16xf32>
    %56 = arith.maximumf %54, %55 : vector<1x16xf32>
    %cst_40 = arith.constant 9.99999974E-6 : f32
    %57 = vector.broadcast %cst_40 : f32 to vector<1x16xf32>
    %58 = arith.addf %56, %57 : vector<1x16xf32>
    %59 = math.rsqrt %58 : vector<1x16xf32>
    %60 = arith.mulf %38, %59 : vector<1x16xf32>
    %61 = arith.mulf %48, %60 : vector<1x16xf32>
    %62 = arith.subf %39, %61 : vector<1x16xf32>
    %cst_41 = arith.constant dense<0.000000e+00> : vector<1x400xf32>
    %63 = tpu.matmul %60, %40, %cst_41 {dimension_numbers = #tpu.dot_dimension_numbers<[1], [0], [0], [1], [0, 0, 1, 1], [], []>} : vector<1x16xf32>, vector<16x400xf32>, vector<1x400xf32> -> vector<1x400xf32>
    %cst_42 = arith.constant dense<0.000000e+00> : vector<1x400xf32>
    %64 = tpu.matmul %62, %40, %cst_42 {dimension_numbers = #tpu.dot_dimension_numbers<[1], [0], [0], [1], [0, 0, 1, 1], [], []>} : vector<1x16xf32>, vector<16x400xf32>, vector<1x400xf32> -> vector<1x400xf32>
    %65 = vector.broadcast %63 : vector<1x400xf32> to vector<2x400xf32>
    %66 = arith.mulf %37, %65 : vector<2x400xf32>
    %67 = vector.broadcast %64 : vector<1x400xf32> to vector<2x400xf32>
    %68 = arith.addf %66, %67 : vector<2x400xf32>
    %cst_43 = arith.constant 0.000000e+00 : f32
    %69 = vector.broadcast %cst_43 : f32 to vector<2x400xf32>
    %70 = arith.maximumf %68, %69 : vector<2x400xf32>
    %c0_44 = arith.constant 0 : index
    %c0_45 = arith.constant 0 : index
    %71 = vector.load %arg13[%c0_44, %c0_45] : memref<400x8xf32, #tpu.memory_space<vmem>>, vector<400x8xf32>
    %cst_46 = arith.constant dense<0.000000e+00> : vector<2x8xf32>
    %72 = tpu.matmul %70, %71, %cst_46 {dimension_numbers = #tpu.dot_dimension_numbers<[1], [0], [0], [1], [0, 0, 1, 1], [], []>} : vector<2x400xf32>, vector<400x8xf32>, vector<2x8xf32> -> vector<2x8xf32>
    %c0_47 = arith.constant 0 : index
    %c0_48 = arith.constant 0 : index
    %73 = vector.load %arg14[%c0_47, %c0_48] : memref<1x8xf32, #tpu.memory_space<vmem>>, vector<1x8xf32>
    %74 = vector.broadcast %73 : vector<1x8xf32> to vector<2x8xf32>
    %75 = arith.addf %72, %74 : vector<2x8xf32>
    %c0_49 = arith.constant 0 : index
    %c0_50 = arith.constant 0 : index
    %76 = vector.load %arg15[%c0_49, %c0_50] : memref<1x8xf32, #tpu.memory_space<vmem>>, vector<1x8xf32>
    %c0_51 = arith.constant 0 : index
    %c0_52 = arith.constant 0 : index
    %77 = vector.load %arg16[%c0_51, %c0_52] : memref<1x8xf32, #tpu.memory_space<vmem>>, vector<1x8xf32>
    %cst_53 = arith.constant dense<0.000000e+00> : vector<8xf32>
    %78 = vector.multi_reduction <add>, %75, %cst_53 [0] : vector<2x8xf32> to vector<8xf32>
    %79 = vector.shape_cast %78 : vector<8xf32> to vector<1x8xf32>
    %cst_54 = arith.constant 2.000000e+00 : f32
    %80 = vector.broadcast %cst_54 : f32 to vector<1x8xf32>
    %81 = arith.divf %79, %80 : vector<1x8xf32>
    %82 = arith.mulf %75, %75 : vector<2x8xf32>
    %cst_55 = arith.constant dense<0.000000e+00> : vector<8xf32>
    %83 = vector.multi_reduction <add>, %82, %cst_55 [0] : vector<2x8xf32> to vector<8xf32>
    %84 = vector.shape_cast %83 : vector<8xf32> to vector<1x8xf32>
    %cst_56 = arith.constant 2.000000e+00 : f32
    %85 = vector.broadcast %cst_56 : f32 to vector<1x8xf32>
    %86 = arith.divf %84, %85 : vector<1x8xf32>
    %87 = arith.mulf %81, %81 : vector<1x8xf32>
    %88 = arith.subf %86, %87 : vector<1x8xf32>
    %cst_57 = arith.constant 0.000000e+00 : f32
    %89 = vector.broadcast %cst_57 : f32 to vector<1x8xf32>
    %90 = arith.maximumf %88, %89 : vector<1x8xf32>
    %cst_58 = arith.constant 9.99999974E-6 : f32
    %91 = vector.broadcast %cst_58 : f32 to vector<1x8xf32>
    %92 = arith.addf %90, %91 : vector<1x8xf32>
    %93 = math.rsqrt %92 : vector<1x8xf32>
    %94 = arith.mulf %76, %93 : vector<1x8xf32>
    %95 = vector.broadcast %94 : vector<1x8xf32> to vector<2x8xf32>
    %96 = arith.mulf %75, %95 : vector<2x8xf32>
    %97 = arith.mulf %81, %94 : vector<1x8xf32>
    %98 = arith.subf %77, %97 : vector<1x8xf32>
    %99 = vector.broadcast %98 : vector<1x8xf32> to vector<2x8xf32>
    %100 = arith.addf %96, %99 : vector<2x8xf32>
    %cst_59 = arith.constant 0.000000e+00 : f32
    %101 = vector.broadcast %cst_59 : f32 to vector<2x8xf32>
    %102 = arith.maximumf %100, %101 : vector<2x8xf32>
    %c0_60 = arith.constant 0 : index
    %c0_61 = arith.constant 0 : index
    %103 = vector.load %arg17[%c0_60, %c0_61] : memref<400x8xf32, #tpu.memory_space<vmem>>, vector<400x8xf32>
    %cst_62 = arith.constant dense<0.000000e+00> : vector<2x8xf32>
    %104 = tpu.matmul %70, %103, %cst_62 {dimension_numbers = #tpu.dot_dimension_numbers<[1], [0], [0], [1], [0, 0, 1, 1], [], []>} : vector<2x400xf32>, vector<400x8xf32>, vector<2x8xf32> -> vector<2x8xf32>
    %c0_63 = arith.constant 0 : index
    %c0_64 = arith.constant 0 : index
    %105 = vector.load %arg18[%c0_63, %c0_64] : memref<1x8xf32, #tpu.memory_space<vmem>>, vector<1x8xf32>
    %106 = vector.broadcast %105 : vector<1x8xf32> to vector<2x8xf32>
    %107 = arith.addf %104, %106 : vector<2x8xf32>
    %c0_65 = arith.constant 0 : index
    %c0_66 = arith.constant 0 : index
    %108 = vector.load %arg19[%c0_65, %c0_66] : memref<1x8xf32, #tpu.memory_space<vmem>>, vector<1x8xf32>
    %c0_67 = arith.constant 0 : index
    %c0_68 = arith.constant 0 : index
    %109 = vector.load %arg20[%c0_67, %c0_68] : memref<1x8xf32, #tpu.memory_space<vmem>>, vector<1x8xf32>
    %cst_69 = arith.constant dense<0.000000e+00> : vector<8xf32>
    %110 = vector.multi_reduction <add>, %107, %cst_69 [0] : vector<2x8xf32> to vector<8xf32>
    %111 = vector.shape_cast %110 : vector<8xf32> to vector<1x8xf32>
    %cst_70 = arith.constant 2.000000e+00 : f32
    %112 = vector.broadcast %cst_70 : f32 to vector<1x8xf32>
    %113 = arith.divf %111, %112 : vector<1x8xf32>
    %114 = arith.mulf %107, %107 : vector<2x8xf32>
    %cst_71 = arith.constant dense<0.000000e+00> : vector<8xf32>
    %115 = vector.multi_reduction <add>, %114, %cst_71 [0] : vector<2x8xf32> to vector<8xf32>
    %116 = vector.shape_cast %115 : vector<8xf32> to vector<1x8xf32>
    %cst_72 = arith.constant 2.000000e+00 : f32
    %117 = vector.broadcast %cst_72 : f32 to vector<1x8xf32>
    %118 = arith.divf %116, %117 : vector<1x8xf32>
    %119 = arith.mulf %113, %113 : vector<1x8xf32>
    %120 = arith.subf %118, %119 : vector<1x8xf32>
    %cst_73 = arith.constant 0.000000e+00 : f32
    %121 = vector.broadcast %cst_73 : f32 to vector<1x8xf32>
    %122 = arith.maximumf %120, %121 : vector<1x8xf32>
    %cst_74 = arith.constant 9.99999974E-6 : f32
    %123 = vector.broadcast %cst_74 : f32 to vector<1x8xf32>
    %124 = arith.addf %122, %123 : vector<1x8xf32>
    %125 = math.rsqrt %124 : vector<1x8xf32>
    %126 = arith.mulf %108, %125 : vector<1x8xf32>
    %127 = vector.broadcast %126 : vector<1x8xf32> to vector<2x8xf32>
    %128 = arith.mulf %107, %127 : vector<2x8xf32>
    %129 = arith.mulf %113, %126 : vector<1x8xf32>
    %130 = arith.subf %109, %129 : vector<1x8xf32>
    %131 = vector.broadcast %130 : vector<1x8xf32> to vector<2x8xf32>
    %132 = arith.addf %128, %131 : vector<2x8xf32>
    %cst_75 = arith.constant 0.000000e+00 : f32
    %133 = vector.broadcast %cst_75 : f32 to vector<2x8xf32>
    %134 = arith.maximumf %132, %133 : vector<2x8xf32>
    %c0_76 = arith.constant 0 : index
    %c0_77 = arith.constant 0 : index
    %135 = vector.load %arg33[%c0_76, %c0_77] : memref<2x8xf32, #tpu.memory_space<vmem>>, vector<2x8xf32>
    tpu.vector_store %arg33[%c0_76, %c0_77], %102 {strides = array<i32>} : memref<2x8xf32, #tpu.memory_space<vmem>>, vector<2x8xf32>,
    %c0_78 = arith.constant 0 : index
    %c0_79 = arith.constant 0 : index
    %136 = vector.load %arg34[%c0_78, %c0_79] : memref<2x8xf32, #tpu.memory_space<vmem>>, vector<2x8xf32>
    tpu.vector_store %arg34[%c0_78, %c0_79], %134 {strides = array<i32>} : memref<2x8xf32, #tpu.memory_space<vmem>>, vector<2x8xf32>,
    %c0_80 = arith.constant 0 : index
    %c0_81 = arith.constant 0 : index
    %137 = vector.load %arg2[%c0_80, %c0_81] : memref<2x8xf32, #tpu.memory_space<vmem>>, vector<2x8xf32>
    %cst_82 = arith.constant 5.000000e-01 : f32
    %138 = vector.broadcast %cst_82 : f32 to vector<2x8xf32>
    %139 = arith.mulf %138, %134 : vector<2x8xf32>
    %140 = math.exp %139 : vector<2x8xf32>
    %141 = arith.mulf %137, %140 : vector<2x8xf32>
    %142 = arith.addf %141, %102 : vector<2x8xf32>
    %c0_83 = arith.constant 0 : index
    %c0_84 = arith.constant 0 : index
    %143 = vector.load %arg21[%c0_83, %c0_84] : memref<8x128xf32, #tpu.memory_space<vmem>>, vector<8x128xf32>
    %cst_85 = arith.constant dense<0.000000e+00> : vector<2x128xf32>
    %144 = tpu.matmul %142, %143, %cst_85 {dimension_numbers = #tpu.dot_dimension_numbers<[1], [0], [0], [1], [0, 0, 1, 1], [], []>} : vector<2x8xf32>, vector<8x128xf32>, vector<2x128xf32> -> vector<2x128xf32>
    %c0_86 = arith.constant 0 : index
    %c0_87 = arith.constant 0 : index
    %145 = vector.load %arg22[%c0_86, %c0_87] : memref<1x8xf32, #tpu.memory_space<vmem>>, vector<1x8xf32>
    %c0_88 = arith.constant 0 : index
    %c0_89 = arith.constant 0 : index
    %146 = vector.load %arg23[%c0_88, %c0_89] : memref<1x8xf32, #tpu.memory_space<vmem>>, vector<1x8xf32>
    %c0_90 = arith.constant 0 : index
    %c0_91 = arith.constant 0 : index
    %147 = vector.load %arg24[%c0_90, %c0_91] : memref<8x128xf32, #tpu.memory_space<vmem>>, vector<8x128xf32>
    %c0_92 = arith.constant 0 : index
    %c0_93 = arith.constant 0 : index
    %148 = vector.load %arg25[%c0_92, %c0_93] : memref<128x8xf32, #tpu.memory_space<vmem>>, vector<128x8xf32>
    %cst_94 = arith.constant dense<0.000000e+00> : vector<2x8xf32>
    %149 = tpu.matmul %144, %148, %cst_94 {dimension_numbers = #tpu.dot_dimension_numbers<[1], [0], [0], [1], [0, 0, 1, 1], [], []>} : vector<2x128xf32>, vector<128x8xf32>, vector<2x8xf32> -> vector<2x8xf32>
    %150 = arith.mulf %144, %144 : vector<2x128xf32>
    %cst_95 = arith.constant dense<0.000000e+00> : vector<2x8xf32>
    %151 = tpu.matmul %150, %148, %cst_95 {dimension_numbers = #tpu.dot_dimension_numbers<[1], [0], [0], [1], [0, 0, 1, 1], [], []>} : vector<2x128xf32>, vector<128x8xf32>, vector<2x8xf32> -> vector<2x8xf32>
    %cst_96 = arith.constant dense<0.000000e+00> : vector<8xf32>
    %152 = vector.multi_reduction <add>, %149, %cst_96 [0] : vector<2x8xf32> to vector<8xf32>
    %153 = vector.shape_cast %152 : vector<8xf32> to vector<1x8xf32>
    %cst_97 = arith.constant 3.200000e+01 : f32
    %154 = vector.broadcast %cst_97 : f32 to vector<1x8xf32>
    %155 = arith.divf %153, %154 : vector<1x8xf32>
    %cst_98 = arith.constant dense<0.000000e+00> : vector<8xf32>
    %156 = vector.multi_reduction <add>, %151, %cst_98 [0] : vector<2x8xf32> to vector<8xf32>
    %157 = vector.shape_cast %156 : vector<8xf32> to vector<1x8xf32>
    %cst_99 = arith.constant 3.200000e+01 : f32
    %158 = vector.broadcast %cst_99 : f32 to vector<1x8xf32>
    %159 = arith.divf %157, %158 : vector<1x8xf32>
    %160 = arith.mulf %155, %155 : vector<1x8xf32>
    %161 = arith.subf %159, %160 : vector<1x8xf32>
    %cst_100 = arith.constant 0.000000e+00 : f32
    %162 = vector.broadcast %cst_100 : f32 to vector<1x8xf32>
    %163 = arith.maximumf %161, %162 : vector<1x8xf32>
    %cst_101 = arith.constant 9.99999974E-6 : f32
    %164 = vector.broadcast %cst_101 : f32 to vector<1x8xf32>
    %165 = arith.addf %163, %164 : vector<1x8xf32>
    %166 = math.rsqrt %165 : vector<1x8xf32>
    %167 = arith.mulf %145, %166 : vector<1x8xf32>
    %168 = arith.mulf %155, %167 : vector<1x8xf32>
    %169 = arith.subf %146, %168 : vector<1x8xf32>
    %cst_102 = arith.constant dense<0.000000e+00> : vector<1x128xf32>
    %170 = tpu.matmul %167, %147, %cst_102 {dimension_numbers = #tpu.dot_dimension_numbers<[1], [0], [0], [1], [0, 0, 1, 1], [], []>} : vector<1x8xf32>, vector<8x128xf32>, vector<1x128xf32> -> vector<1x128xf32>
    %cst_103 = arith.constant dense<0.000000e+00> : vector<1x128xf32>
    %171 = tpu.matmul %169, %147, %cst_103 {dimension_numbers = #tpu.dot_dimension_numbers<[1], [0], [0], [1], [0, 0, 1, 1], [], []>} : vector<1x8xf32>, vector<8x128xf32>, vector<1x128xf32> -> vector<1x128xf32>
    %172 = vector.broadcast %170 : vector<1x128xf32> to vector<2x128xf32>
    %173 = arith.mulf %144, %172 : vector<2x128xf32>
    %174 = vector.broadcast %171 : vector<1x128xf32> to vector<2x128xf32>
    %175 = arith.addf %173, %174 : vector<2x128xf32>
    %cst_104 = arith.constant 0.000000e+00 : f32
    %176 = vector.broadcast %cst_104 : f32 to vector<2x128xf32>
    %177 = arith.maximumf %175, %176 : vector<2x128xf32>
    %c0_105 = arith.constant 0 : index
    %c0_106 = arith.constant 0 : index
    %178 = vector.load %arg26[%c0_105, %c0_106] : memref<128x256xf32, #tpu.memory_space<vmem>>, vector<128x256xf32>
    %cst_107 = arith.constant dense<0.000000e+00> : vector<2x256xf32>
    %179 = tpu.matmul %177, %178, %cst_107 {dimension_numbers = #tpu.dot_dimension_numbers<[1], [0], [0], [1], [0, 0, 1, 1], [], []>} : vector<2x128xf32>, vector<128x256xf32>, vector<2x256xf32> -> vector<2x256xf32>
    %c0_108 = arith.constant 0 : index
    %c0_109 = arith.constant 0 : index
    %180 = vector.load %arg27[%c0_108, %c0_109] : memref<1x4xf32, #tpu.memory_space<vmem>>, vector<1x4xf32>
    %c0_110 = arith.constant 0 : index
    %c0_111 = arith.constant 0 : index
    %181 = vector.load %arg28[%c0_110, %c0_111] : memref<1x4xf32, #tpu.memory_space<vmem>>, vector<1x4xf32>
    %c0_112 = arith.constant 0 : index
    %c0_113 = arith.constant 0 : index
    %182 = vector.load %arg29[%c0_112, %c0_113] : memref<4x256xf32, #tpu.memory_space<vmem>>, vector<4x256xf32>
    %c0_114 = arith.constant 0 : index
    %c0_115 = arith.constant 0 : index
    %183 = vector.load %arg30[%c0_114, %c0_115] : memref<256x4xf32, #tpu.memory_space<vmem>>, vector<256x4xf32>
    %cst_116 = arith.constant dense<0.000000e+00> : vector<2x4xf32>
    %184 = tpu.matmul %179, %183, %cst_116 {dimension_numbers = #tpu.dot_dimension_numbers<[1], [0], [0], [1], [0, 0, 1, 1], [], []>} : vector<2x256xf32>, vector<256x4xf32>, vector<2x4xf32> -> vector<2x4xf32>
    %185 = arith.mulf %179, %179 : vector<2x256xf32>
    %cst_117 = arith.constant dense<0.000000e+00> : vector<2x4xf32>
    %186 = tpu.matmul %185, %183, %cst_117 {dimension_numbers = #tpu.dot_dimension_numbers<[1], [0], [0], [1], [0, 0, 1, 1], [], []>} : vector<2x256xf32>, vector<256x4xf32>, vector<2x4xf32> -> vector<2x4xf32>
    %cst_118 = arith.constant dense<0.000000e+00> : vector<4xf32>
    %187 = vector.multi_reduction <add>, %184, %cst_118 [0] : vector<2x4xf32> to vector<4xf32>
    %188 = vector.shape_cast %187 : vector<4xf32> to vector<1x4xf32>
    %cst_119 = arith.constant 1.280000e+02 : f32
    %189 = vector.broadcast %cst_119 : f32 to vector<1x4xf32>
    %190 = arith.divf %188, %189 : vector<1x4xf32>
    %cst_120 = arith.constant dense<0.000000e+00> : vector<4xf32>
    %191 = vector.multi_reduction <add>, %186, %cst_120 [0] : vector<2x4xf32> to vector<4xf32>
    %192 = vector.shape_cast %191 : vector<4xf32> to vector<1x4xf32>
    %cst_121 = arith.constant 1.280000e+02 : f32
    %193 = vector.broadcast %cst_121 : f32 to vector<1x4xf32>
    %194 = arith.divf %192, %193 : vector<1x4xf32>
    %195 = arith.mulf %190, %190 : vector<1x4xf32>
    %196 = arith.subf %194, %195 : vector<1x4xf32>
    %cst_122 = arith.constant 0.000000e+00 : f32
    %197 = vector.broadcast %cst_122 : f32 to vector<1x4xf32>
    %198 = arith.maximumf %196, %197 : vector<1x4xf32>
    %cst_123 = arith.constant 9.99999974E-6 : f32
    %199 = vector.broadcast %cst_123 : f32 to vector<1x4xf32>
    %200 = arith.addf %198, %199 : vector<1x4xf32>
    %201 = math.rsqrt %200 : vector<1x4xf32>
    %202 = arith.mulf %180, %201 : vector<1x4xf32>
    %203 = arith.mulf %190, %202 : vector<1x4xf32>
    %204 = arith.subf %181, %203 : vector<1x4xf32>
    %cst_124 = arith.constant dense<0.000000e+00> : vector<1x256xf32>
    %205 = tpu.matmul %202, %182, %cst_124 {dimension_numbers = #tpu.dot_dimension_numbers<[1], [0], [0], [1], [0, 0, 1, 1], [], []>} : vector<1x4xf32>, vector<4x256xf32>, vector<1x256xf32> -> vector<1x256xf32>
    %cst_125 = arith.constant dense<0.000000e+00> : vector<1x256xf32>
    %206 = tpu.matmul %204, %182, %cst_125 {dimension_numbers = #tpu.dot_dimension_numbers<[1], [0], [0], [1], [0, 0, 1, 1], [], []>} : vector<1x4xf32>, vector<4x256xf32>, vector<1x256xf32> -> vector<1x256xf32>
    %207 = vector.broadcast %205 : vector<1x256xf32> to vector<2x256xf32>
    %208 = arith.mulf %179, %207 : vector<2x256xf32>
    %209 = vector.broadcast %206 : vector<1x256xf32> to vector<2x256xf32>
    %210 = arith.addf %208, %209 : vector<2x256xf32>
    %cst_126 = arith.constant 0.000000e+00 : f32
    %211 = vector.broadcast %cst_126 : f32 to vector<2x256xf32>
    %212 = arith.maximumf %210, %211 : vector<2x256xf32>
    %c0_127 = arith.constant 0 : index
    %c0_128 = arith.constant 0 : index
    %213 = vector.load %arg31[%c0_127, %c0_128] : memref<256x768xf32, #tpu.memory_space<vmem>>, vector<256x768xf32>
    %cst_129 = arith.constant dense<0.000000e+00> : vector<2x768xf32>
    %214 = tpu.matmul %212, %213, %cst_129 {dimension_numbers = #tpu.dot_dimension_numbers<[1], [0], [0], [1], [0, 0, 1, 1], [], []>} : vector<2x256xf32>, vector<256x768xf32>, vector<2x768xf32> -> vector<2x768xf32>
    %215 = math.tanh %214 : vector<2x768xf32>
    %c0_130 = arith.constant 0 : index
    %c0_131 = arith.constant 0 : index
    %216 = vector.load %arg32[%c0_130, %c0_131] : memref<2x768xf32, #tpu.memory_space<vmem>>, vector<2x768xf32>
    tpu.vector_store %arg32[%c0_130, %c0_131], %215 {strides = array<i32>} : memref<2x768xf32, #tpu.memory_space<vmem>>, vector<2x768xf32>,
    return
  }
  func.func @transform_0(%arg0: i32) -> (i32, i32) {
    %c0_i32 = arith.constant 0 : i32
    %c0_i32_0 = arith.constant 0 : i32
    %c0_i32_1 = arith.constant 0 : i32
    return %c0_i32, %c0_i32_0 : i32, i32
  }
  func.func @transform_1(%arg0: i32) -> (i32, i32) {
    %c0_i32 = arith.constant 0 : i32
    %c0_i32_0 = arith.constant 0 : i32
    %c0_i32_1 = arith.constant 0 : i32
    return %c0_i32, %c0_i32_0 : i32, i32
  }
  func.func @transform_2(%arg0: i32) -> (i32, i32) {
    %c0_i32 = arith.constant 0 : i32
    %c0_i32_0 = arith.constant 0 : i32
    %c0_i32_1 = arith.constant 0 : i32
    return %c0_i32, %c0_i32_0 : i32, i32
  }
  func.func @transform_3(%arg0: i32) -> (i32, i32) {
    %c0_i32 = arith.constant 0 : i32
    %c0_i32_0 = arith.constant 0 : i32
    %c0_i32_1 = arith.constant 0 : i32
    return %c0_i32, %c0_i32_0 : i32, i32
  }
  func.func @transform_4(%arg0: i32) -> (i32, i32) {
    %c0_i32 = arith.constant 0 : i32
    %c0_i32_0 = arith.constant 0 : i32
    %c0_i32_1 = arith.constant 0 : i32
    return %c0_i32, %c0_i32_0 : i32, i32
  }
  func.func @transform_5(%arg0: i32) -> (i32, i32) {
    %c0_i32 = arith.constant 0 : i32
    %c0_i32_0 = arith.constant 0 : i32
    %c0_i32_1 = arith.constant 0 : i32
    return %c0_i32, %c0_i32_0 : i32, i32
  }
  func.func @transform_6(%arg0: i32) -> (i32, i32) {
    %c0_i32 = arith.constant 0 : i32
    %c0_i32_0 = arith.constant 0 : i32
    %c0_i32_1 = arith.constant 0 : i32
    return %c0_i32, %c0_i32_0 : i32, i32
  }
  func.func @transform_7(%arg0: i32) -> (i32, i32) {
    %c0_i32 = arith.constant 0 : i32
    %c0_i32_0 = arith.constant 0 : i32
    %c0_i32_1 = arith.constant 0 : i32
    return %c0_i32, %c0_i32_0 : i32, i32
  }
  func.func @transform_8(%arg0: i32) -> (i32, i32) {
    %c0_i32 = arith.constant 0 : i32
    %c0_i32_0 = arith.constant 0 : i32
    %c0_i32_1 = arith.constant 0 : i32
    return %c0_i32, %c0_i32_0 : i32, i32
  }
  func.func @transform_9(%arg0: i32) -> (i32, i32) {
    %c0_i32 = arith.constant 0 : i32
    %c0_i32_0 = arith.constant 0 : i32
    %c0_i32_1 = arith.constant 0 : i32
    return %c0_i32, %c0_i32_0 : i32, i32
  }
  func.func @transform_10(%arg0: i32) -> (i32, i32) {
    %c0_i32 = arith.constant 0 : i32
    %c0_i32_0 = arith.constant 0 : i32
    %c0_i32_1 = arith.constant 0 : i32
    return %c0_i32, %c0_i32_0 : i32, i32
  }
  func.func @transform_11(%arg0: i32) -> (i32, i32) {
    %c0_i32 = arith.constant 0 : i32
    %c0_i32_0 = arith.constant 0 : i32
    %c0_i32_1 = arith.constant 0 : i32
    return %c0_i32, %c0_i32_0 : i32, i32
  }
  func.func @transform_12(%arg0: i32) -> (i32, i32) {
    %c0_i32 = arith.constant 0 : i32
    %c0_i32_0 = arith.constant 0 : i32
    %c0_i32_1 = arith.constant 0 : i32
    return %c0_i32, %c0_i32_0 : i32, i32
  }
  func.func @transform_13(%arg0: i32) -> (i32, i32) {
    %c0_i32 = arith.constant 0 : i32
    %c0_i32_0 = arith.constant 0 : i32
    %c0_i32_1 = arith.constant 0 : i32
    return %c0_i32, %c0_i32_0 : i32, i32
  }
  func.func @transform_14(%arg0: i32) -> (i32, i32) {
    %c0_i32 = arith.constant 0 : i32
    %c0_i32_0 = arith.constant 0 : i32
    %c0_i32_1 = arith.constant 0 : i32
    return %c0_i32, %c0_i32_0 : i32, i32
  }
  func.func @transform_15(%arg0: i32) -> (i32, i32) {
    %c0_i32 = arith.constant 0 : i32
    %c0_i32_0 = arith.constant 0 : i32
    %c0_i32_1 = arith.constant 0 : i32
    return %c0_i32, %c0_i32_0 : i32, i32
  }
  func.func @transform_16(%arg0: i32) -> (i32, i32) {
    %c0_i32 = arith.constant 0 : i32
    %c0_i32_0 = arith.constant 0 : i32
    %c0_i32_1 = arith.constant 0 : i32
    return %c0_i32, %c0_i32_0 : i32, i32
  }
  func.func @transform_17(%arg0: i32) -> (i32, i32) {
    %c0_i32 = arith.constant 0 : i32
    %c0_i32_0 = arith.constant 0 : i32
    %c0_i32_1 = arith.constant 0 : i32
    return %c0_i32, %c0_i32_0 : i32, i32
  }
  func.func @transform_18(%arg0: i32) -> (i32, i32) {
    %c0_i32 = arith.constant 0 : i32
    %c0_i32_0 = arith.constant 0 : i32
    %c0_i32_1 = arith.constant 0 : i32
    return %c0_i32, %c0_i32_0 : i32, i32
  }
  func.func @transform_19(%arg0: i32) -> (i32, i32) {
    %c0_i32 = arith.constant 0 : i32
    %c0_i32_0 = arith.constant 0 : i32
    %c0_i32_1 = arith.constant 0 : i32
    return %c0_i32, %c0_i32_0 : i32, i32
  }
  func.func @transform_20(%arg0: i32) -> (i32, i32) {
    %c0_i32 = arith.constant 0 : i32
    %c0_i32_0 = arith.constant 0 : i32
    %c0_i32_1 = arith.constant 0 : i32
    return %c0_i32, %c0_i32_0 : i32, i32
  }
  func.func @transform_21(%arg0: i32) -> (i32, i32) {
    %c0_i32 = arith.constant 0 : i32
    %c0_i32_0 = arith.constant 0 : i32
    %c0_i32_1 = arith.constant 0 : i32
    return %c0_i32, %c0_i32_0 : i32, i32
  }
  func.func @transform_22(%arg0: i32) -> (i32, i32) {
    %c0_i32 = arith.constant 0 : i32
    %c0_i32_0 = arith.constant 0 : i32
    %c0_i32_1 = arith.constant 0 : i32
    return %c0_i32, %c0_i32_0 : i32, i32
  }
  func.func @transform_23(%arg0: i32) -> (i32, i32) {
    %c0_i32 = arith.constant 0 : i32
    %c0_i32_0 = arith.constant 0 : i32
    %c0_i32_1 = arith.constant 0 : i32
    return %c0_i32, %c0_i32_0 : i32, i32
  }
  func.func @transform_24(%arg0: i32) -> (i32, i32) {
    %c0_i32 = arith.constant 0 : i32
    %c0_i32_0 = arith.constant 0 : i32
    %c0_i32_1 = arith.constant 0 : i32
    return %c0_i32, %c0_i32_0 : i32, i32
  }
  func.func @transform_25(%arg0: i32) -> (i32, i32) {
    %c0_i32 = arith.constant 0 : i32
    %c0_i32_0 = arith.constant 0 : i32
    %c0_i32_1 = arith.constant 0 : i32
    return %c0_i32, %c0_i32_0 : i32, i32
  }
  func.func @transform_26(%arg0: i32) -> (i32, i32) {
    %c0_i32 = arith.constant 0 : i32
    %c0_i32_0 = arith.constant 0 : i32
    %c0_i32_1 = arith.constant 0 : i32
    return %c0_i32, %c0_i32_0 : i32, i32
  }
  func.func @transform_27(%arg0: i32) -> (i32, i32) {
    %c0_i32 = arith.constant 0 : i32
    %c0_i32_0 = arith.constant 0 : i32
    %c0_i32_1 = arith.constant 0 : i32
    return %c0_i32, %c0_i32_0 : i32, i32
  }
  func.func @transform_28(%arg0: i32) -> (i32, i32) {
    %c0_i32 = arith.constant 0 : i32
    %c0_i32_0 = arith.constant 0 : i32
    %c0_i32_1 = arith.constant 0 : i32
    return %c0_i32, %c0_i32_0 : i32, i32
  }
  func.func @transform_29(%arg0: i32) -> (i32, i32) {
    %c0_i32 = arith.constant 0 : i32
    %c0_i32_0 = arith.constant 0 : i32
    %c0_i32_1 = arith.constant 0 : i32
    return %c0_i32, %c0_i32_0 : i32, i32
  }
  func.func @transform_30(%arg0: i32) -> (i32, i32) {
    %c0_i32 = arith.constant 0 : i32
    %c0_i32_0 = arith.constant 0 : i32
    %c0_i32_1 = arith.constant 0 : i32
    return %c0_i32, %c0_i32_0 : i32, i32
  }
  func.func @transform_31(%arg0: i32) -> (i32, i32) {
    %c0_i32 = arith.constant 0 : i32
    %c0_i32_0 = arith.constant 0 : i32
    %c0_i32_1 = arith.constant 0 : i32
    return %c0_i32, %c0_i32_0 : i32, i32
  }
  func.func @transform_32(%arg0: i32) -> (i32, i32) {
    %c0_i32 = arith.constant 0 : i32
    %c0_i32_0 = arith.constant 0 : i32
    %c0_i32_1 = arith.constant 0 : i32
    return %c0_i32, %c0_i32_0 : i32, i32
  }
  func.func @transform_33(%arg0: i32) -> (i32, i32) {
    %c0_i32 = arith.constant 0 : i32
    %c0_i32_0 = arith.constant 0 : i32
    %c0_i32_1 = arith.constant 0 : i32
    return %c0_i32, %c0_i32_0 : i32, i32
  }
}

</mosaic_0001>

<llo_original>
// kernel: generator_forward.1
$region0: #{generator_forward.1}
  #allocation0 [shape = 'u32[]', space=smem, size = 0x4, offset = 0x4, fixed_abs, tag = 'smem constant byte address 0x4 - core index']
  #allocation1 [shape = 'u32[144,128]{1,0:T(1,128)}', space=vmem, size = 0x12000, scoped, tag = 'internal scratch']
  %s0 = inlined_call_operand.smem [shape: u32[34], index: -1, kind: input, shape index: {}]
  %s1 = sld [smem:[%s0]]
  %s2 = scalar_lea.smem %s0, 1
  %s3 = sld [smem:[%s2]]
  %s4 = scalar_lea.smem %s0, 2
  %s5 = sld [smem:[%s4]]
  %s6 = scalar_lea.smem %s0, 3
  %s7 = sld [smem:[%s6]]
  %s8 = scalar_lea.smem %s0, 4
  %s9 = sld [smem:[%s8]]
  %s10 = scalar_lea.smem %s0, 5
  %s11 = sld [smem:[%s10]]
  %s12 = scalar_lea.smem %s0, 6
  %s13 = sld [smem:[%s12]]
  %s14 = scalar_lea.smem %s0, 7
  %s15 = sld [smem:[%s14]]
  %s16 = scalar_lea.smem %s0, 8
  %s17 = sld [smem:[%s16]]
  %s18 = scalar_lea.smem %s0, 9
  %s19 = sld [smem:[%s18]]
  %s20 = scalar_lea.smem %s0, 10
  %s21 = sld [smem:[%s20]]
  %s22 = scalar_lea.smem %s0, 11
  %s23 = sld [smem:[%s22]]
  %s24 = scalar_lea.smem %s0, 12
  %s25 = sld [smem:[%s24]]
  %s26 = scalar_lea.smem %s0, 13
  %s27 = sld [smem:[%s26]]
  %s28 = scalar_lea.smem %s0, 14
  %s29 = sld [smem:[%s28]]
  %s30 = scalar_lea.smem %s0, 15
  %s31 = sld [smem:[%s30]]
  %s32 = scalar_lea.smem %s0, 16
  %s33 = sld [smem:[%s32]]
  %s34 = scalar_lea.smem %s0, 17
  %s35 = sld [smem:[%s34]]
  %s36 = scalar_lea.smem %s0, 18
  %s37 = sld [smem:[%s36]]
  %s38 = scalar_lea.smem %s0, 19
  %s39 = sld [smem:[%s38]]
  %s40 = scalar_lea.smem %s0, 20
  %s41 = sld [smem:[%s40]]
  %s42 = scalar_lea.smem %s0, 21
  %s43 = sld [smem:[%s42]]
  %s44 = scalar_lea.smem %s0, 22
  %s45 = sld [smem:[%s44]]
  %s46 = scalar_lea.smem %s0, 23
  %s47 = sld [smem:[%s46]]
  %s48 = scalar_lea.smem %s0, 24
  %s49 = sld [smem:[%s48]]
  %s50 = scalar_lea.smem %s0, 25
  %s51 = sld [smem:[%s50]]
  %s52 = scalar_lea.smem %s0, 26
  %s53 = sld [smem:[%s52]]
  %s54 = scalar_lea.smem %s0, 27
  %s55 = sld [smem:[%s54]]
  %s56 = scalar_lea.smem %s0, 28
  %s57 = sld [smem:[%s56]]
  %s58 = scalar_lea.smem %s0, 29
  %s59 = sld [smem:[%s58]]
  %s60 = scalar_lea.smem %s0, 30
  %s61 = sld [smem:[%s60]]
  %s62 = scalar_lea.smem %s0, 31
  %s63 = sld [smem:[%s62]]
  %s64 = scalar_lea.smem %s0, 32
  %s65 = sld [smem:[%s64]]
  %s66 = scalar_lea.smem %s0, 33
  %s67 = sld [smem:[%s66]]
  %68 = xla_tuple %s63, %s65, %s67
  %s69 = sld [smem:[#allocation0]]
  $region154: #{generator_forward.1} parent=0
    _
  %s71 = ssub.s32 1, %s69
  %s72 = scalar_select 0, %s71, %s69
  $region1: #{generator_forward.1} parent=0
    #allocation2 [shape = 'u8[786432]{0}', space=vmem, size = 0xc0000, scoped, tag = 'input window, operand 30, single buffered']
    #allocation3 [shape = 's32[1]{0}', space=sflag, size = 0x4, scoped, tag = 'scoped memory for generator_forward.1']
    #allocation4 [shape = 's32[1]{0}', space=sflag, size = 0x4, scoped, tag = 'scoped memory for generator_forward.1']
    #allocation5 [shape = 'u8[1024]{0}', space=vmem, size = 0x400, scoped, tag = 'output window, operand 1, single buffered']
    #allocation6 [shape = 'u8[1024]{0}', space=vmem, size = 0x400, scoped, tag = 'output window, operand 2, single buffered']
    #allocation7 [shape = 's32[1]{0}', space=sflag, size = 0x4, scoped, tag = 'scoped memory for generator_forward.1']
    %73 = vsyncpa [#allocation3], 0
    %74 = vsyncpa [#allocation4], 0
    %75 = vsyncpa [#allocation7], 0
    // Predicated region
    $region2: #{generator_forward.1} parent=1 // pred_check
      _
    $region3: #{generator_forward.1} parent=1 // pred_check_branch
      %77 = sbr.rel (0) target = $region5
    $region4: #{generator_forward.1} parent=1 // pred_region
      _
    $region5: #{generator_forward.1} parent=1 // pred_fallthru
      _
    // Predicated region
    $region6: #{generator_forward.1} parent=1 // pred_check
      _
    $region7: #{generator_forward.1} parent=1 // pred_check_branch
      %79 = sbr.rel (0) target = $region9
    $region8: #{generator_forward.1} parent=1 // pred_region
      _
    $region9: #{generator_forward.1} parent=1 // pred_fallthru
      _
    // Predicated region
    $region10: #{generator_forward.1} parent=1 // pred_check
      _
    $region11: #{generator_forward.1} parent=1 // pred_check_branch
      %81 = sbr.rel (0) target = $region13
    $region12: #{generator_forward.1} parent=1 // pred_region
      _
    $region13: #{generator_forward.1} parent=1 // pred_fallthru
      _
    // Predicated region
    $region14: #{generator_forward.1} parent=1 // pred_check
      _
    $region15: #{generator_forward.1} parent=1 // pred_check_branch
      %83 = sbr.rel (0) target = $region17
    $region16: #{generator_forward.1} parent=1 // pred_region
      _
    $region17: #{generator_forward.1} parent=1 // pred_fallthru
      _
    // Predicated region
    $region18: #{generator_forward.1} parent=1 // pred_check
      _
    $region19: #{generator_forward.1} parent=1 // pred_check_branch
      %85 = sbr.rel (0) target = $region21
    $region20: #{generator_forward.1} parent=1 // pred_region
      _
    $region21: #{generator_forward.1} parent=1 // pred_fallthru
      _
    // Predicated region
    $region22: #{generator_forward.1} parent=1 // pred_check
      _
    $region23: #{generator_forward.1} parent=1 // pred_check_branch
      %87 = sbr.rel (0) target = $region25
    $region24: #{generator_forward.1} parent=1 // pred_region
      _
    $region25: #{generator_forward.1} parent=1 // pred_fallthru
      _
    // Predicated region
    $region26: #{generator_forward.1} parent=1 // pred_check
      _
    $region27: #{generator_forward.1} parent=1 // pred_check_branch
      %89 = sbr.rel (0) target = $region29
    $region28: #{generator_forward.1} parent=1 // pred_region
      _
    $region29: #{generator_forward.1} parent=1 // pred_fallthru
      _
    // Predicated region
    $region30: #{generator_forward.1} parent=1 // pred_check
      _
    $region31: #{generator_forward.1} parent=1 // pred_check_branch
      %91 = sbr.rel (0) target = $region33
    $region32: #{generator_forward.1} parent=1 // pred_region
      _
    $region33: #{generator_forward.1} parent=1 // pred_fallthru
      _
    // Predicated region
    $region34: #{generator_forward.1} parent=1 // pred_check
      _
    $region35: #{generator_forward.1} parent=1 // pred_check_branch
      %93 = sbr.rel (0) target = $region37
    $region36: #{generator_forward.1} parent=1 // pred_region
      _
    $region37: #{generator_forward.1} parent=1 // pred_fallthru
      _
    // Predicated region
    $region38: #{generator_forward.1} parent=1 // pred_check
      _
    $region39: #{generator_forward.1} parent=1 // pred_check_branch
      %95 = sbr.rel (0) target = $region41
    $region40: #{generator_forward.1} parent=1 // pred_region
      _
    $region41: #{generator_forward.1} parent=1 // pred_fallthru
      _
    // Predicated region
    $region42: #{generator_forward.1} parent=1 // pred_check
      _
    $region43: #{generator_forward.1} parent=1 // pred_check_branch
      %97 = sbr.rel (0) target = $region45
    $region44: #{generator_forward.1} parent=1 // pred_region
      _
    $region45: #{generator_forward.1} parent=1 // pred_fallthru
      _
    // Predicated region
    $region46: #{generator_forward.1} parent=1 // pred_check
      _
    $region47: #{generator_forward.1} parent=1 // pred_check_branch
      %99 = sbr.rel (0) target = $region49
    $region48: #{generator_forward.1} parent=1 // pred_region
      _
    $region49: #{generator_forward.1} parent=1 // pred_fallthru
      _
    // Predicated region
    $region50: #{generator_forward.1} parent=1 // pred_check
      _
    $region51: #{generator_forward.1} parent=1 // pred_check_branch
      %101 = sbr.rel (0) target = $region53
    $region52: #{generator_forward.1} parent=1 // pred_region
      _
    $region53: #{generator_forward.1} parent=1 // pred_fallthru
      _
    // Predicated region
    $region54: #{generator_forward.1} parent=1 // pred_check
      _
    $region55: #{generator_forward.1} parent=1 // pred_check_branch
      %103 = sbr.rel (0) target = $region57
    $region56: #{generator_forward.1} parent=1 // pred_region
      _
    $region57: #{generator_forward.1} parent=1 // pred_fallthru
      _
    // Predicated region
    $region58: #{generator_forward.1} parent=1 // pred_check
      _
    $region59: #{generator_forward.1} parent=1 // pred_check_branch
      %105 = sbr.rel (0) target = $region61
    $region60: #{generator_forward.1} parent=1 // pred_region
      _
    $region61: #{generator_forward.1} parent=1 // pred_fallthru
      _
    // Predicated region
    $region62: #{generator_forward.1} parent=1 // pred_check
      _
    $region63: #{generator_forward.1} parent=1 // pred_check_branch
      %107 = sbr.rel (0) target = $region65
    $region64: #{generator_forward.1} parent=1 // pred_region
      _
    $region65: #{generator_forward.1} parent=1 // pred_fallthru
      _
    // Predicated region
    $region66: #{generator_forward.1} parent=1 // pred_check
      _
    $region67: #{generator_forward.1} parent=1 // pred_check_branch
      %109 = sbr.rel (0) target = $region69
    $region68: #{generator_forward.1} parent=1 // pred_region
      _
    $region69: #{generator_forward.1} parent=1 // pred_fallthru
      _
    // Predicated region
    $region70: #{generator_forward.1} parent=1 // pred_check
      _
    $region71: #{generator_forward.1} parent=1 // pred_check_branch
      %111 = sbr.rel (0) target = $region73
    $region72: #{generator_forward.1} parent=1 // pred_region
      _
    $region73: #{generator_forward.1} parent=1 // pred_fallthru
      _
    // Predicated region
    $region74: #{generator_forward.1} parent=1 // pred_check
      _
    $region75: #{generator_forward.1} parent=1 // pred_check_branch
      %113 = sbr.rel (0) target = $region77
    $region76: #{generator_forward.1} parent=1 // pred_region
      _
    $region77: #{generator_forward.1} parent=1 // pred_fallthru
      _
    // Predicated region
    $region78: #{generator_forward.1} parent=1 // pred_check
      _
    $region79: #{generator_forward.1} parent=1 // pred_check_branch
      %115 = sbr.rel (0) target = $region81
    $region80: #{generator_forward.1} parent=1 // pred_region
      _
    $region81: #{generator_forward.1} parent=1 // pred_fallthru
      _
    // Predicated region
    $region82: #{generator_forward.1} parent=1 // pred_check
      _
    $region83: #{generator_forward.1} parent=1 // pred_check_branch
      %117 = sbr.rel (0) target = $region85
    $region84: #{generator_forward.1} parent=1 // pred_region
      _
    $region85: #{generator_forward.1} parent=1 // pred_fallthru
      _
    // Predicated region
    $region86: #{generator_forward.1} parent=1 // pred_check
      _
    $region87: #{generator_forward.1} parent=1 // pred_check_branch
      %119 = sbr.rel (0) target = $region89
    $region88: #{generator_forward.1} parent=1 // pred_region
      _
    $region89: #{generator_forward.1} parent=1 // pred_fallthru
      _
    // Predicated region
    $region90: #{generator_forward.1} parent=1 // pred_check
      _
    $region91: #{generator_forward.1} parent=1 // pred_check_branch
      %121 = sbr.rel (0) target = $region93
    $region92: #{generator_forward.1} parent=1 // pred_region
      _
    $region93: #{generator_forward.1} parent=1 // pred_fallthru
      _
    // Predicated region
    $region94: #{generator_forward.1} parent=1 // pred_check
      _
    $region95: #{generator_forward.1} parent=1 // pred_check_branch
      %123 = sbr.rel (0) target = $region97
    $region96: #{generator_forward.1} parent=1 // pred_region
      _
    $region97: #{generator_forward.1} parent=1 // pred_fallthru
      _
    // Predicated region
    $region98: #{generator_forward.1} parent=1 // pred_check
      _
    $region99: #{generator_forward.1} parent=1 // pred_check_branch
      %125 = sbr.rel (0) target = $region101
    $region100: #{generator_forward.1} parent=1 // pred_region
      _
    $region101: #{generator_forward.1} parent=1 // pred_fallthru
      _
    // Predicated region
    $region102: #{generator_forward.1} parent=1 // pred_check
      _
    $region103: #{generator_forward.1} parent=1 // pred_check_branch
      %127 = sbr.rel (0) target = $region105
    $region104: #{generator_forward.1} parent=1 // pred_region
      _
    $region105: #{generator_forward.1} parent=1 // pred_fallthru
      _
    // Predicated region
    $region106: #{generator_forward.1} parent=1 // pred_check
      _
    $region107: #{generator_forward.1} parent=1 // pred_check_branch
      %129 = sbr.rel (0) target = $region109
    $region108: #{generator_forward.1} parent=1 // pred_region
      _
    $region109: #{generator_forward.1} parent=1 // pred_fallthru
      _
    // Predicated region
    $region110: #{generator_forward.1} parent=1 // pred_check
      _
    $region111: #{generator_forward.1} parent=1 // pred_check_branch
      %131 = sbr.rel (0) target = $region113
    $region112: #{generator_forward.1} parent=1 // pred_region
      _
    $region113: #{generator_forward.1} parent=1 // pred_fallthru
      _
    // Predicated region
    $region114: #{generator_forward.1} parent=1 // pred_check
      _
    $region115: #{generator_forward.1} parent=1 // pred_check_branch
      %133 = sbr.rel (0) target = $region117
    $region116: #{generator_forward.1} parent=1 // pred_region
      _
    $region117: #{generator_forward.1} parent=1 // pred_fallthru
      _
    // Predicated region
    $region118: #{generator_forward.1} parent=1 // pred_check
      _
    $region119: #{generator_forward.1} parent=1 // pred_check_branch
      %135 = sbr.rel (0) target = $region121
    $region120: #{generator_forward.1} parent=1 // pred_region
      _
    $region121: #{generator_forward.1} parent=1 // pred_fallthru
      _
    // Predicated region
    $region122: #{generator_forward.1} parent=1 // pred_check
      _
    $region123: #{generator_forward.1} parent=1 // pred_check_branch
      %137 = sbr.rel (0) target = $region125
    $region124: #{generator_forward.1} parent=1 // pred_region
      %s139 = ssub.s32 24576, 24576
      %140 = vsyncadd [#allocation3], %s139
      %s141 = sshll.u32 [#allocation2], 4
      %s142 = int_to_ptr.vmem [resolvable:$true] %s141
      %147 = dma.hbm_to_vmem [thread:$0]  %s61, 24576, %s142, [#allocation3], 768, 768, 48
    $region125: #{generator_forward.1} parent=1 // pred_fallthru
      _
    // Predicated region
    $region126: #{generator_forward.1} parent=1 // pred_check
      _
    $region127: #{generator_forward.1} parent=1 // pred_check_branch
      %149 = sbr.rel (0) target = $region129
    $region128: #{generator_forward.1} parent=1 // pred_region
      %150 = dma.done [#allocation3], 24576
    $region129: #{generator_forward.1} parent=1 // pred_fallthru
      _
    %v151 = vld [vmem:[%s1] sm:$0xff]
    %v152 = vld [vmem:[%s1 + $0x8] sm:$0xf]
    %v153 = vld [vmem:[%s5] sm:$0xff]
    %v154 = vld [vmem:[%s5 + $0x8] sm:$0xff]
    %v155 = vld [vmem:[%s5 + $0x10] sm:$0xff]
    %v156 = vld [vmem:[%s5 + $0x18] sm:$0xff]
    %v157 = vld [vmem:[%s5 + $0x20] sm:$0xff]
    %v158 = vld [vmem:[%s5 + $0x28] sm:$0xff]
    %v159 = vld [vmem:[%s5 + $0x30] sm:$0xff]
    %v160 = vld [vmem:[%s5 + $0x38] sm:$0xff]
    %v161 = vld [vmem:[%s5 + $0x40] sm:$0xff]
    %v162 = vld [vmem:[%s5 + $0x48] sm:$0xff]
    %v163 = vld [vmem:[%s5 + $0x50] sm:$0xff]
    %v164 = vld [vmem:[%s5 + $0x58] sm:$0xff]
    %v165 = vld [vmem:[%s5 + $0x60] sm:$0xff]
    %v166 = vld [vmem:[%s5 + $0x68] sm:$0xff]
    %v167 = vld [vmem:[%s5 + $0x70] sm:$0xff]
    %v168 = vld [vmem:[%s5 + $0x78] sm:$0xff]
    %v169 = vld [vmem:[%s5 + $0x80] sm:$0xff]
    %v170 = vld [vmem:[%s5 + $0x88] sm:$0xff]
    %v171 = vld [vmem:[%s5 + $0x90] sm:$0xff]
    %v172 = vld [vmem:[%s5 + $0x98] sm:$0xff]
    %v173 = vld [vmem:[%s5 + $0xa0] sm:$0xff]
    %v174 = vld [vmem:[%s5 + $0xa8] sm:$0xff]
    %v175 = vld [vmem:[%s5 + $0xb0] sm:$0xff]
    %v176 = vld [vmem:[%s5 + $0xb8] sm:$0xff]
    %v177 = vld [vmem:[%s5 + $0xc0] sm:$0xff]
    %v178 = vld [vmem:[%s5 + $0xc8] sm:$0xff]
    %v179 = vld [vmem:[%s5 + $0xd0] sm:$0xff]
    %v180 = vld [vmem:[%s5 + $0xd8] sm:$0xff]
    %v181 = vld [vmem:[%s5 + $0xe0] sm:$0xff]
    %v182 = vld [vmem:[%s5 + $0xe8] sm:$0xff]
    %v183 = vld [vmem:[%s5 + $0xf0] sm:$0xff]
    %v184 = vld [vmem:[%s5 + $0xf8] sm:$0xff]
    %v185 = vld [vmem:[%s5 + $0x100] sm:$0xff]
    %v186 = vld [vmem:[%s5 + $0x108] sm:$0xff]
    %v187 = vld [vmem:[%s5 + $0x110] sm:$0xff]
    %v188 = vld [vmem:[%s5 + $0x118] sm:$0xff]
    %v189 = vld [vmem:[%s5 + $0x120] sm:$0xff]
    %v190 = vld [vmem:[%s5 + $0x128] sm:$0xff]
    %v191 = vld [vmem:[%s5 + $0x130] sm:$0xff]
    %v192 = vld [vmem:[%s5 + $0x138] sm:$0xff]
    %v193 = vld [vmem:[%s5 + $0x140] sm:$0xff]
    %v194 = vld [vmem:[%s5 + $0x148] sm:$0xff]
    %v195 = vld [vmem:[%s5 + $0x150] sm:$0xff]
    %v196 = vld [vmem:[%s5 + $0x158] sm:$0xff]
    %v197 = vld [vmem:[%s5 + $0x160] sm:$0xff]
    %v198 = vld [vmem:[%s5 + $0x168] sm:$0xff]
    %v199 = vld [vmem:[%s5 + $0x170] sm:$0xff]
    %v200 = vld [vmem:[%s5 + $0x178] sm:$0xff]
    %v201 = vld [vmem:[%s5 + $0x180] sm:$0xff]
    %v202 = vld [vmem:[%s5 + $0x188] sm:$0xff]
    %v203 = vld [vmem:[%s5 + $0x190] sm:$0xff]
    %v204 = vld [vmem:[%s5 + $0x198] sm:$0xff]
    %v205 = vld [vmem:[%s5 + $0x1a0] sm:$0xff]
    %v206 = vld [vmem:[%s5 + $0x1a8] sm:$0xff]
    %v207 = vld [vmem:[%s5 + $0x1b0] sm:$0xff]
    %v208 = vld [vmem:[%s5 + $0x1b8] sm:$0xff]
    %v209 = vld [vmem:[%s5 + $0x1c0] sm:$0xff]
    %v210 = vld [vmem:[%s5 + $0x1c8] sm:$0xff]
    %v211 = vld [vmem:[%s5 + $0x1d0] sm:$0xff]
    %v212 = vld [vmem:[%s5 + $0x1d8] sm:$0xff]
    %v213 = vld [vmem:[%s5 + $0x1e0] sm:$0xff]
    %v214 = vld [vmem:[%s5 + $0x1e8] sm:$0xff]
    %v215 = vld [vmem:[%s5 + $0x1f0] sm:$0xff]
    %v216 = vld [vmem:[%s5 + $0x1f8] sm:$0xff]
    %v217 = vld [vmem:[%s5 + $0x200] sm:$0xff]
    %v218 = vld [vmem:[%s5 + $0x208] sm:$0xff]
    %v219 = vld [vmem:[%s5 + $0x210] sm:$0xff]
    %v220 = vld [vmem:[%s5 + $0x218] sm:$0xff]
    %v221 = vld [vmem:[%s5 + $0x220] sm:$0xff]
    %v222 = vld [vmem:[%s5 + $0x228] sm:$0xff]
    %v223 = vld [vmem:[%s5 + $0x230] sm:$0xff]
    %v224 = vld [vmem:[%s5 + $0x238] sm:$0xff]
    %v225 = vld [vmem:[%s5 + $0x240] sm:$0xff]
    %v226 = vld [vmem:[%s5 + $0x248] sm:$0xff]
    %v227 = vld [vmem:[%s5 + $0x250] sm:$0xff]
    %v228 = vld [vmem:[%s5 + $0x258] sm:$0xff]
    %v229 = vld [vmem:[%s5 + $0x260] sm:$0xff]
    %v230 = vld [vmem:[%s5 + $0x268] sm:$0xff]
    %v231 = vld [vmem:[%s5 + $0x270] sm:$0xff]
    %v232 = vld [vmem:[%s5 + $0x278] sm:$0xff]
    %v233 = vld [vmem:[%s5 + $0x280] sm:$0xff]
    %v234 = vld [vmem:[%s5 + $0x288] sm:$0xff]
    %v235 = vld [vmem:[%s5 + $0x290] sm:$0xff]
    %v236 = vld [vmem:[%s5 + $0x298] sm:$0xff]
    %v237 = vld [vmem:[%s5 + $0x2a0] sm:$0xff]
    %v238 = vld [vmem:[%s5 + $0x2a8] sm:$0xff]
    %v239 = vld [vmem:[%s5 + $0x2b0] sm:$0xff]
    %v240 = vld [vmem:[%s5 + $0x2b8] sm:$0xff]
    %v241 = vld [vmem:[%s5 + $0x2c0] sm:$0xff]
    %v242 = vld [vmem:[%s5 + $0x2c8] sm:$0xff]
    %v243 = vld [vmem:[%s5 + $0x2d0] sm:$0xff]
    %v244 = vld [vmem:[%s5 + $0x2d8] sm:$0xff]
    %v245 = vld [vmem:[%s5 + $0x2e0] sm:$0xff]
    %v246 = vld [vmem:[%s5 + $0x2e8] sm:$0xff]
    %v247 = vld [vmem:[%s5 + $0x2f0] sm:$0xff]
    %v248 = vld [vmem:[%s5 + $0x2f8] sm:$0xff]
    %v249 = vld [vmem:[%s5 + $0x300] sm:$0xff]
    %v250 = vld [vmem:[%s5 + $0x308] sm:$0xff]
    %v251 = vld [vmem:[%s5 + $0x310] sm:$0xff]
    %v252 = vld [vmem:[%s5 + $0x318] sm:$0xff]
    %v253 = vld [vmem:[%s5 + $0x320] sm:$0xff]
    %v254 = vld [vmem:[%s5 + $0x328] sm:$0xff]
    %v255 = vld [vmem:[%s5 + $0x330] sm:$0xff]
    %v256 = vld [vmem:[%s5 + $0x338] sm:$0xff]
    %v257 = vld [vmem:[%s5 + $0x340] sm:$0xff]
    %v258 = vld [vmem:[%s5 + $0x348] sm:$0xff]
    %v259 = vld [vmem:[%s5 + $0x350] sm:$0xff]
    %v260 = vld [vmem:[%s5 + $0x358] sm:$0xff]
    %v261 = vld [vmem:[%s5 + $0x360] sm:$0xff]
    %v262 = vld [vmem:[%s5 + $0x368] sm:$0xff]
    %v263 = vld [vmem:[%s5 + $0x370] sm:$0xff]
    %v264 = vld [vmem:[%s5 + $0x378] sm:$0xff]
    %v265 = vld [vmem:[%s5 + $0x380] sm:$0xff]
    %v266 = vld [vmem:[%s5 + $0x388] sm:$0xff]
    %v267 = vld [vmem:[%s5 + $0x390] sm:$0xff]
    %v268 = vld [vmem:[%s5 + $0x398] sm:$0xff]
    %v269 = vld [vmem:[%s5 + $0x3a0] sm:$0xff]
    %v270 = vld [vmem:[%s5 + $0x3a8] sm:$0xff]
    %v271 = vld [vmem:[%s5 + $0x3b0] sm:$0xff]
    %v272 = vld [vmem:[%s5 + $0x3b8] sm:$0xff]
    %v273 = vld [vmem:[%s5 + $0x3c0] sm:$0xff]
    %v274 = vld [vmem:[%s5 + $0x3c8] sm:$0xff]
    %v275 = vld [vmem:[%s5 + $0x3d0] sm:$0xff]
    %v276 = vld [vmem:[%s5 + $0x3d8] sm:$0xff]
    %v277 = vld [vmem:[%s5 + $0x3e0] sm:$0xff]
    %v278 = vld [vmem:[%s5 + $0x3e8] sm:$0xff]
    %v279 = vld [vmem:[%s5 + $0x3f0] sm:$0xff]
    %v280 = vld [vmem:[%s5 + $0x3f8] sm:$0xff]
    %v281 = vld [vmem:[%s5 + $0x400] sm:$0xff]
    %v282 = vld [vmem:[%s5 + $0x408] sm:$0xff]
    %v283 = vld [vmem:[%s5 + $0x410] sm:$0xff]
    %v284 = vld [vmem:[%s5 + $0x418] sm:$0xff]
    %v285 = vld [vmem:[%s5 + $0x420] sm:$0xff]
    %v286 = vld [vmem:[%s5 + $0x428] sm:$0xff]
    %v287 = vld [vmem:[%s5 + $0x430] sm:$0xff]
    %v288 = vld [vmem:[%s5 + $0x438] sm:$0xff]
    %v289 = vld [vmem:[%s5 + $0x440] sm:$0xff]
    %v290 = vld [vmem:[%s5 + $0x448] sm:$0xff]
    %v291 = vld [vmem:[%s5 + $0x450] sm:$0xff]
    %v292 = vld [vmem:[%s5 + $0x458] sm:$0xff]
    %v293 = vld [vmem:[%s5 + $0x460] sm:$0xff]
    %v294 = vld [vmem:[%s5 + $0x468] sm:$0xff]
    %v295 = vld [vmem:[%s5 + $0x470] sm:$0xff]
    %v296 = vld [vmem:[%s5 + $0x478] sm:$0xff]
    %v297 = vld [vmem:[%s5 + $0x480] sm:$0xff]
    %v298 = vld [vmem:[%s5 + $0x488] sm:$0xff]
    %v299 = vld [vmem:[%s5 + $0x490] sm:$0xff]
    %v300 = vld [vmem:[%s5 + $0x498] sm:$0xff]
    %v301 = vld [vmem:[%s5 + $0x4a0] sm:$0xff]
    %v302 = vld [vmem:[%s5 + $0x4a8] sm:$0xff]
    %v303 = vld [vmem:[%s5 + $0x4b0] sm:$0xff]
    %v304 = vld [vmem:[%s5 + $0x4b8] sm:$0xff]
    %v305 = vld [vmem:[%s5 + $0x4c0] sm:$0xff]
    %v306 = vld [vmem:[%s5 + $0x4c8] sm:$0xff]
    %v307 = vld [vmem:[%s5 + $0x4d0] sm:$0xff]
    %v308 = vld [vmem:[%s5 + $0x4d8] sm:$0xff]
    %v309 = vld [vmem:[%s5 + $0x4e0] sm:$0xff]
    %v310 = vld [vmem:[%s5 + $0x4e8] sm:$0xff]
    %v311 = vld [vmem:[%s5 + $0x4f0] sm:$0xff]
    %v312 = vld [vmem:[%s5 + $0x4f8] sm:$0xff]
    %v313 = vld [vmem:[%s5 + $0x500] sm:$0xff]
    %v314 = vld [vmem:[%s5 + $0x508] sm:$0xff]
    %v315 = vld [vmem:[%s5 + $0x510] sm:$0xff]
    %v316 = vld [vmem:[%s5 + $0x518] sm:$0xff]
    %v317 = vld [vmem:[%s5 + $0x520] sm:$0xff]
    %v318 = vld [vmem:[%s5 + $0x528] sm:$0xff]
    %v319 = vld [vmem:[%s5 + $0x530] sm:$0xff]
    %v320 = vld [vmem:[%s5 + $0x538] sm:$0xff]
    %v321 = vld [vmem:[%s5 + $0x540] sm:$0xff]
    %v322 = vld [vmem:[%s5 + $0x548] sm:$0xff]
    %v323 = vld [vmem:[%s5 + $0x550] sm:$0xff]
    %v324 = vld [vmem:[%s5 + $0x558] sm:$0xff]
    %v325 = vld [vmem:[%s5 + $0x560] sm:$0xff]
    %v326 = vld [vmem:[%s5 + $0x568] sm:$0xff]
    %v327 = vld [vmem:[%s5 + $0x570] sm:$0xff]
    %v328 = vld [vmem:[%s5 + $0x578] sm:$0xff]
    %v329 = vld [vmem:[%s5 + $0x580] sm:$0xff]
    %v330 = vld [vmem:[%s5 + $0x588] sm:$0xff]
    %v331 = vld [vmem:[%s5 + $0x590] sm:$0xff]
    %v332 = vld [vmem:[%s5 + $0x598] sm:$0xff]
    %v333 = vld [vmem:[%s5 + $0x5a0] sm:$0xff]
    %v334 = vld [vmem:[%s5 + $0x5a8] sm:$0xff]
    %v335 = vld [vmem:[%s5 + $0x5b0] sm:$0xff]
    %v336 = vld [vmem:[%s5 + $0x5b8] sm:$0xff]
    %v337 = vld [vmem:[%s5 + $0x5c0] sm:$0xff]
    %v338 = vld [vmem:[%s5 + $0x5c8] sm:$0xff]
    %v339 = vld [vmem:[%s5 + $0x5d0] sm:$0xff]
    %v340 = vld [vmem:[%s5 + $0x5d8] sm:$0xff]
    %v341 = vld [vmem:[%s5 + $0x5e0] sm:$0xff]
    %v342 = vld [vmem:[%s5 + $0x5e8] sm:$0xff]
    %v343 = vld [vmem:[%s5 + $0x5f0] sm:$0xff]
    %v344 = vld [vmem:[%s5 + $0x5f8] sm:$0xff]
    %v345 = vld [vmem:[%s5 + $0x600] sm:$0xff]
    %v346 = vld [vmem:[%s5 + $0x608] sm:$0xff]
    %v347 = vld [vmem:[%s5 + $0x610] sm:$0xff]
    %v348 = vld [vmem:[%s5 + $0x618] sm:$0xff]
    %v349 = vld [vmem:[%s5 + $0x620] sm:$0xff]
    %v350 = vld [vmem:[%s5 + $0x628] sm:$0xff]
    %v351 = vld [vmem:[%s5 + $0x630] sm:$0xff]
    %v352 = vld [vmem:[%s5 + $0x638] sm:$0xff]
    %v353 = vld [vmem:[%s5 + $0x640] sm:$0xff]
    %v354 = vld [vmem:[%s5 + $0x648] sm:$0xff]
    %v355 = vld [vmem:[%s5 + $0x650] sm:$0xff]
    %v356 = vld [vmem:[%s5 + $0x658] sm:$0xff]
    %v357 = vld [vmem:[%s5 + $0x660] sm:$0xff]
    %v358 = vld [vmem:[%s5 + $0x668] sm:$0xff]
    %v359 = vld [vmem:[%s5 + $0x670] sm:$0xff]
    %v360 = vld [vmem:[%s5 + $0x678] sm:$0xff]
    %v361 = vld [vmem:[%s5 + $0x680] sm:$0xff]
    %v362 = vld [vmem:[%s5 + $0x688] sm:$0xff]
    %v363 = vld [vmem:[%s5 + $0x690] sm:$0xff]
    %v364 = vld [vmem:[%s5 + $0x698] sm:$0xff]
    %v365 = vld [vmem:[%s5 + $0x6a0] sm:$0xff]
    %v366 = vld [vmem:[%s5 + $0x6a8] sm:$0xff]
    %v367 = vld [vmem:[%s5 + $0x6b0] sm:$0xff]
    %v368 = vld [vmem:[%s5 + $0x6b8] sm:$0xff]
    %v369 = vld [vmem:[%s5 + $0x6c0] sm:$0xff]
    %v370 = vld [vmem:[%s5 + $0x6c8] sm:$0xff]
    %v371 = vld [vmem:[%s5 + $0x6d0] sm:$0xff]
    %v372 = vld [vmem:[%s5 + $0x6d8] sm:$0xff]
    %v373 = vld [vmem:[%s5 + $0x6e0] sm:$0xff]
    %v374 = vld [vmem:[%s5 + $0x6e8] sm:$0xff]
    %v375 = vld [vmem:[%s5 + $0x6f0] sm:$0xff]
    %v376 = vld [vmem:[%s5 + $0x6f8] sm:$0xff]
    %v377 = vld [vmem:[%s5 + $0x700] sm:$0xff]
    %v378 = vld [vmem:[%s5 + $0x708] sm:$0xff]
    %v379 = vld [vmem:[%s5 + $0x710] sm:$0xff]
    %v380 = vld [vmem:[%s5 + $0x718] sm:$0xff]
    %v381 = vld [vmem:[%s5 + $0x720] sm:$0xff]
    %v382 = vld [vmem:[%s5 + $0x728] sm:$0xff]
    %v383 = vld [vmem:[%s5 + $0x730] sm:$0xff]
    %v384 = vld [vmem:[%s5 + $0x738] sm:$0xff]
    %v385 = vld [vmem:[%s5 + $0x740] sm:$0xff]
    %v386 = vld [vmem:[%s5 + $0x748] sm:$0xff]
    %v387 = vld [vmem:[%s5 + $0x750] sm:$0xff]
    %v388 = vld [vmem:[%s5 + $0x758] sm:$0xff]
    %v389 = vld [vmem:[%s5 + $0x760] sm:$0xff]
    %v390 = vld [vmem:[%s5 + $0x768] sm:$0xff]
    %v391 = vld [vmem:[%s5 + $0x770] sm:$0xff]
    %v392 = vld [vmem:[%s5 + $0x778] sm:$0xff]
    %v393 = vld [vmem:[%s5 + $0x780] sm:$0xff]
    %v394 = vld [vmem:[%s5 + $0x788] sm:$0xff]
    %v395 = vld [vmem:[%s5 + $0x790] sm:$0xff]
    %v396 = vld [vmem:[%s5 + $0x798] sm:$0xff]
    %v397 = vld [vmem:[%s5 + $0x7a0] sm:$0xff]
    %v398 = vld [vmem:[%s5 + $0x7a8] sm:$0xff]
    %v399 = vld [vmem:[%s5 + $0x7b0] sm:$0xff]
    %v400 = vld [vmem:[%s5 + $0x7b8] sm:$0xff]
    %v401 = vld [vmem:[%s5 + $0x7c0] sm:$0xff]
    %v402 = vld [vmem:[%s5 + $0x7c8] sm:$0xff]
    %v403 = vld [vmem:[%s5 + $0x7d0] sm:$0xff]
    %v404 = vld [vmem:[%s5 + $0x7d8] sm:$0xff]
    %v405 = vld [vmem:[%s5 + $0x7e0] sm:$0xff]
    %v406 = vld [vmem:[%s5 + $0x7e8] sm:$0xff]
    %v407 = vld [vmem:[%s5 + $0x7f0] sm:$0xff]
    %v408 = vld [vmem:[%s5 + $0x7f8] sm:$0xff]
    %v409 = vld [vmem:[%s5 + $0x800] sm:$0xff]
    %v410 = vld [vmem:[%s5 + $0x808] sm:$0xff]
    %v411 = vld [vmem:[%s5 + $0x810] sm:$0xff]
    %v412 = vld [vmem:[%s5 + $0x818] sm:$0xff]
    %v413 = vld [vmem:[%s5 + $0x820] sm:$0xff]
    %v414 = vld [vmem:[%s5 + $0x828] sm:$0xff]
    %v415 = vld [vmem:[%s5 + $0x830] sm:$0xff]
    %v416 = vld [vmem:[%s5 + $0x838] sm:$0xff]
    %v417 = vld [vmem:[%s5 + $0x840] sm:$0xff]
    %v418 = vld [vmem:[%s5 + $0x848] sm:$0xff]
    %v419 = vld [vmem:[%s5 + $0x850] sm:$0xff]
    %v420 = vld [vmem:[%s5 + $0x858] sm:$0xff]
    %v421 = vld [vmem:[%s5 + $0x860] sm:$0xff]
    %v422 = vld [vmem:[%s5 + $0x868] sm:$0xff]
    %v423 = vld [vmem:[%s5 + $0x870] sm:$0xff]
    %v424 = vld [vmem:[%s5 + $0x878] sm:$0xff]
    %v425 = vld [vmem:[%s5 + $0x880] sm:$0xff]
    %v426 = vld [vmem:[%s5 + $0x888] sm:$0xff]
    %v427 = vld [vmem:[%s5 + $0x890] sm:$0xff]
    %v428 = vld [vmem:[%s5 + $0x898] sm:$0xff]
    %v429 = vld [vmem:[%s5 + $0x8a0] sm:$0xff]
    %v430 = vld [vmem:[%s5 + $0x8a8] sm:$0xff]
    %v431 = vld [vmem:[%s5 + $0x8b0] sm:$0xff]
    %v432 = vld [vmem:[%s5 + $0x8b8] sm:$0xff]
    %v433 = vld [vmem:[%s5 + $0x8c0] sm:$0xff]
    %v434 = vld [vmem:[%s5 + $0x8c8] sm:$0xff]
    %v435 = vld [vmem:[%s5 + $0x8d0] sm:$0xff]
    %v436 = vld [vmem:[%s5 + $0x8d8] sm:$0xff]
    %v437 = vld [vmem:[%s5 + $0x8e0] sm:$0xff]
    %v438 = vld [vmem:[%s5 + $0x8e8] sm:$0xff]
    %v439 = vld [vmem:[%s5 + $0x8f0] sm:$0xff]
    %v440 = vld [vmem:[%s5 + $0x8f8] sm:$0xff]
    %v441 = vld [vmem:[%s5 + $0x900] sm:$0xff]
    %v442 = vld [vmem:[%s5 + $0x908] sm:$0xff]
    %v443 = vld [vmem:[%s5 + $0x910] sm:$0xff]
    %v444 = vld [vmem:[%s5 + $0x918] sm:$0xff]
    %v445 = vld [vmem:[%s5 + $0x920] sm:$0xff]
    %v446 = vld [vmem:[%s5 + $0x928] sm:$0xff]
    %v447 = vld [vmem:[%s5 + $0x930] sm:$0xff]
    %v448 = vld [vmem:[%s5 + $0x938] sm:$0xff]
    %v449 = vld [vmem:[%s5 + $0x940] sm:$0xff]
    %v450 = vld [vmem:[%s5 + $0x948] sm:$0xff]
    %v451 = vld [vmem:[%s5 + $0x950] sm:$0xff]
    %v452 = vld [vmem:[%s5 + $0x958] sm:$0xff]
    %v453 = vld [vmem:[%s5 + $0x960] sm:$0xff]
    %v454 = vld [vmem:[%s5 + $0x968] sm:$0xff]
    %v455 = vld [vmem:[%s5 + $0x970] sm:$0xff]
    %v456 = vld [vmem:[%s5 + $0x978] sm:$0xff]
    %v457 = vld [vmem:[%s5 + $0x980] sm:$0xff]
    %v458 = vld [vmem:[%s5 + $0x988] sm:$0xff]
    %v459 = vld [vmem:[%s5 + $0x990] sm:$0xff]
    %v460 = vld [vmem:[%s5 + $0x998] sm:$0xff]
    %v461 = vld [vmem:[%s5 + $0x9a0] sm:$0xff]
    %v462 = vld [vmem:[%s5 + $0x9a8] sm:$0xff]
    %v463 = vld [vmem:[%s5 + $0x9b0] sm:$0xff]
    %v464 = vld [vmem:[%s5 + $0x9b8] sm:$0xff]
    %v465 = vld [vmem:[%s5 + $0x9c0] sm:$0xff]
    %v466 = vld [vmem:[%s5 + $0x9c8] sm:$0xff]
    %v467 = vld [vmem:[%s5 + $0x9d0] sm:$0xff]
    %v468 = vld [vmem:[%s5 + $0x9d8] sm:$0xff]
    %v469 = vld [vmem:[%s5 + $0x9e0] sm:$0xff]
    %v470 = vld [vmem:[%s5 + $0x9e8] sm:$0xff]
    %v471 = vld [vmem:[%s5 + $0x9f0] sm:$0xff]
    %v472 = vld [vmem:[%s5 + $0x9f8] sm:$0xff]
    %v473 = vld [vmem:[%s5 + $0xa00] sm:$0xff]
    %v474 = vld [vmem:[%s5 + $0xa08] sm:$0xff]
    %v475 = vld [vmem:[%s5 + $0xa10] sm:$0xff]
    %v476 = vld [vmem:[%s5 + $0xa18] sm:$0xff]
    %v477 = vld [vmem:[%s5 + $0xa20] sm:$0xff]
    %v478 = vld [vmem:[%s5 + $0xa28] sm:$0xff]
    %v479 = vld [vmem:[%s5 + $0xa30] sm:$0xff]
    %v480 = vld [vmem:[%s5 + $0xa38] sm:$0xff]
    %v481 = vld [vmem:[%s5 + $0xa40] sm:$0xff]
    %v482 = vld [vmem:[%s5 + $0xa48] sm:$0xff]
    %v483 = vld [vmem:[%s5 + $0xa50] sm:$0xff]
    %v484 = vld [vmem:[%s5 + $0xa58] sm:$0xff]
    %v485 = vld [vmem:[%s5 + $0xa60] sm:$0xff]
    %v486 = vld [vmem:[%s5 + $0xa68] sm:$0xff]
    %v487 = vld [vmem:[%s5 + $0xa70] sm:$0xff]
    %v488 = vld [vmem:[%s5 + $0xa78] sm:$0xff]
    %v489 = vld [vmem:[%s5 + $0xa80] sm:$0xff]
    %v490 = vld [vmem:[%s5 + $0xa88] sm:$0xff]
    %v491 = vld [vmem:[%s5 + $0xa90] sm:$0xff]
    %v492 = vld [vmem:[%s5 + $0xa98] sm:$0xff]
    %v493 = vld [vmem:[%s5 + $0xaa0] sm:$0xff]
    %v494 = vld [vmem:[%s5 + $0xaa8] sm:$0xff]
    %v495 = vld [vmem:[%s5 + $0xab0] sm:$0xff]
    %v496 = vld [vmem:[%s5 + $0xab8] sm:$0xff]
    %v497 = vld [vmem:[%s5 + $0xac0] sm:$0xff]
    %v498 = vld [vmem:[%s5 + $0xac8] sm:$0xff]
    %v499 = vld [vmem:[%s5 + $0xad0] sm:$0xff]
    %v500 = vld [vmem:[%s5 + $0xad8] sm:$0xff]
    %v501 = vld [vmem:[%s5 + $0xae0] sm:$0xff]
    %v502 = vld [vmem:[%s5 + $0xae8] sm:$0xff]
    %v503 = vld [vmem:[%s5 + $0xaf0] sm:$0xff]
    %v504 = vld [vmem:[%s5 + $0xaf8] sm:$0xff]
    %v505 = vld [vmem:[%s5 + $0xb00] sm:$0xff]
    %v506 = vld [vmem:[%s5 + $0xb08] sm:$0xff]
    %v507 = vld [vmem:[%s5 + $0xb10] sm:$0xff]
    %v508 = vld [vmem:[%s5 + $0xb18] sm:$0xff]
    %v509 = vld [vmem:[%s5 + $0xb20] sm:$0xff]
    %v510 = vld [vmem:[%s5 + $0xb28] sm:$0xff]
    %v511 = vld [vmem:[%s5 + $0xb30] sm:$0xff]
    %v512 = vld [vmem:[%s5 + $0xb38] sm:$0xff]
    %v513 = vld [vmem:[%s5 + $0xb40] sm:$0xff]
    %v514 = vld [vmem:[%s5 + $0xb48] sm:$0xff]
    %v515 = vld [vmem:[%s5 + $0xb50] sm:$0xff]
    %v516 = vld [vmem:[%s5 + $0xb58] sm:$0xff]
    %v517 = vld [vmem:[%s5 + $0xb60] sm:$0xff]
    %v518 = vld [vmem:[%s5 + $0xb68] sm:$0xff]
    %v519 = vld [vmem:[%s5 + $0xb70] sm:$0xff]
    %v520 = vld [vmem:[%s5 + $0xb78] sm:$0xff]
    %v521 = vld [vmem:[%s5 + $0xb80] sm:$0xff]
    %v522 = vld [vmem:[%s5 + $0xb88] sm:$0xff]
    %v523 = vld [vmem:[%s5 + $0xb90] sm:$0xff]
    %v524 = vld [vmem:[%s5 + $0xb98] sm:$0xff]
    %v525 = vld [vmem:[%s5 + $0xba0] sm:$0xff]
    %v526 = vld [vmem:[%s5 + $0xba8] sm:$0xff]
    %v527 = vld [vmem:[%s5 + $0xbb0] sm:$0xff]
    %v528 = vld [vmem:[%s5 + $0xbb8] sm:$0xff]
    %v529 = vld [vmem:[%s5 + $0xbc0] sm:$0xff]
    %v530 = vld [vmem:[%s5 + $0xbc8] sm:$0xff]
    %v531 = vld [vmem:[%s5 + $0xbd0] sm:$0xff]
    %v532 = vld [vmem:[%s5 + $0xbd8] sm:$0xff]
    %v533 = vld [vmem:[%s5 + $0xbe0] sm:$0xff]
    %v534 = vld [vmem:[%s5 + $0xbe8] sm:$0xff]
    %v535 = vld [vmem:[%s5 + $0xbf0] sm:$0xff]
    %v536 = vld [vmem:[%s5 + $0xbf8] sm:$0xff]
    %v539 = vcombine.high %v151, %v151
    %v541 = vunpack.c.l.s4 1983009808
    %v542 = vunpack.c.0.s8 %v541
    %v543 = vlaneseq
    %v544 = vshrl.u32 %v543, 7
    %v545 = vsub.s32 %v542, %v544
    %v546 = vrot.slane %v151, %v545
    %v548 = vunpack.c.l.s4 1983009808
    %v549 = vunpack.c.0.s8 %v548
    %v550 = vlaneseq
    %v551 = vshrl.u32 %v550, 7
    %v552 = vsub.s32 %v549, %v551
    %v553 = vrot.slane %v539, %v552
    %v554 = vcombine.high %v546, %v546
    %v555 = vcombine.high %v553, %v553
    %v557 = vunpack.c.l.s4 1983009808
    %v558 = vunpack.c.0.s8 %v557
    %v559 = vlaneseq
    %v560 = vshrl.u32 %v559, 7
    %v561 = vsub.s32 %v558, %v560
    %v562 = vrot.slane %v152, %v561
    %v563 = vcombine.high %v562, %v562
    %570 = vmatprep.subr.mxu0 %v154
    %571 = vmatpush1.msra.mxu0 %v153
    %572 = vmatprep.subr.mxu0 %v158
    %573 = vmatpush1.msra.mxu0 %v157
    %574 = vmatprep.subr.mxu0 %v162
    %575 = vmatpush1.msra.mxu0 %v161
    %576 = vmatprep.subr.mxu0 %v166
    %577 = vmatpush1.msra.mxu0 %v165
    %578 = vmatprep.subr.mxu0 %v170
    %579 = vmatpush1.msra.mxu0 %v169
    %580 = vmatprep.subr.mxu0 %v174
    %581 = vmatpush1.msra.mxu0 %v173
    %582 = vmatprep.subr.mxu0 %v178
    %583 = vmatpush1.msra.mxu0 %v177
    %584 = vmatprep.subr.mxu0 %v182
    %585 = vmatpush1.msra.mxu0 %v181
    %586 = vmatprep.subr.mxu0 %v186
    %587 = vmatpush1.msra.mxu0 %v185
    %588 = vmatprep.subr.mxu0 %v190
    %589 = vmatpush1.msra.mxu0 %v189
    %590 = vmatprep.subr.mxu0 %v194
    %591 = vmatpush1.msra.mxu0 %v193
    %592 = vmatprep.subr.mxu0 %v198
    %593 = vmatpush1.msra.mxu0 %v197
    %594 = vmatprep.subr.mxu0 %v202
    %595 = vmatpush1.msra.mxu0 %v201
    %596 = vmatprep.subr.mxu0 %v206
    %597 = vmatpush1.msra.mxu0 %v205
    %598 = vmatprep.subr.mxu0 %v210
    %599 = vmatpush1.msra.mxu0 %v209
    %600 = vmatprep.subr.mxu0 %v214
    %601 = vmatpush1.msra.mxu0 %v213
    %602 = vmatprep.subr.mxu0 %v218
    %603 = vmatpush1.msra.mxu0 %v217
    %604 = vmatprep.subr.mxu0 %v222
    %605 = vmatpush1.msra.mxu0 %v221
    %606 = vmatprep.subr.mxu0 %v226
    %607 = vmatpush1.msra.mxu0 %v225
    %608 = vmatprep.subr.mxu0 %v230
    %609 = vmatpush1.msra.mxu0 %v229
    %610 = vmatprep.subr.mxu0 %v234
    %611 = vmatpush1.msra.mxu0 %v233
    %612 = vmatprep.subr.mxu0 %v238
    %613 = vmatpush1.msra.mxu0 %v237
    %614 = vmatprep.subr.mxu0 %v242
    %615 = vmatpush1.msra.mxu0 %v241
    %616 = vmatprep.subr.mxu0 %v246
    %617 = vmatpush1.msra.mxu0 %v245
    %618 = vmatprep.subr.mxu0 %v250
    %619 = vmatpush1.msra.mxu0 %v249
    %620 = vmatprep.subr.mxu0 %v254
    %621 = vmatpush1.msra.mxu0 %v253
    %622 = vmatprep.subr.mxu0 %v258
    %623 = vmatpush1.msra.mxu0 %v257
    %624 = vmatprep.subr.mxu0 %v262
    %625 = vmatpush1.msra.mxu0 %v261
    %626 = vmatprep.subr.mxu0 %v266
    %627 = vmatpush1.msra.mxu0 %v265
    %628 = vmatprep.subr.mxu0 %v270
    %629 = vmatpush1.msra.mxu0 %v269
    %630 = vmatprep.subr.mxu0 %v274
    %631 = vmatpush1.msra.mxu0 %v273
    %632 = vmatprep.subr.mxu0 %v278
    %633 = vmatpush1.msra.mxu0 %v277
    %634 = vmatprep.mubr.f32.mxu0 %v554
    %635 = vmatmul.mubr.f32.gmra.mrb[0].mxu0 %v546
    %v636 = vpop.f32.mrb[0].mxu0
    %v637 = vadd.f32 0.0, %v636
    %v638 = vpop.f32.mrb[0].mxu0
    %v639 = vadd.f32 0.0, %v638
    %640 = vdwg.mxu0
    %641 = vmatprep.subr.mxu0 %v282
    %642 = vmatpush1.msra.mxu0 %v281
    %643 = vmatprep.subr.mxu0 %v286
    %644 = vmatpush1.msra.mxu0 %v285
    %645 = vmatprep.subr.mxu0 %v290
    %646 = vmatpush1.msra.mxu0 %v289
    %647 = vmatprep.subr.mxu0 %v294
    %648 = vmatpush1.msra.mxu0 %v293
    %649 = vmatprep.subr.mxu0 %v298
    %650 = vmatpush1.msra.mxu0 %v297
    %651 = vmatprep.subr.mxu0 %v302
    %652 = vmatpush1.msra.mxu0 %v301
    %653 = vmatprep.subr.mxu0 %v306
    %654 = vmatpush1.msra.mxu0 %v305
    %655 = vmatprep.subr.mxu0 %v310
    %656 = vmatpush1.msra.mxu0 %v309
    %657 = vmatprep.subr.mxu0 %v314
    %658 = vmatpush1.msra.mxu0 %v313
    %659 = vmatprep.subr.mxu0 %v318
    %660 = vmatpush1.msra.mxu0 %v317
    %661 = vmatprep.subr.mxu0 %v322
    %662 = vmatpush1.msra.mxu0 %v321
    %663 = vmatprep.subr.mxu0 %v326
    %664 = vmatpush1.msra.mxu0 %v325
    %665 = vmatprep.subr.mxu0 %v330
    %666 = vmatpush1.msra.mxu0 %v329
    %667 = vmatprep.subr.mxu0 %v334
    %668 = vmatpush1.msra.mxu0 %v333
    %669 = vmatprep.subr.mxu0 %v338
    %670 = vmatpush1.msra.mxu0 %v337
    %671 = vmatprep.subr.mxu0 %v342
    %672 = vmatpush1.msra.mxu0 %v341
    %673 = vmatprep.subr.mxu0 %v346
    %674 = vmatpush1.msra.mxu0 %v345
    %675 = vmatprep.subr.mxu0 %v350
    %676 = vmatpush1.msra.mxu0 %v349
    %677 = vmatprep.subr.mxu0 %v354
    %678 = vmatpush1.msra.mxu0 %v353
    %679 = vmatprep.subr.mxu0 %v358
    %680 = vmatpush1.msra.mxu0 %v357
    %681 = vmatprep.subr.mxu0 %v362
    %682 = vmatpush1.msra.mxu0 %v361
    %683 = vmatprep.subr.mxu0 %v366
    %684 = vmatpush1.msra.mxu0 %v365
    %685 = vmatprep.subr.mxu0 %v370
    %686 = vmatpush1.msra.mxu0 %v369
    %687 = vmatprep.subr.mxu0 %v374
    %688 = vmatpush1.msra.mxu0 %v373
    %689 = vmatprep.subr.mxu0 %v378
    %690 = vmatpush1.msra.mxu0 %v377
    %691 = vmatprep.subr.mxu0 %v382
    %692 = vmatpush1.msra.mxu0 %v381
    %693 = vmatprep.subr.mxu0 %v386
    %694 = vmatpush1.msra.mxu0 %v385
    %695 = vmatprep.subr.mxu0 %v390
    %696 = vmatpush1.msra.mxu0 %v389
    %697 = vmatprep.subr.mxu0 %v394
    %698 = vmatpush1.msra.mxu0 %v393
    %699 = vmatprep.subr.mxu0 %v398
    %700 = vmatpush1.msra.mxu0 %v397
    %701 = vmatprep.subr.mxu0 %v402
    %702 = vmatpush1.msra.mxu0 %v401
    %703 = vmatprep.subr.mxu0 %v406
    %704 = vmatpush1.msra.mxu0 %v405
    %705 = vmatprep.mubr.f32.mxu0 %v555
    %706 = vmatmul.mubr.f32.gmra.mrb[0].mxu0 %v553
    %v707 = vpop.f32.mrb[0].mxu0
    %v708 = vadd.f32 %v637, %v707
    %v709 = vpop.f32.mrb[0].mxu0
    %v710 = vadd.f32 %v639, %v709
    %711 = vdwg.mxu0
    %712 = vmatprep.subr.mxu0 %v410
    %713 = vmatpush1.msra.mxu0 %v409
    %714 = vmatprep.subr.mxu0 %v414
    %715 = vmatpush1.msra.mxu0 %v413
    %716 = vmatprep.subr.mxu0 %v418
    %717 = vmatpush1.msra.mxu0 %v417
    %718 = vmatprep.subr.mxu0 %v422
    %719 = vmatpush1.msra.mxu0 %v421
    %720 = vmatprep.subr.mxu0 %v426
    %721 = vmatpush1.msra.mxu0 %v425
    %722 = vmatprep.subr.mxu0 %v430
    %723 = vmatpush1.msra.mxu0 %v429
    %724 = vmatprep.subr.mxu0 %v434
    %725 = vmatpush1.msra.mxu0 %v433
    %726 = vmatprep.subr.mxu0 %v438
    %727 = vmatpush1.msra.mxu0 %v437
    %728 = vmatprep.subr.mxu0 %v442
    %729 = vmatpush1.msra.mxu0 %v441
    %730 = vmatprep.subr.mxu0 %v446
    %731 = vmatpush1.msra.mxu0 %v445
    %732 = vmatprep.subr.mxu0 %v450
    %733 = vmatpush1.msra.mxu0 %v449
    %734 = vmatprep.subr.mxu0 %v454
    %735 = vmatpush1.msra.mxu0 %v453
    %736 = vmatprep.subr.mxu0 %v458
    %737 = vmatpush1.msra.mxu0 %v457
    %738 = vmatprep.subr.mxu0 %v462
    %739 = vmatpush1.msra.mxu0 %v461
    %740 = vmatprep.subr.mxu0 %v466
    %741 = vmatpush1.msra.mxu0 %v465
    %742 = vmatprep.subr.mxu0 %v470
    %743 = vmatpush1.msra.mxu0 %v469
    %744 = vmatprep.subr.mxu0 %v474
    %745 = vmatpush1.msra.mxu0 %v473
    %746 = vmatprep.subr.mxu0 %v478
    %747 = vmatpush1.msra.mxu0 %v477
    %748 = vmatprep.subr.mxu0 %v482
    %749 = vmatpush1.msra.mxu0 %v481
    %750 = vmatprep.subr.mxu0 %v486
    %751 = vmatpush1.msra.mxu0 %v485
    %752 = vmatprep.subr.mxu0 %v490
    %753 = vmatpush1.msra.mxu0 %v489
    %754 = vmatprep.subr.mxu0 %v494
    %755 = vmatpush1.msra.mxu0 %v493
    %756 = vmatprep.subr.mxu0 %v498
    %757 = vmatpush1.msra.mxu0 %v497
    %758 = vmatprep.subr.mxu0 %v502
    %759 = vmatpush1.msra.mxu0 %v501
    %760 = vmatprep.subr.mxu0 %v506
    %761 = vmatpush1.msra.mxu0 %v505
    %762 = vmatprep.subr.mxu0 %v510
    %763 = vmatpush1.msra.mxu0 %v509
    %764 = vmatprep.subr.mxu0 %v514
    %765 = vmatpush1.msra.mxu0 %v513
    %766 = vmatprep.subr.mxu0 %v518
    %767 = vmatpush1.msra.mxu0 %v517
    %768 = vmatprep.subr.mxu0 %v522
    %769 = vmatpush1.msra.mxu0 %v521
    %770 = vmatprep.subr.mxu0 %v526
    %771 = vmatpush1.msra.mxu0 %v525
    %772 = vmatprep.subr.mxu0 %v530
    %773 = vmatpush1.msra.mxu0 %v529
    %774 = vmatprep.subr.mxu0 %v534
    %775 = vmatpush1.msra.mxu0 %v533
    %776 = vmatprep.mubr.f32.mxu0 %v563
    %777 = vmatmul.mubr.f32.gmra.mrb[0].mxu0 %v562
    %v778 = vpop.f32.mrb[0].mxu0
    %v779 = vadd.f32 %v708, %v778
    %v780 = vpop.f32.mrb[0].mxu0
    %v781 = vadd.f32 %v710, %v780
    %782 = vdwg.mxu0
    %783 = vmatprep.subr.mxu0 %v156
    %784 = vmatpush1.msra.mxu0 %v155
    %785 = vmatprep.subr.mxu0 %v160
    %786 = vmatpush1.msra.mxu0 %v159
    %787 = vmatprep.subr.mxu0 %v164
    %788 = vmatpush1.msra.mxu0 %v163
    %789 = vmatprep.subr.mxu0 %v168
    %790 = vmatpush1.msra.mxu0 %v167
    %791 = vmatprep.subr.mxu0 %v172
    %792 = vmatpush1.msra.mxu0 %v171
    %793 = vmatprep.subr.mxu0 %v176
    %794 = vmatpush1.msra.mxu0 %v175
    %795 = vmatprep.subr.mxu0 %v180
    %796 = vmatpush1.msra.mxu0 %v179
    %797 = vmatprep.subr.mxu0 %v184
    %798 = vmatpush1.msra.mxu0 %v183
    %799 = vmatprep.subr.mxu0 %v188
    %800 = vmatpush1.msra.mxu0 %v187
    %801 = vmatprep.subr.mxu0 %v192
    %802 = vmatpush1.msra.mxu0 %v191
    %803 = vmatprep.subr.mxu0 %v196
    %804 = vmatpush1.msra.mxu0 %v195
    %805 = vmatprep.subr.mxu0 %v200
    %806 = vmatpush1.msra.mxu0 %v199
    %807 = vmatprep.subr.mxu0 %v204
    %808 = vmatpush1.msra.mxu0 %v203
    %809 = vmatprep.subr.mxu0 %v208
    %810 = vmatpush1.msra.mxu0 %v207
    %811 = vmatprep.subr.mxu0 %v212
    %812 = vmatpush1.msra.mxu0 %v211
    %813 = vmatprep.subr.mxu0 %v216
    %814 = vmatpush1.msra.mxu0 %v215
    %815 = vmatprep.subr.mxu0 %v220
    %816 = vmatpush1.msra.mxu0 %v219
    %817 = vmatprep.subr.mxu0 %v224
    %818 = vmatpush1.msra.mxu0 %v223
    %819 = vmatprep.subr.mxu0 %v228
    %820 = vmatpush1.msra.mxu0 %v227
    %821 = vmatprep.subr.mxu0 %v232
    %822 = vmatpush1.msra.mxu0 %v231
    %823 = vmatprep.subr.mxu0 %v236
    %824 = vmatpush1.msra.mxu0 %v235
    %825 = vmatprep.subr.mxu0 %v240
    %826 = vmatpush1.msra.mxu0 %v239
    %827 = vmatprep.subr.mxu0 %v244
    %828 = vmatpush1.msra.mxu0 %v243
    %829 = vmatprep.subr.mxu0 %v248
    %830 = vmatpush1.msra.mxu0 %v247
    %831 = vmatprep.subr.mxu0 %v252
    %832 = vmatpush1.msra.mxu0 %v251
    %833 = vmatprep.subr.mxu0 %v256
    %834 = vmatpush1.msra.mxu0 %v255
    %835 = vmatprep.subr.mxu0 %v260
    %836 = vmatpush1.msra.mxu0 %v259
    %837 = vmatprep.subr.mxu0 %v264
    %838 = vmatpush1.msra.mxu0 %v263
    %839 = vmatprep.subr.mxu0 %v268
    %840 = vmatpush1.msra.mxu0 %v267
    %841 = vmatprep.subr.mxu0 %v272
    %842 = vmatpush1.msra.mxu0 %v271
    %843 = vmatprep.subr.mxu0 %v276
    %844 = vmatpush1.msra.mxu0 %v275
    %845 = vmatprep.subr.mxu0 %v280
    %846 = vmatpush1.msra.mxu0 %v279
    %847 = vmatprep.mubr.f32.mxu0 %v554
    %848 = vmatmul.mubr.f32.gmra.mrb[0].mxu0 %v546
    %v849 = vpop.f32.mrb[0].mxu0
    %v850 = vadd.f32 0.0, %v849
    %v851 = vpop.f32.mrb[0].mxu0
    %v852 = vadd.f32 0.0, %v851
    %853 = vdwg.mxu0
    %854 = vmatprep.subr.mxu0 %v284
    %855 = vmatpush1.msra.mxu0 %v283
    %856 = vmatprep.subr.mxu0 %v288
    %857 = vmatpush1.msra.mxu0 %v287
    %858 = vmatprep.subr.mxu0 %v292
    %859 = vmatpush1.msra.mxu0 %v291
    %860 = vmatprep.subr.mxu0 %v296
    %861 = vmatpush1.msra.mxu0 %v295
    %862 = vmatprep.subr.mxu0 %v300
    %863 = vmatpush1.msra.mxu0 %v299
    %864 = vmatprep.subr.mxu0 %v304
    %865 = vmatpush1.msra.mxu0 %v303
    %866 = vmatprep.subr.mxu0 %v308
    %867 = vmatpush1.msra.mxu0 %v307
    %868 = vmatprep.subr.mxu0 %v312
    %869 = vmatpush1.msra.mxu0 %v311
    %870 = vmatprep.subr.mxu0 %v316
    %871 = vmatpush1.msra.mxu0 %v315
    %872 = vmatprep.subr.mxu0 %v320
    %873 = vmatpush1.msra.mxu0 %v319
    %874 = vmatprep.subr.mxu0 %v324
    %875 = vmatpush1.msra.mxu0 %v323
    %876 = vmatprep.subr.mxu0 %v328
    %877 = vmatpush1.msra.mxu0 %v327
    %878 = vmatprep.subr.mxu0 %v332
    %879 = vmatpush1.msra.mxu0 %v331
    %880 = vmatprep.subr.mxu0 %v336
    %881 = vmatpush1.msra.mxu0 %v335
    %882 = vmatprep.subr.mxu0 %v340
    %883 = vmatpush1.msra.mxu0 %v339
    %884 = vmatprep.subr.mxu0 %v344
    %885 = vmatpush1.msra.mxu0 %v343
    %886 = vmatprep.subr.mxu0 %v348
    %887 = vmatpush1.msra.mxu0 %v347
    %888 = vmatprep.subr.mxu0 %v352
    %889 = vmatpush1.msra.mxu0 %v351
    %890 = vmatprep.subr.mxu0 %v356
    %891 = vmatpush1.msra.mxu0 %v355
    %892 = vmatprep.subr.mxu0 %v360
    %893 = vmatpush1.msra.mxu0 %v359
    %894 = vmatprep.subr.mxu0 %v364
    %895 = vmatpush1.msra.mxu0 %v363
    %896 = vmatprep.subr.mxu0 %v368
    %897 = vmatpush1.msra.mxu0 %v367
    %898 = vmatprep.subr.mxu0 %v372
    %899 = vmatpush1.msra.mxu0 %v371
    %900 = vmatprep.subr.mxu0 %v376
    %901 = vmatpush1.msra.mxu0 %v375
    %902 = vmatprep.subr.mxu0 %v380
    %903 = vmatpush1.msra.mxu0 %v379
    %904 = vmatprep.subr.mxu0 %v384
    %905 = vmatpush1.msra.mxu0 %v383
    %906 = vmatprep.subr.mxu0 %v388
    %907 = vmatpush1.msra.mxu0 %v387
    %908 = vmatprep.subr.mxu0 %v392
    %909 = vmatpush1.msra.mxu0 %v391
    %910 = vmatprep.subr.mxu0 %v396
    %911 = vmatpush1.msra.mxu0 %v395
    %912 = vmatprep.subr.mxu0 %v400
    %913 = vmatpush1.msra.mxu0 %v399
    %914 = vmatprep.subr.mxu0 %v404
    %915 = vmatpush1.msra.mxu0 %v403
    %916 = vmatprep.subr.mxu0 %v408
    %917 = vmatpush1.msra.mxu0 %v407
    %918 = vmatprep.mubr.f32.mxu0 %v555
    %919 = vmatmul.mubr.f32.gmra.mrb[0].mxu0 %v553
    %v920 = vpop.f32.mrb[0].mxu0
    %v921 = vadd.f32 %v850, %v920
    %v922 = vpop.f32.mrb[0].mxu0
    %v923 = vadd.f32 %v852, %v922
    %924 = vdwg.mxu0
    %925 = vmatprep.subr.mxu0 %v412
    %926 = vmatpush1.msra.mxu0 %v411
    %927 = vmatprep.subr.mxu0 %v416
    %928 = vmatpush1.msra.mxu0 %v415
    %929 = vmatprep.subr.mxu0 %v420
    %930 = vmatpush1.msra.mxu0 %v419
    %931 = vmatprep.subr.mxu0 %v424
    %932 = vmatpush1.msra.mxu0 %v423
    %933 = vmatprep.subr.mxu0 %v428
    %934 = vmatpush1.msra.mxu0 %v427
    %935 = vmatprep.subr.mxu0 %v432
    %936 = vmatpush1.msra.mxu0 %v431
    %937 = vmatprep.subr.mxu0 %v436
    %938 = vmatpush1.msra.mxu0 %v435
    %939 = vmatprep.subr.mxu0 %v440
    %940 = vmatpush1.msra.mxu0 %v439
    %941 = vmatprep.subr.mxu0 %v444
    %942 = vmatpush1.msra.mxu0 %v443
    %943 = vmatprep.subr.mxu0 %v448
    %944 = vmatpush1.msra.mxu0 %v447
    %945 = vmatprep.subr.mxu0 %v452
    %946 = vmatpush1.msra.mxu0 %v451
    %947 = vmatprep.subr.mxu0 %v456
    %948 = vmatpush1.msra.mxu0 %v455
    %949 = vmatprep.subr.mxu0 %v460
    %950 = vmatpush1.msra.mxu0 %v459
    %951 = vmatprep.subr.mxu0 %v464
    %952 = vmatpush1.msra.mxu0 %v463
    %953 = vmatprep.subr.mxu0 %v468
    %954 = vmatpush1.msra.mxu0 %v467
    %955 = vmatprep.subr.mxu0 %v472
    %956 = vmatpush1.msra.mxu0 %v471
    %957 = vmatprep.subr.mxu0 %v476
    %958 = vmatpush1.msra.mxu0 %v475
    %959 = vmatprep.subr.mxu0 %v480
    %960 = vmatpush1.msra.mxu0 %v479
    %961 = vmatprep.subr.mxu0 %v484
    %962 = vmatpush1.msra.mxu0 %v483
    %963 = vmatprep.subr.mxu0 %v488
    %964 = vmatpush1.msra.mxu0 %v487
    %965 = vmatprep.subr.mxu0 %v492
    %966 = vmatpush1.msra.mxu0 %v491
    %967 = vmatprep.subr.mxu0 %v496
    %968 = vmatpush1.msra.mxu0 %v495
    %969 = vmatprep.subr.mxu0 %v500
    %970 = vmatpush1.msra.mxu0 %v499
    %971 = vmatprep.subr.mxu0 %v504
    %972 = vmatpush1.msra.mxu0 %v503
    %973 = vmatprep.subr.mxu0 %v508
    %974 = vmatpush1.msra.mxu0 %v507
    %975 = vmatprep.subr.mxu0 %v512
    %976 = vmatpush1.msra.mxu0 %v511
    %977 = vmatprep.subr.mxu0 %v516
    %978 = vmatpush1.msra.mxu0 %v515
    %979 = vmatprep.subr.mxu0 %v520
    %980 = vmatpush1.msra.mxu0 %v519
    %981 = vmatprep.subr.mxu0 %v524
    %982 = vmatpush1.msra.mxu0 %v523
    %983 = vmatprep.subr.mxu0 %v528
    %984 = vmatpush1.msra.mxu0 %v527
    %985 = vmatprep.subr.mxu0 %v532
    %986 = vmatpush1.msra.mxu0 %v531
    %987 = vmatprep.subr.mxu0 %v536
    %988 = vmatpush1.msra.mxu0 %v535
    %989 = vmatprep.mubr.f32.mxu0 %v563
    %990 = vmatmul.mubr.f32.gmra.mrb[0].mxu0 %v562
    %v991 = vpop.f32.mrb[0].mxu0
    %v992 = vadd.f32 %v921, %v991
    %v993 = vpop.f32.mrb[0].mxu0
    %v994 = vadd.f32 %v923, %v993
    %995 = vdwg.mxu0
    %v996 = vld [vmem:[%s7] sm:$0x1]
    %v997 = vld [vmem:[%s9] sm:$0x1]
    %v998 = vld [vmem:[%s11] sm:$0xff]
    %v999 = vld [vmem:[%s11 + $0x8] sm:$0xff]
    %v1000 = vld [vmem:[%s11 + $0x10] sm:$0xff]
    %v1001 = vld [vmem:[%s11 + $0x18] sm:$0xff]
    %v1002 = vld [vmem:[%s13] sm:$0xff]
    %v1003 = vld [vmem:[%s13 + $0x8] sm:$0xff]
    %v1004 = vld [vmem:[%s13 + $0x10] sm:$0xff]
    %v1005 = vld [vmem:[%s13 + $0x18] sm:$0xff]
    %v1006 = vld [vmem:[%s13 + $0x20] sm:$0xff]
    %v1007 = vld [vmem:[%s13 + $0x28] sm:$0xff]
    %v1008 = vld [vmem:[%s13 + $0x30] sm:$0xff]
    %v1009 = vld [vmem:[%s13 + $0x38] sm:$0xff]
    %v1010 = vld [vmem:[%s13 + $0x40] sm:$0xff]
    %v1011 = vld [vmem:[%s13 + $0x48] sm:$0xff]
    %v1012 = vld [vmem:[%s13 + $0x50] sm:$0xff]
    %v1013 = vld [vmem:[%s13 + $0x58] sm:$0xff]
    %v1014 = vld [vmem:[%s13 + $0x60] sm:$0xff]
    %v1015 = vld [vmem:[%s13 + $0x68] sm:$0xff]
    %v1016 = vld [vmem:[%s13 + $0x70] sm:$0xff]
    %v1017 = vld [vmem:[%s13 + $0x78] sm:$0xff]
    %v1018 = vld [vmem:[%s13 + $0x80] sm:$0xff]
    %v1019 = vld [vmem:[%s13 + $0x88] sm:$0xff]
    %v1020 = vld [vmem:[%s13 + $0x90] sm:$0xff]
    %v1021 = vld [vmem:[%s13 + $0x98] sm:$0xff]
    %v1022 = vld [vmem:[%s13 + $0xa0] sm:$0xff]
    %v1023 = vld [vmem:[%s13 + $0xa8] sm:$0xff]
    %v1024 = vld [vmem:[%s13 + $0xb0] sm:$0xff]
    %v1025 = vld [vmem:[%s13 + $0xb8] sm:$0xff]
    %v1026 = vld [vmem:[%s13 + $0xc0] sm:$0xff]
    %v1027 = vld [vmem:[%s13 + $0xc8] sm:$0xff]
    %v1028 = vld [vmem:[%s13 + $0xd0] sm:$0xff]
    %v1029 = vld [vmem:[%s13 + $0xd8] sm:$0xff]
    %v1030 = vld [vmem:[%s13 + $0xe0] sm:$0xff]
    %v1031 = vld [vmem:[%s13 + $0xe8] sm:$0xff]
    %v1032 = vld [vmem:[%s13 + $0xf0] sm:$0xff]
    %v1033 = vld [vmem:[%s13 + $0xf8] sm:$0xff]
    %v1034 = vld [vmem:[%s13 + $0x100] sm:$0xff]
    %v1035 = vld [vmem:[%s13 + $0x108] sm:$0xff]
    %v1036 = vld [vmem:[%s13 + $0x110] sm:$0xff]
    %v1037 = vld [vmem:[%s13 + $0x118] sm:$0xff]
    %v1038 = vld [vmem:[%s13 + $0x120] sm:$0xff]
    %v1039 = vld [vmem:[%s13 + $0x128] sm:$0xff]
    %v1040 = vld [vmem:[%s13 + $0x130] sm:$0xff]
    %v1041 = vld [vmem:[%s13 + $0x138] sm:$0xff]
    %v1042 = vld [vmem:[%s13 + $0x140] sm:$0xff]
    %v1043 = vld [vmem:[%s13 + $0x148] sm:$0xff]
    %v1044 = vld [vmem:[%s13 + $0x150] sm:$0xff]
    %v1045 = vld [vmem:[%s13 + $0x158] sm:$0xff]
    %v1046 = vld [vmem:[%s13 + $0x160] sm:$0xff]
    %v1047 = vld [vmem:[%s13 + $0x168] sm:$0xff]
    %v1048 = vld [vmem:[%s13 + $0x170] sm:$0xff]
    %v1049 = vld [vmem:[%s13 + $0x178] sm:$0xff]
    %v1050 = vld [vmem:[%s13 + $0x180] sm:$0xff]
    %v1051 = vld [vmem:[%s13 + $0x188] sm:$0xff]
    %v1052 = vld [vmem:[%s13 + $0x190] sm:$0xff]
    %v1053 = vld [vmem:[%s13 + $0x198] sm:$0xff]
    %v1054 = vld [vmem:[%s13 + $0x1a0] sm:$0xff]
    %v1055 = vld [vmem:[%s13 + $0x1a8] sm:$0xff]
    %v1056 = vld [vmem:[%s13 + $0x1b0] sm:$0xff]
    %v1057 = vld [vmem:[%s13 + $0x1b8] sm:$0xff]
    %v1058 = vld [vmem:[%s13 + $0x1c0] sm:$0xff]
    %v1059 = vld [vmem:[%s13 + $0x1c8] sm:$0xff]
    %v1060 = vld [vmem:[%s13 + $0x1d0] sm:$0xff]
    %v1061 = vld [vmem:[%s13 + $0x1d8] sm:$0xff]
    %v1062 = vld [vmem:[%s13 + $0x1e0] sm:$0xff]
    %v1063 = vld [vmem:[%s13 + $0x1e8] sm:$0xff]
    %v1064 = vld [vmem:[%s13 + $0x1f0] sm:$0xff]
    %v1065 = vld [vmem:[%s13 + $0x1f8] sm:$0xff]
    %1066 = vmatprep.subr.mxu0 0.0
    %1067 = vmatpush1.msra.mxu0 %v1002
    %1068 = vmatprep.subr.mxu0 0.0
    %1069 = vmatpush1.msra.mxu0 %v1003
    %1070 = vmatprep.subr.mxu0 0.0
    %1071 = vmatpush1.msra.mxu0 %v1004
    %1072 = vmatprep.subr.mxu0 0.0
    %1073 = vmatpush1.msra.mxu0 %v1005
    %1074 = vmatprep.subr.mxu0 0.0
    %1075 = vmatpush1.msra.mxu0 %v1006
    %1076 = vmatprep.subr.mxu0 0.0
    %1077 = vmatpush1.msra.mxu0 %v1007
    %1078 = vmatprep.subr.mxu0 0.0
    %1079 = vmatpush1.msra.mxu0 %v1008
    %1080 = vmatprep.subr.mxu0 0.0
    %1081 = vmatpush1.msra.mxu0 %v1009
    %1082 = vmatprep.subr.mxu0 0.0
    %1083 = vmatpush1.msra.mxu0 %v1010
    %1084 = vmatprep.subr.mxu0 0.0
    %1085 = vmatpush1.msra.mxu0 %v1011
    %1086 = vmatprep.subr.mxu0 0.0
    %1087 = vmatpush1.msra.mxu0 %v1012
    %1088 = vmatprep.subr.mxu0 0.0
    %1089 = vmatpush1.msra.mxu0 %v1013
    %1090 = vmatprep.subr.mxu0 0.0
    %1091 = vmatpush1.msra.mxu0 %v1014
    %1092 = vmatprep.subr.mxu0 0.0
    %1093 = vmatpush1.msra.mxu0 %v1015
    %1094 = vmatprep.subr.mxu0 0.0
    %1095 = vmatpush1.msra.mxu0 %v1016
    %1096 = vmatprep.subr.mxu0 0.0
    %1097 = vmatpush1.msra.mxu0 %v1017
    %1098 = vmatprep.subr.mxu0 0.0
    %1099 = vmatpush1.msra.mxu0 %v1018
    %1100 = vmatprep.subr.mxu0 0.0
    %1101 = vmatpush1.msra.mxu0 %v1019
    %1102 = vmatprep.subr.mxu0 0.0
    %1103 = vmatpush1.msra.mxu0 %v1020
    %1104 = vmatprep.subr.mxu0 0.0
    %1105 = vmatpush1.msra.mxu0 %v1021
    %1106 = vmatprep.subr.mxu0 0.0
    %1107 = vmatpush1.msra.mxu0 %v1022
    %1108 = vmatprep.subr.mxu0 0.0
    %1109 = vmatpush1.msra.mxu0 %v1023
    %1110 = vmatprep.subr.mxu0 0.0
    %1111 = vmatpush1.msra.mxu0 %v1024
    %1112 = vmatprep.subr.mxu0 0.0
    %1113 = vmatpush1.msra.mxu0 %v1025
    %1114 = vmatprep.subr.mxu0 0.0
    %1115 = vmatpush1.msra.mxu0 %v1026
    %1116 = vmatprep.subr.mxu0 0.0
    %1117 = vmatpush1.msra.mxu0 %v1027
    %1118 = vmatprep.subr.mxu0 0.0
    %1119 = vmatpush1.msra.mxu0 %v1028
    %1120 = vmatprep.subr.mxu0 0.0
    %1121 = vmatpush1.msra.mxu0 %v1029
    %1122 = vmatprep.subr.mxu0 0.0
    %1123 = vmatpush1.msra.mxu0 %v1030
    %1124 = vmatprep.subr.mxu0 0.0
    %1125 = vmatpush1.msra.mxu0 %v1031
    %1126 = vmatprep.subr.mxu0 0.0
    %1127 = vmatpush1.msra.mxu0 %v1032
    %1128 = vmatprep.subr.mxu0 0.0
    %1129 = vmatpush1.msra.mxu0 %v1033
    %1130 = vmatprep.mubr.f32.mxu0 %v781
    %1131 = vmatmul.mubr.f32.gmra.mrb[0].mxu0 %v779
    %v1132 = vpop.f32.mrb[0].mxu0
    %v1133 = vadd.f32 0.0, %v1132
    %v1134 = vpop.f32.mrb[0].mxu0
    %1135 = vdwg.mxu0
    %1136 = vmatprep.subr.mxu0 0.0
    %1137 = vmatpush1.msra.mxu0 %v1034
    %1138 = vmatprep.subr.mxu0 0.0
    %1139 = vmatpush1.msra.mxu0 %v1035
    %1140 = vmatprep.subr.mxu0 0.0
    %1141 = vmatpush1.msra.mxu0 %v1036
    %1142 = vmatprep.subr.mxu0 0.0
    %1143 = vmatpush1.msra.mxu0 %v1037
    %1144 = vmatprep.subr.mxu0 0.0
    %1145 = vmatpush1.msra.mxu0 %v1038
    %1146 = vmatprep.subr.mxu0 0.0
    %1147 = vmatpush1.msra.mxu0 %v1039
    %1148 = vmatprep.subr.mxu0 0.0
    %1149 = vmatpush1.msra.mxu0 %v1040
    %1150 = vmatprep.subr.mxu0 0.0
    %1151 = vmatpush1.msra.mxu0 %v1041
    %1152 = vmatprep.subr.mxu0 0.0
    %1153 = vmatpush1.msra.mxu0 %v1042
    %1154 = vmatprep.subr.mxu0 0.0
    %1155 = vmatpush1.msra.mxu0 %v1043
    %1156 = vmatprep.subr.mxu0 0.0
    %1157 = vmatpush1.msra.mxu0 %v1044
    %1158 = vmatprep.subr.mxu0 0.0
    %1159 = vmatpush1.msra.mxu0 %v1045
    %1160 = vmatprep.subr.mxu0 0.0
    %1161 = vmatpush1.msra.mxu0 %v1046
    %1162 = vmatprep.subr.mxu0 0.0
    %1163 = vmatpush1.msra.mxu0 %v1047
    %1164 = vmatprep.subr.mxu0 0.0
    %1165 = vmatpush1.msra.mxu0 %v1048
    %1166 = vmatprep.subr.mxu0 0.0
    %1167 = vmatpush1.msra.mxu0 %v1049
    %1168 = vmatprep.subr.mxu0 0.0
    %1169 = vmatpush1.msra.mxu0 %v1050
    %1170 = vmatprep.subr.mxu0 0.0
    %1171 = vmatpush1.msra.mxu0 %v1051
    %1172 = vmatprep.subr.mxu0 0.0
    %1173 = vmatpush1.msra.mxu0 %v1052
    %1174 = vmatprep.subr.mxu0 0.0
    %1175 = vmatpush1.msra.mxu0 %v1053
    %1176 = vmatprep.subr.mxu0 0.0
    %1177 = vmatpush1.msra.mxu0 %v1054
    %1178 = vmatprep.subr.mxu0 0.0
    %1179 = vmatpush1.msra.mxu0 %v1055
    %1180 = vmatprep.subr.mxu0 0.0
    %1181 = vmatpush1.msra.mxu0 %v1056
    %1182 = vmatprep.subr.mxu0 0.0
    %1183 = vmatpush1.msra.mxu0 %v1057
    %1184 = vmatprep.subr.mxu0 0.0
    %1185 = vmatpush1.msra.mxu0 %v1058
    %1186 = vmatprep.subr.mxu0 0.0
    %1187 = vmatpush1.msra.mxu0 %v1059
    %1188 = vmatprep.subr.mxu0 0.0
    %1189 = vmatpush1.msra.mxu0 %v1060
    %1190 = vmatprep.subr.mxu0 0.0
    %1191 = vmatpush1.msra.mxu0 %v1061
    %1192 = vmatprep.subr.mxu0 0.0
    %1193 = vmatpush1.msra.mxu0 %v1062
    %1194 = vmatprep.subr.mxu0 0.0
    %1195 = vmatpush1.msra.mxu0 %v1063
    %1196 = vmatprep.subr.mxu0 0.0
    %1197 = vmatpush1.msra.mxu0 %v1064
    %1198 = vmatprep.subr.mxu0 0.0
    %1199 = vmatpush1.msra.mxu0 %v1065
    %1200 = vmatprep.mubr.f32.mxu0 %v994
    %1201 = vmatmul.mubr.f32.gmra.mrb[0].mxu0 %v992
    %v1202 = vpop.f32.mrb[0].mxu0
    %v1203 = vadd.f32 %v1133, %v1202
    %v1204 = vpop.f32.mrb[0].mxu0
    %1205 = vdwg.mxu0
    %v1206 = vmul.f32 %v779, %v779
    %v1207 = vmul.f32 %v781, %v781
    %v1208 = vmul.f32 %v992, %v992
    %v1209 = vmul.f32 %v994, %v994
    %1210 = vmatprep.subr.mxu0 0.0
    %1211 = vmatpush1.msra.mxu0 %v1002
    %1212 = vmatprep.subr.mxu0 0.0
    %1213 = vmatpush1.msra.mxu0 %v1003
    %1214 = vmatprep.subr.mxu0 0.0
    %1215 = vmatpush1.msra.mxu0 %v1004
    %1216 = vmatprep.subr.mxu0 0.0
    %1217 = vmatpush1.msra.mxu0 %v1005
    %1218 = vmatprep.subr.mxu0 0.0
    %1219 = vmatpush1.msra.mxu0 %v1006
    %1220 = vmatprep.subr.mxu0 0.0
    %1221 = vmatpush1.msra.mxu0 %v1007
    %1222 = vmatprep.subr.mxu0 0.0
    %1223 = vmatpush1.msra.mxu0 %v1008
    %1224 = vmatprep.subr.mxu0 0.0
    %1225 = vmatpush1.msra.mxu0 %v1009
    %1226 = vmatprep.subr.mxu0 0.0
    %1227 = vmatpush1.msra.mxu0 %v1010
    %1228 = vmatprep.subr.mxu0 0.0
    %1229 = vmatpush1.msra.mxu0 %v1011
    %1230 = vmatprep.subr.mxu0 0.0
    %1231 = vmatpush1.msra.mxu0 %v1012
    %1232 = vmatprep.subr.mxu0 0.0
    %1233 = vmatpush1.msra.mxu0 %v1013
    %1234 = vmatprep.subr.mxu0 0.0
    %1235 = vmatpush1.msra.mxu0 %v1014
    %1236 = vmatprep.subr.mxu0 0.0
    %1237 = vmatpush1.msra.mxu0 %v1015
    %1238 = vmatprep.subr.mxu0 0.0
    %1239 = vmatpush1.msra.mxu0 %v1016
    %1240 = vmatprep.subr.mxu0 0.0
    %1241 = vmatpush1.msra.mxu0 %v1017
    %1242 = vmatprep.subr.mxu0 0.0
    %1243 = vmatpush1.msra.mxu0 %v1018
    %1244 = vmatprep.subr.mxu0 0.0
    %1245 = vmatpush1.msra.mxu0 %v1019
    %1246 = vmatprep.subr.mxu0 0.0
    %1247 = vmatpush1.msra.mxu0 %v1020
    %1248 = vmatprep.subr.mxu0 0.0
    %1249 = vmatpush1.msra.mxu0 %v1021
    %1250 = vmatprep.subr.mxu0 0.0
    %1251 = vmatpush1.msra.mxu0 %v1022
    %1252 = vmatprep.subr.mxu0 0.0
    %1253 = vmatpush1.msra.mxu0 %v1023
    %1254 = vmatprep.subr.mxu0 0.0
    %1255 = vmatpush1.msra.mxu0 %v1024
    %1256 = vmatprep.subr.mxu0 0.0
    %1257 = vmatpush1.msra.mxu0 %v1025
    %1258 = vmatprep.subr.mxu0 0.0
    %1259 = vmatpush1.msra.mxu0 %v1026
    %1260 = vmatprep.subr.mxu0 0.0
    %1261 = vmatpush1.msra.mxu0 %v1027
    %1262 = vmatprep.subr.mxu0 0.0
    %1263 = vmatpush1.msra.mxu0 %v1028
    %1264 = vmatprep.subr.mxu0 0.0
    %1265 = vmatpush1.msra.mxu0 %v1029
    %1266 = vmatprep.subr.mxu0 0.0
    %1267 = vmatpush1.msra.mxu0 %v1030
    %1268 = vmatprep.subr.mxu0 0.0
    %1269 = vmatpush1.msra.mxu0 %v1031
    %1270 = vmatprep.subr.mxu0 0.0
    %1271 = vmatpush1.msra.mxu0 %v1032
    %1272 = vmatprep.subr.mxu0 0.0
    %1273 = vmatpush1.msra.mxu0 %v1033
    %1274 = vmatprep.mubr.f32.mxu0 %v1207
    %1275 = vmatmul.mubr.f32.gmra.mrb[0].mxu0 %v1206
    %v1276 = vpop.f32.mrb[0].mxu0
    %v1277 = vadd.f32 0.0, %v1276
    %v1278 = vpop.f32.mrb[0].mxu0
    %1279 = vdwg.mxu0
    %1280 = vmatprep.subr.mxu0 0.0
    %1281 = vmatpush1.msra.mxu0 %v1034
    %1282 = vmatprep.subr.mxu0 0.0
    %1283 = vmatpush1.msra.mxu0 %v1035
    %1284 = vmatprep.subr.mxu0 0.0
    %1285 = vmatpush1.msra.mxu0 %v1036
    %1286 = vmatprep.subr.mxu0 0.0
    %1287 = vmatpush1.msra.mxu0 %v1037
    %1288 = vmatprep.subr.mxu0 0.0
    %1289 = vmatpush1.msra.mxu0 %v1038
    %1290 = vmatprep.subr.mxu0 0.0
    %1291 = vmatpush1.msra.mxu0 %v1039
    %1292 = vmatprep.subr.mxu0 0.0
    %1293 = vmatpush1.msra.mxu0 %v1040
    %1294 = vmatprep.subr.mxu0 0.0
    %1295 = vmatpush1.msra.mxu0 %v1041
    %1296 = vmatprep.subr.mxu0 0.0
    %1297 = vmatpush1.msra.mxu0 %v1042
    %1298 = vmatprep.subr.mxu0 0.0
    %1299 = vmatpush1.msra.mxu0 %v1043
    %1300 = vmatprep.subr.mxu0 0.0
    %1301 = vmatpush1.msra.mxu0 %v1044
    %1302 = vmatprep.subr.mxu0 0.0
    %1303 = vmatpush1.msra.mxu0 %v1045
    %1304 = vmatprep.subr.mxu0 0.0
    %1305 = vmatpush1.msra.mxu0 %v1046
    %1306 = vmatprep.subr.mxu0 0.0
    %1307 = vmatpush1.msra.mxu0 %v1047
    %1308 = vmatprep.subr.mxu0 0.0
    %1309 = vmatpush1.msra.mxu0 %v1048
    %1310 = vmatprep.subr.mxu0 0.0
    %1311 = vmatpush1.msra.mxu0 %v1049
    %1312 = vmatprep.subr.mxu0 0.0
    %1313 = vmatpush1.msra.mxu0 %v1050
    %1314 = vmatprep.subr.mxu0 0.0
    %1315 = vmatpush1.msra.mxu0 %v1051
    %1316 = vmatprep.subr.mxu0 0.0
    %1317 = vmatpush1.msra.mxu0 %v1052
    %1318 = vmatprep.subr.mxu0 0.0
    %1319 = vmatpush1.msra.mxu0 %v1053
    %1320 = vmatprep.subr.mxu0 0.0
    %1321 = vmatpush1.msra.mxu0 %v1054
    %1322 = vmatprep.subr.mxu0 0.0
    %1323 = vmatpush1.msra.mxu0 %v1055
    %1324 = vmatprep.subr.mxu0 0.0
    %1325 = vmatpush1.msra.mxu0 %v1056
    %1326 = vmatprep.subr.mxu0 0.0
    %1327 = vmatpush1.msra.mxu0 %v1057
    %1328 = vmatprep.subr.mxu0 0.0
    %1329 = vmatpush1.msra.mxu0 %v1058
    %1330 = vmatprep.subr.mxu0 0.0
    %1331 = vmatpush1.msra.mxu0 %v1059
    %1332 = vmatprep.subr.mxu0 0.0
    %1333 = vmatpush1.msra.mxu0 %v1060
    %1334 = vmatprep.subr.mxu0 0.0
    %1335 = vmatpush1.msra.mxu0 %v1061
    %1336 = vmatprep.subr.mxu0 0.0
    %1337 = vmatpush1.msra.mxu0 %v1062
    %1338 = vmatprep.subr.mxu0 0.0
    %1339 = vmatpush1.msra.mxu0 %v1063
    %1340 = vmatprep.subr.mxu0 0.0
    %1341 = vmatpush1.msra.mxu0 %v1064
    %1342 = vmatprep.subr.mxu0 0.0
    %1343 = vmatpush1.msra.mxu0 %v1065
    %1344 = vmatprep.mubr.f32.mxu0 %v1209
    %1345 = vmatmul.mubr.f32.gmra.mrb[0].mxu0 %v1208
    %v1346 = vpop.f32.mrb[0].mxu0
    %v1347 = vadd.f32 %v1277, %v1346
    %v1348 = vpop.f32.mrb[0].mxu0
    %1349 = vdwg.mxu0
    %vm1350 = vcmask 58368
    %v1351 = vsel %vm1350, %v1203, 0.0
    %v1352 = vrot.slane %v1351, 4
    %v1353 = vadd.f32 %v1351, %v1352
    %v1354 = vrot.slane %v1353, 2
    %v1355 = vadd.f32 %v1353, %v1354
    %v1356 = vrot.slane %v1355, 1
    %v1357 = vadd.f32 %v1355, %v1356
    %v1358 = vrcp.pop 128.0
    %v1359 = vmul.f32 %v1357, %v1358
    %v1360 = vsel %vm1350, %v1347, 0.0
    %v1361 = vrot.slane %v1360, 4
    %v1362 = vadd.f32 %v1360, %v1361
    %v1363 = vrot.slane %v1362, 2
    %v1364 = vadd.f32 %v1362, %v1363
    %v1365 = vrot.slane %v1364, 1
    %v1366 = vadd.f32 %v1364, %v1365
    %v1367 = vmul.f32 %v1366, %v1358
    %v1368 = vmul.f32 %v1359, %v1359
    %v1369 = vsub.f32 %v1367, %v1368
    %v1370 = vmax.f32 %v1369, 0.0
    %v1371 = vadd.f32 %v1370, 1e-05
    %v1372 = vrsqrt.pop %v1371
    %v1373 = vmul.f32 %v996, %v1372
    %v1374 = vmul.f32 %v1359, %v1373
    %v1375 = vsub.f32 %v997, %v1374
    %vm1376 = vcmask 64512
    %v1378 = vsel %vm1376, %v1373, 0
    %1380 = vmatprep.subr.mxu0 %v999
    %1381 = vmatpush1.msra.mxu0 %v998
    %1382 = vmatprep.subr.mxu0 0.0
    %1383 = vmatpush1.msra.mxu0 0.0
    %1384 = vmatprep.subr.mxu0 0.0
    %1385 = vmatpush1.msra.mxu0 0.0
    %1386 = vmatprep.subr.mxu0 0.0
    %1387 = vmatpush1.msra.mxu0 0.0
    %1388 = vmatprep.subr.mxu0 0.0
    %1389 = vmatpush1.msra.mxu0 0.0
    %1390 = vmatprep.subr.mxu0 0.0
    %1391 = vmatpush1.msra.mxu0 0.0
    %1392 = vmatprep.subr.mxu0 0.0
    %1393 = vmatpush1.msra.mxu0 0.0
    %1394 = vmatprep.subr.mxu0 0.0
    %1395 = vmatpush1.msra.mxu0 0.0
    %1396 = vmatprep.subr.mxu0 0.0
    %1397 = vmatpush1.msra.mxu0 0.0
    %1398 = vmatprep.subr.mxu0 0.0
    %1399 = vmatpush1.msra.mxu0 0.0
    %1400 = vmatprep.subr.mxu0 0.0
    %1401 = vmatpush1.msra.mxu0 0.0
    %1402 = vmatprep.subr.mxu0 0.0
    %1403 = vmatpush1.msra.mxu0 0.0
    %1404 = vmatprep.subr.mxu0 0.0
    %1405 = vmatpush1.msra.mxu0 0.0
    %1406 = vmatprep.subr.mxu0 0.0
    %1407 = vmatpush1.msra.mxu0 0.0
    %1408 = vmatprep.subr.mxu0 0.0
    %1409 = vmatpush1.msra.mxu0 0.0
    %1410 = vmatprep.subr.mxu0 0.0
    %1411 = vmatpush1.msra.mxu0 0.0
    %1412 = vmatprep.subr.mxu0 0.0
    %1413 = vmatpush1.msra.mxu0 0.0
    %1414 = vmatprep.subr.mxu0 0.0
    %1415 = vmatpush1.msra.mxu0 0.0
    %1416 = vmatprep.subr.mxu0 0.0
    %1417 = vmatpush1.msra.mxu0 0.0
    %1418 = vmatprep.subr.mxu0 0.0
    %1419 = vmatpush1.msra.mxu0 0.0
    %1420 = vmatprep.subr.mxu0 0.0
    %1421 = vmatpush1.msra.mxu0 0.0
    %1422 = vmatprep.subr.mxu0 0.0
    %1423 = vmatpush1.msra.mxu0 0.0
    %1424 = vmatprep.subr.mxu0 0.0
    %1425 = vmatpush1.msra.mxu0 0.0
    %1426 = vmatprep.subr.mxu0 0.0
    %1427 = vmatpush1.msra.mxu0 0.0
    %1428 = vmatprep.subr.mxu0 0.0
    %1429 = vmatpush1.msra.mxu0 0.0
    %1430 = vmatprep.subr.mxu0 0.0
    %1431 = vmatpush1.msra.mxu0 0.0
    %1432 = vmatprep.subr.mxu0 0.0
    %1433 = vmatpush1.msra.mxu0 0.0
    %1434 = vmatprep.subr.mxu0 0.0
    %1435 = vmatpush1.msra.mxu0 0.0
    %1436 = vmatprep.subr.mxu0 0.0
    %1437 = vmatpush1.msra.mxu0 0.0
    %1438 = vmatprep.subr.mxu0 0.0
    %1439 = vmatpush1.msra.mxu0 0.0
    %1440 = vmatprep.subr.mxu0 0.0
    %1441 = vmatpush1.msra.mxu0 0.0
    %1442 = vmatprep.subr.mxu0 0.0
    %1443 = vmatpush1.msra.mxu0 0.0
    %1444 = vmatprep.mubr.f32.mxu0 0.0
    %1445 = vmatmul.mubr.f32.gmra.mrb[0].mxu0 %v1378
    %v1446 = vpop.f32.mrb[0].mxu0
    %v1447 = vadd.f32 0.0, %v1446
    %v1448 = vpop.f32.mrb[0].mxu0
    %v1449 = vadd.f32 0.0, %v1448
    %1450 = vdwg.mxu0
    %1451 = vmatprep.subr.mxu0 %v1001
    %1452 = vmatpush1.msra.mxu0 %v1000
    %1453 = vmatprep.subr.mxu0 0.0
    %1454 = vmatpush1.msra.mxu0 0.0
    %1455 = vmatprep.subr.mxu0 0.0
    %1456 = vmatpush1.msra.mxu0 0.0
    %1457 = vmatprep.subr.mxu0 0.0
    %1458 = vmatpush1.msra.mxu0 0.0
    %1459 = vmatprep.subr.mxu0 0.0
    %1460 = vmatpush1.msra.mxu0 0.0
    %1461 = vmatprep.subr.mxu0 0.0
    %1462 = vmatpush1.msra.mxu0 0.0
    %1463 = vmatprep.subr.mxu0 0.0
    %1464 = vmatpush1.msra.mxu0 0.0
    %1465 = vmatprep.subr.mxu0 0.0
    %1466 = vmatpush1.msra.mxu0 0.0
    %1467 = vmatprep.subr.mxu0 0.0
    %1468 = vmatpush1.msra.mxu0 0.0
    %1469 = vmatprep.subr.mxu0 0.0
    %1470 = vmatpush1.msra.mxu0 0.0
    %1471 = vmatprep.subr.mxu0 0.0
    %1472 = vmatpush1.msra.mxu0 0.0
    %1473 = vmatprep.subr.mxu0 0.0
    %1474 = vmatpush1.msra.mxu0 0.0
    %1475 = vmatprep.subr.mxu0 0.0
    %1476 = vmatpush1.msra.mxu0 0.0
    %1477 = vmatprep.subr.mxu0 0.0
    %1478 = vmatpush1.msra.mxu0 0.0
    %1479 = vmatprep.subr.mxu0 0.0
    %1480 = vmatpush1.msra.mxu0 0.0
    %1481 = vmatprep.subr.mxu0 0.0
    %1482 = vmatpush1.msra.mxu0 0.0
    %1483 = vmatprep.subr.mxu0 0.0
    %1484 = vmatpush1.msra.mxu0 0.0
    %1485 = vmatprep.subr.mxu0 0.0
    %1486 = vmatpush1.msra.mxu0 0.0
    %1487 = vmatprep.subr.mxu0 0.0
    %1488 = vmatpush1.msra.mxu0 0.0
    %1489 = vmatprep.subr.mxu0 0.0
    %1490 = vmatpush1.msra.mxu0 0.0
    %1491 = vmatprep.subr.mxu0 0.0
    %1492 = vmatpush1.msra.mxu0 0.0
    %1493 = vmatprep.subr.mxu0 0.0
    %1494 = vmatpush1.msra.mxu0 0.0
    %1495 = vmatprep.subr.mxu0 0.0
    %1496 = vmatpush1.msra.mxu0 0.0
    %1497 = vmatprep.subr.mxu0 0.0
    %1498 = vmatpush1.msra.mxu0 0.0
    %1499 = vmatprep.subr.mxu0 0.0
    %1500 = vmatpush1.msra.mxu0 0.0
    %1501 = vmatprep.subr.mxu0 0.0
    %1502 = vmatpush1.msra.mxu0 0.0
    %1503 = vmatprep.subr.mxu0 0.0
    %1504 = vmatpush1.msra.mxu0 0.0
    %1505 = vmatprep.subr.mxu0 0.0
    %1506 = vmatpush1.msra.mxu0 0.0
    %1507 = vmatprep.subr.mxu0 0.0
    %1508 = vmatpush1.msra.mxu0 0.0
    %1509 = vmatprep.subr.mxu0 0.0
    %1510 = vmatpush1.msra.mxu0 0.0
    %1511 = vmatprep.subr.mxu0 0.0
    %1512 = vmatpush1.msra.mxu0 0.0
    %1513 = vmatprep.subr.mxu0 0.0
    %1514 = vmatpush1.msra.mxu0 0.0
    %1515 = vmatprep.mubr.f32.mxu0 0.0
    %1516 = vmatmul.mubr.f32.gmra.mrb[0].mxu0 %v1378
    %v1517 = vpop.f32.mrb[0].mxu0
    %v1518 = vadd.f32 0.0, %v1517
    %v1519 = vpop.f32.mrb[0].mxu0
    %v1520 = vadd.f32 0.0, %v1519
    %1521 = vdwg.mxu0
    %v1523 = vsel %vm1376, %v1375, 0
    %1525 = vmatprep.subr.mxu0 %v999
    %1526 = vmatpush1.msra.mxu0 %v998
    %1527 = vmatprep.subr.mxu0 0.0
    %1528 = vmatpush1.msra.mxu0 0.0
    %1529 = vmatprep.subr.mxu0 0.0
    %1530 = vmatpush1.msra.mxu0 0.0
    %1531 = vmatprep.subr.mxu0 0.0
    %1532 = vmatpush1.msra.mxu0 0.0
    %1533 = vmatprep.subr.mxu0 0.0
    %1534 = vmatpush1.msra.mxu0 0.0
    %1535 = vmatprep.subr.mxu0 0.0
    %1536 = vmatpush1.msra.mxu0 0.0
    %1537 = vmatprep.subr.mxu0 0.0
    %1538 = vmatpush1.msra.mxu0 0.0
    %1539 = vmatprep.subr.mxu0 0.0
    %1540 = vmatpush1.msra.mxu0 0.0
    %1541 = vmatprep.subr.mxu0 0.0
    %1542 = vmatpush1.msra.mxu0 0.0
    %1543 = vmatprep.subr.mxu0 0.0
    %1544 = vmatpush1.msra.mxu0 0.0
    %1545 = vmatprep.subr.mxu0 0.0
    %1546 = vmatpush1.msra.mxu0 0.0
    %1547 = vmatprep.subr.mxu0 0.0
    %1548 = vmatpush1.msra.mxu0 0.0
    %1549 = vmatprep.subr.mxu0 0.0
    %1550 = vmatpush1.msra.mxu0 0.0
    %1551 = vmatprep.subr.mxu0 0.0
    %1552 = vmatpush1.msra.mxu0 0.0
    %1553 = vmatprep.subr.mxu0 0.0
    %1554 = vmatpush1.msra.mxu0 0.0
    %1555 = vmatprep.subr.mxu0 0.0
    %1556 = vmatpush1.msra.mxu0 0.0
    %1557 = vmatprep.subr.mxu0 0.0
    %1558 = vmatpush1.msra.mxu0 0.0
    %1559 = vmatprep.subr.mxu0 0.0
    %1560 = vmatpush1.msra.mxu0 0.0
    %1561 = vmatprep.subr.mxu0 0.0
    %1562 = vmatpush1.msra.mxu0 0.0
    %1563 = vmatprep.subr.mxu0 0.0
    %1564 = vmatpush1.msra.mxu0 0.0
    %1565 = vmatprep.subr.mxu0 0.0
    %1566 = vmatpush1.msra.mxu0 0.0
    %1567 = vmatprep.subr.mxu0 0.0
    %1568 = vmatpush1.msra.mxu0 0.0
    %1569 = vmatprep.subr.mxu0 0.0
    %1570 = vmatpush1.msra.mxu0 0.0
    %1571 = vmatprep.subr.mxu0 0.0
    %1572 = vmatpush1.msra.mxu0 0.0
    %1573 = vmatprep.subr.mxu0 0.0
    %1574 = vmatpush1.msra.mxu0 0.0
    %1575 = vmatprep.subr.mxu0 0.0
    %1576 = vmatpush1.msra.mxu0 0.0
    %1577 = vmatprep.subr.mxu0 0.0
    %1578 = vmatpush1.msra.mxu0 0.0
    %1579 = vmatprep.subr.mxu0 0.0
    %1580 = vmatpush1.msra.mxu0 0.0
    %1581 = vmatprep.subr.mxu0 0.0
    %1582 = vmatpush1.msra.mxu0 0.0
    %1583 = vmatprep.subr.mxu0 0.0
    %1584 = vmatpush1.msra.mxu0 0.0
    %1585 = vmatprep.subr.mxu0 0.0
    %1586 = vmatpush1.msra.mxu0 0.0
    %1587 = vmatprep.subr.mxu0 0.0
    %1588 = vmatpush1.msra.mxu0 0.0
    %1589 = vmatprep.mubr.f32.mxu0 0.0
    %1590 = vmatmul.mubr.f32.gmra.mrb[0].mxu0 %v1523
    %v1591 = vpop.f32.mrb[0].mxu0
    %v1592 = vadd.f32 0.0, %v1591
    %v1593 = vpop.f32.mrb[0].mxu0
    %v1594 = vadd.f32 0.0, %v1593
    %1595 = vdwg.mxu0
    %1596 = vmatprep.subr.mxu0 %v1001
    %1597 = vmatpush1.msra.mxu0 %v1000
    %1598 = vmatprep.subr.mxu0 0.0
    %1599 = vmatpush1.msra.mxu0 0.0
    %1600 = vmatprep.subr.mxu0 0.0
    %1601 = vmatpush1.msra.mxu0 0.0
    %1602 = vmatprep.subr.mxu0 0.0
    %1603 = vmatpush1.msra.mxu0 0.0
    %1604 = vmatprep.subr.mxu0 0.0
    %1605 = vmatpush1.msra.mxu0 0.0
    %1606 = vmatprep.subr.mxu0 0.0
    %1607 = vmatpush1.msra.mxu0 0.0
    %1608 = vmatprep.subr.mxu0 0.0
    %1609 = vmatpush1.msra.mxu0 0.0
    %1610 = vmatprep.subr.mxu0 0.0
    %1611 = vmatpush1.msra.mxu0 0.0
    %1612 = vmatprep.subr.mxu0 0.0
    %1613 = vmatpush1.msra.mxu0 0.0
    %1614 = vmatprep.subr.mxu0 0.0
    %1615 = vmatpush1.msra.mxu0 0.0
    %1616 = vmatprep.subr.mxu0 0.0
    %1617 = vmatpush1.msra.mxu0 0.0
    %1618 = vmatprep.subr.mxu0 0.0
    %1619 = vmatpush1.msra.mxu0 0.0
    %1620 = vmatprep.subr.mxu0 0.0
    %1621 = vmatpush1.msra.mxu0 0.0
    %1622 = vmatprep.subr.mxu0 0.0
    %1623 = vmatpush1.msra.mxu0 0.0
    %1624 = vmatprep.subr.mxu0 0.0
    %1625 = vmatpush1.msra.mxu0 0.0
    %1626 = vmatprep.subr.mxu0 0.0
    %1627 = vmatpush1.msra.mxu0 0.0
    %1628 = vmatprep.subr.mxu0 0.0
    %1629 = vmatpush1.msra.mxu0 0.0
    %1630 = vmatprep.subr.mxu0 0.0
    %1631 = vmatpush1.msra.mxu0 0.0
    %1632 = vmatprep.subr.mxu0 0.0
    %1633 = vmatpush1.msra.mxu0 0.0
    %1634 = vmatprep.subr.mxu0 0.0
    %1635 = vmatpush1.msra.mxu0 0.0
    %1636 = vmatprep.subr.mxu0 0.0
    %1637 = vmatpush1.msra.mxu0 0.0
    %1638 = vmatprep.subr.mxu0 0.0
    %1639 = vmatpush1.msra.mxu0 0.0
    %1640 = vmatprep.subr.mxu0 0.0
    %1641 = vmatpush1.msra.mxu0 0.0
    %1642 = vmatprep.subr.mxu0 0.0
    %1643 = vmatpush1.msra.mxu0 0.0
    %1644 = vmatprep.subr.mxu0 0.0
    %1645 = vmatpush1.msra.mxu0 0.0
    %1646 = vmatprep.subr.mxu0 0.0
    %1647 = vmatpush1.msra.mxu0 0.0
    %1648 = vmatprep.subr.mxu0 0.0
    %1649 = vmatpush1.msra.mxu0 0.0
    %1650 = vmatprep.subr.mxu0 0.0
    %1651 = vmatpush1.msra.mxu0 0.0
    %1652 = vmatprep.subr.mxu0 0.0
    %1653 = vmatpush1.msra.mxu0 0.0
    %1654 = vmatprep.subr.mxu0 0.0
    %1655 = vmatpush1.msra.mxu0 0.0
    %1656 = vmatprep.subr.mxu0 0.0
    %1657 = vmatpush1.msra.mxu0 0.0
    %1658 = vmatprep.subr.mxu0 0.0
    %1659 = vmatpush1.msra.mxu0 0.0
    %1660 = vmatprep.mubr.f32.mxu0 0.0
    %1661 = vmatmul.mubr.f32.gmra.mrb[0].mxu0 %v1523
    %v1662 = vpop.f32.mrb[0].mxu0
    %v1663 = vadd.f32 0.0, %v1662
    %v1664 = vpop.f32.mrb[0].mxu0
    %v1665 = vadd.f32 0.0, %v1664
    %1666 = vdwg.mxu0
    %v1667 = vlaneseq
    %v1668 = vshrl.u32 %v1667, 7
    %v1669 = vsub.s32 0, %v1668
    %v1670 = vrot.slane %v1447, %v1669
    %v1671 = vlaneseq
    %v1672 = vshrl.u32 %v1671, 7
    %v1673 = vsub.s32 0, %v1672
    %v1674 = vrot.slane %v1449, %v1673
    %v1675 = vlaneseq
    %v1676 = vshrl.u32 %v1675, 7
    %v1677 = vsub.s32 0, %v1676
    %v1678 = vrot.slane %v1518, %v1677
    %v1679 = vlaneseq
    %v1680 = vshrl.u32 %v1679, 7
    %v1681 = vsub.s32 0, %v1680
    %v1682 = vrot.slane %v1520, %v1681
    %v1683 = vmul.f32 %v779, %v1670
    %v1684 = vmul.f32 %v781, %v1674
    %v1685 = vmul.f32 %v992, %v1678
    %v1686 = vmul.f32 %v994, %v1682
    %v1687 = vlaneseq
    %v1688 = vshrl.u32 %v1687, 7
    %v1689 = vsub.s32 0, %v1688
    %v1690 = vrot.slane %v1592, %v1689
    %v1691 = vlaneseq
    %v1692 = vshrl.u32 %v1691, 7
    %v1693 = vsub.s32 0, %v1692
    %v1694 = vrot.slane %v1594, %v1693
    %v1695 = vlaneseq
    %v1696 = vshrl.u32 %v1695, 7
    %v1697 = vsub.s32 0, %v1696
    %v1698 = vrot.slane %v1663, %v1697
    %v1699 = vlaneseq
    %v1700 = vshrl.u32 %v1699, 7
    %v1701 = vsub.s32 0, %v1700
    %v1702 = vrot.slane %v1665, %v1701
    %v1703 = vadd.f32 %v1683, %v1690
    %v1704 = vadd.f32 %v1684, %v1694
    %v1705 = vadd.f32 %v1685, %v1698
    %v1706 = vadd.f32 %v1686, %v1702
    %v1707 = vmax.f32 %v1703, 0.0
    %v1708 = vmax.f32 %v1704, 0.0
    %v1709 = vmax.f32 %v1705, 0.0
    %v1710 = vmax.f32 %v1706, 0.0
    %v1711 = vld [vmem:[%s15] sm:$0xff]
    %v1712 = vld [vmem:[%s15 + $0x8] sm:$0xff]
    %v1713 = vld [vmem:[%s15 + $0x10] sm:$0xff]
    %v1714 = vld [vmem:[%s15 + $0x18] sm:$0xff]
    %v1715 = vld [vmem:[%s15 + $0x20] sm:$0xff]
    %v1716 = vld [vmem:[%s15 + $0x28] sm:$0xff]
    %v1717 = vld [vmem:[%s15 + $0x30] sm:$0xff]
    %v1718 = vld [vmem:[%s15 + $0x38] sm:$0xff]
    %v1719 = vld [vmem:[%s15 + $0x40] sm:$0xff]
    %v1720 = vld [vmem:[%s15 + $0x48] sm:$0xff]
    %v1721 = vld [vmem:[%s15 + $0x50] sm:$0xff]
    %v1722 = vld [vmem:[%s15 + $0x58] sm:$0xff]
    %v1723 = vld [vmem:[%s15 + $0x60] sm:$0xff]
    %v1724 = vld [vmem:[%s15 + $0x68] sm:$0xff]
    %v1725 = vld [vmem:[%s15 + $0x70] sm:$0xff]
    %v1726 = vld [vmem:[%s15 + $0x78] sm:$0xff]
    %v1727 = vld [vmem:[%s15 + $0x80] sm:$0xff]
    %v1728 = vld [vmem:[%s15 + $0x88] sm:$0xff]
    %v1729 = vld [vmem:[%s15 + $0x90] sm:$0xff]
    %v1730 = vld [vmem:[%s15 + $0x98] sm:$0xff]
    %v1731 = vld [vmem:[%s15 + $0xa0] sm:$0xff]
    %v1732 = vld [vmem:[%s15 + $0xa8] sm:$0xff]
    %v1733 = vld [vmem:[%s15 + $0xb0] sm:$0xff]
    %v1734 = vld [vmem:[%s15 + $0xb8] sm:$0xff]
    %v1735 = vld [vmem:[%s15 + $0xc0] sm:$0xff]
    %v1736 = vld [vmem:[%s15 + $0xc8] sm:$0xff]
    %v1737 = vld [vmem:[%s15 + $0xd0] sm:$0xff]
    %v1738 = vld [vmem:[%s15 + $0xd8] sm:$0xff]
    %v1739 = vld [vmem:[%s15 + $0xe0] sm:$0xff]
    %v1740 = vld [vmem:[%s15 + $0xe8] sm:$0xff]
    %v1741 = vld [vmem:[%s15 + $0xf0] sm:$0xff]
    %v1742 = vld [vmem:[%s15 + $0xf8] sm:$0xff]
    %v1743 = vld [vmem:[%s15 + $0x100] sm:$0xff]
    %v1744 = vld [vmem:[%s15 + $0x108] sm:$0xff]
    %v1745 = vld [vmem:[%s15 + $0x110] sm:$0xff]
    %v1746 = vld [vmem:[%s15 + $0x118] sm:$0xff]
    %v1747 = vld [vmem:[%s15 + $0x120] sm:$0xff]
    %v1748 = vld [vmem:[%s15 + $0x128] sm:$0xff]
    %v1749 = vld [vmem:[%s15 + $0x130] sm:$0xff]
    %v1750 = vld [vmem:[%s15 + $0x138] sm:$0xff]
    %v1751 = vld [vmem:[%s15 + $0x140] sm:$0xff]
    %v1752 = vld [vmem:[%s15 + $0x148] sm:$0xff]
    %v1753 = vld [vmem:[%s15 + $0x150] sm:$0xff]
    %v1754 = vld [vmem:[%s15 + $0x158] sm:$0xff]
    %v1755 = vld [vmem:[%s15 + $0x160] sm:$0xff]
    %v1756 = vld [vmem:[%s15 + $0x168] sm:$0xff]
    %v1757 = vld [vmem:[%s15 + $0x170] sm:$0xff]
    %v1758 = vld [vmem:[%s15 + $0x178] sm:$0xff]
    %v1759 = vld [vmem:[%s15 + $0x180] sm:$0xff]
    %v1760 = vld [vmem:[%s15 + $0x188] sm:$0xff]
    %v1761 = vld [vmem:[%s15 + $0x190] sm:$0xff]
    %v1762 = vld [vmem:[%s15 + $0x198] sm:$0xff]
    %v1763 = vld [vmem:[%s15 + $0x1a0] sm:$0xff]
    %v1764 = vld [vmem:[%s15 + $0x1a8] sm:$0xff]
    %v1765 = vld [vmem:[%s15 + $0x1b0] sm:$0xff]
    %v1766 = vld [vmem:[%s15 + $0x1b8] sm:$0xff]
    %v1767 = vld [vmem:[%s15 + $0x1c0] sm:$0xff]
    %v1768 = vld [vmem:[%s15 + $0x1c8] sm:$0xff]
    %v1769 = vld [vmem:[%s15 + $0x1d0] sm:$0xff]
    %v1770 = vld [vmem:[%s15 + $0x1d8] sm:$0xff]
    %v1771 = vld [vmem:[%s15 + $0x1e0] sm:$0xff]
    %v1772 = vld [vmem:[%s15 + $0x1e8] sm:$0xff]
    %v1773 = vld [vmem:[%s15 + $0x1f0] sm:$0xff]
    %v1774 = vld [vmem:[%s15 + $0x1f8] sm:$0xff]
    %v1775 = vld [vmem:[%s15 + $0x200] sm:$0xff]
    %v1776 = vld [vmem:[%s15 + $0x208] sm:$0xff]
    %v1777 = vld [vmem:[%s15 + $0x210] sm:$0xff]
    %v1778 = vld [vmem:[%s15 + $0x218] sm:$0xff]
    %v1779 = vld [vmem:[%s15 + $0x220] sm:$0xff]
    %v1780 = vld [vmem:[%s15 + $0x228] sm:$0xff]
    %v1781 = vld [vmem:[%s15 + $0x230] sm:$0xff]
    %v1782 = vld [vmem:[%s15 + $0x238] sm:$0xff]
    %v1783 = vld [vmem:[%s15 + $0x240] sm:$0xff]
    %v1784 = vld [vmem:[%s15 + $0x248] sm:$0xff]
    %v1785 = vld [vmem:[%s15 + $0x250] sm:$0xff]
    %v1786 = vld [vmem:[%s15 + $0x258] sm:$0xff]
    %v1787 = vld [vmem:[%s15 + $0x260] sm:$0xff]
    %v1788 = vld [vmem:[%s15 + $0x268] sm:$0xff]
    %v1789 = vld [vmem:[%s15 + $0x270] sm:$0xff]
    %v1790 = vld [vmem:[%s15 + $0x278] sm:$0xff]
    %v1791 = vld [vmem:[%s15 + $0x280] sm:$0xff]
    %v1792 = vld [vmem:[%s15 + $0x288] sm:$0xff]
    %v1793 = vld [vmem:[%s15 + $0x290] sm:$0xff]
    %v1794 = vld [vmem:[%s15 + $0x298] sm:$0xff]
    %v1795 = vld [vmem:[%s15 + $0x2a0] sm:$0xff]
    %v1796 = vld [vmem:[%s15 + $0x2a8] sm:$0xff]
    %v1797 = vld [vmem:[%s15 + $0x2b0] sm:$0xff]
    %v1798 = vld [vmem:[%s15 + $0x2b8] sm:$0xff]
    %v1799 = vld [vmem:[%s15 + $0x2c0] sm:$0xff]
    %v1800 = vld [vmem:[%s15 + $0x2c8] sm:$0xff]
    %v1801 = vld [vmem:[%s15 + $0x2d0] sm:$0xff]
    %v1802 = vld [vmem:[%s15 + $0x2d8] sm:$0xff]
    %v1803 = vld [vmem:[%s15 + $0x2e0] sm:$0xff]
    %v1804 = vld [vmem:[%s15 + $0x2e8] sm:$0xff]
    %v1805 = vld [vmem:[%s15 + $0x2f0] sm:$0xff]
    %v1806 = vld [vmem:[%s15 + $0x2f8] sm:$0xff]
    %v1807 = vld [vmem:[%s15 + $0x300] sm:$0xff]
    %v1808 = vld [vmem:[%s15 + $0x308] sm:$0xff]
    %v1809 = vld [vmem:[%s15 + $0x310] sm:$0xff]
    %v1810 = vld [vmem:[%s15 + $0x318] sm:$0xff]
    %v1811 = vld [vmem:[%s15 + $0x320] sm:$0xff]
    %v1812 = vld [vmem:[%s15 + $0x328] sm:$0xff]
    %v1813 = vld [vmem:[%s15 + $0x330] sm:$0xff]
    %v1814 = vld [vmem:[%s15 + $0x338] sm:$0xff]
    %v1815 = vld [vmem:[%s15 + $0x340] sm:$0xff]
    %v1816 = vld [vmem:[%s15 + $0x348] sm:$0xff]
    %v1817 = vld [vmem:[%s15 + $0x350] sm:$0xff]
    %v1818 = vld [vmem:[%s15 + $0x358] sm:$0xff]
    %v1819 = vld [vmem:[%s15 + $0x360] sm:$0xff]
    %v1820 = vld [vmem:[%s15 + $0x368] sm:$0xff]
    %v1821 = vld [vmem:[%s15 + $0x370] sm:$0xff]
    %v1822 = vld [vmem:[%s15 + $0x378] sm:$0xff]
    %v1823 = vld [vmem:[%s15 + $0x380] sm:$0xff]
    %v1824 = vld [vmem:[%s15 + $0x388] sm:$0xff]
    %v1825 = vld [vmem:[%s15 + $0x390] sm:$0xff]
    %v1826 = vld [vmem:[%s15 + $0x398] sm:$0xff]
    %v1827 = vld [vmem:[%s15 + $0x3a0] sm:$0xff]
    %v1828 = vld [vmem:[%s15 + $0x3a8] sm:$0xff]
    %v1829 = vld [vmem:[%s15 + $0x3b0] sm:$0xff]
    %v1830 = vld [vmem:[%s15 + $0x3b8] sm:$0xff]
    %v1831 = vld [vmem:[%s15 + $0x3c0] sm:$0xff]
    %v1832 = vld [vmem:[%s15 + $0x3c8] sm:$0xff]
    %v1833 = vld [vmem:[%s15 + $0x3d0] sm:$0xff]
    %v1834 = vld [vmem:[%s15 + $0x3d8] sm:$0xff]
    %v1835 = vld [vmem:[%s15 + $0x3e0] sm:$0xff]
    %v1836 = vld [vmem:[%s15 + $0x3e8] sm:$0xff]
    %v1837 = vld [vmem:[%s15 + $0x3f0] sm:$0xff]
    %v1838 = vld [vmem:[%s15 + $0x3f8] sm:$0xff]
    %v1839 = vld [vmem:[%s15 + $0x400] sm:$0xff]
    %v1840 = vld [vmem:[%s15 + $0x408] sm:$0xff]
    %v1841 = vld [vmem:[%s15 + $0x410] sm:$0xff]
    %v1842 = vld [vmem:[%s15 + $0x418] sm:$0xff]
    %v1843 = vld [vmem:[%s15 + $0x420] sm:$0xff]
    %v1844 = vld [vmem:[%s15 + $0x428] sm:$0xff]
    %v1845 = vld [vmem:[%s15 + $0x430] sm:$0xff]
    %v1846 = vld [vmem:[%s15 + $0x438] sm:$0xff]
    %v1847 = vld [vmem:[%s15 + $0x440] sm:$0xff]
    %v1848 = vld [vmem:[%s15 + $0x448] sm:$0xff]
    %v1849 = vld [vmem:[%s15 + $0x450] sm:$0xff]
    %v1850 = vld [vmem:[%s15 + $0x458] sm:$0xff]
    %v1851 = vld [vmem:[%s15 + $0x460] sm:$0xff]
    %v1852 = vld [vmem:[%s15 + $0x468] sm:$0xff]
    %v1853 = vld [vmem:[%s15 + $0x470] sm:$0xff]
    %v1854 = vld [vmem:[%s15 + $0x478] sm:$0xff]
    %v1855 = vld [vmem:[%s15 + $0x480] sm:$0xff]
    %v1856 = vld [vmem:[%s15 + $0x488] sm:$0xff]
    %v1857 = vld [vmem:[%s15 + $0x490] sm:$0xff]
    %v1858 = vld [vmem:[%s15 + $0x498] sm:$0xff]
    %v1859 = vld [vmem:[%s15 + $0x4a0] sm:$0xff]
    %v1860 = vld [vmem:[%s15 + $0x4a8] sm:$0xff]
    %v1861 = vld [vmem:[%s15 + $0x4b0] sm:$0xff]
    %v1862 = vld [vmem:[%s15 + $0x4b8] sm:$0xff]
    %v1863 = vld [vmem:[%s15 + $0x4c0] sm:$0xff]
    %v1864 = vld [vmem:[%s15 + $0x4c8] sm:$0xff]
    %v1865 = vld [vmem:[%s15 + $0x4d0] sm:$0xff]
    %v1866 = vld [vmem:[%s15 + $0x4d8] sm:$0xff]
    %v1867 = vld [vmem:[%s15 + $0x4e0] sm:$0xff]
    %v1868 = vld [vmem:[%s15 + $0x4e8] sm:$0xff]
    %v1869 = vld [vmem:[%s15 + $0x4f0] sm:$0xff]
    %v1870 = vld [vmem:[%s15 + $0x4f8] sm:$0xff]
    %v1871 = vld [vmem:[%s15 + $0x500] sm:$0xff]
    %v1872 = vld [vmem:[%s15 + $0x508] sm:$0xff]
    %v1873 = vld [vmem:[%s15 + $0x510] sm:$0xff]
    %v1874 = vld [vmem:[%s15 + $0x518] sm:$0xff]
    %v1875 = vld [vmem:[%s15 + $0x520] sm:$0xff]
    %v1876 = vld [vmem:[%s15 + $0x528] sm:$0xff]
    %v1877 = vld [vmem:[%s15 + $0x530] sm:$0xff]
    %v1878 = vld [vmem:[%s15 + $0x538] sm:$0xff]
    %v1879 = vld [vmem:[%s15 + $0x540] sm:$0xff]
    %v1880 = vld [vmem:[%s15 + $0x548] sm:$0xff]
    %v1881 = vld [vmem:[%s15 + $0x550] sm:$0xff]
    %v1882 = vld [vmem:[%s15 + $0x558] sm:$0xff]
    %v1883 = vld [vmem:[%s15 + $0x560] sm:$0xff]
    %v1884 = vld [vmem:[%s15 + $0x568] sm:$0xff]
    %v1885 = vld [vmem:[%s15 + $0x570] sm:$0xff]
    %v1886 = vld [vmem:[%s15 + $0x578] sm:$0xff]
    %v1887 = vld [vmem:[%s15 + $0x580] sm:$0xff]
    %v1888 = vld [vmem:[%s15 + $0x588] sm:$0xff]
    %v1889 = vld [vmem:[%s15 + $0x590] sm:$0xff]
    %v1890 = vld [vmem:[%s15 + $0x598] sm:$0xff]
    %v1891 = vld [vmem:[%s15 + $0x5a0] sm:$0xff]
    %v1892 = vld [vmem:[%s15 + $0x5a8] sm:$0xff]
    %v1893 = vld [vmem:[%s15 + $0x5b0] sm:$0xff]
    %v1894 = vld [vmem:[%s15 + $0x5b8] sm:$0xff]
    %v1895 = vld [vmem:[%s15 + $0x5c0] sm:$0xff]
    %v1896 = vld [vmem:[%s15 + $0x5c8] sm:$0xff]
    %v1897 = vld [vmem:[%s15 + $0x5d0] sm:$0xff]
    %v1898 = vld [vmem:[%s15 + $0x5d8] sm:$0xff]
    %v1899 = vld [vmem:[%s15 + $0x5e0] sm:$0xff]
    %v1900 = vld [vmem:[%s15 + $0x5e8] sm:$0xff]
    %v1901 = vld [vmem:[%s15 + $0x5f0] sm:$0xff]
    %v1902 = vld [vmem:[%s15 + $0x5f8] sm:$0xff]
    %v1903 = vld [vmem:[%s15 + $0x600] sm:$0xff]
    %v1904 = vld [vmem:[%s15 + $0x608] sm:$0xff]
    %v1905 = vld [vmem:[%s15 + $0x610] sm:$0xff]
    %v1906 = vld [vmem:[%s15 + $0x618] sm:$0xff]
    %v1907 = vld [vmem:[%s15 + $0x620] sm:$0xff]
    %v1908 = vld [vmem:[%s15 + $0x628] sm:$0xff]
    %v1909 = vld [vmem:[%s15 + $0x630] sm:$0xff]
    %v1910 = vld [vmem:[%s15 + $0x638] sm:$0xff]
    %v1911 = vld [vmem:[%s15 + $0x640] sm:$0xff]
    %v1912 = vld [vmem:[%s15 + $0x648] sm:$0xff]
    %v1913 = vld [vmem:[%s15 + $0x650] sm:$0xff]
    %v1914 = vld [vmem:[%s15 + $0x658] sm:$0xff]
    %v1915 = vld [vmem:[%s15 + $0x660] sm:$0xff]
    %v1916 = vld [vmem:[%s15 + $0x668] sm:$0xff]
    %v1917 = vld [vmem:[%s15 + $0x670] sm:$0xff]
    %v1918 = vld [vmem:[%s15 + $0x678] sm:$0xff]
    %v1919 = vld [vmem:[%s15 + $0x680] sm:$0xff]
    %v1920 = vld [vmem:[%s15 + $0x688] sm:$0xff]
    %v1921 = vld [vmem:[%s15 + $0x690] sm:$0xff]
    %v1922 = vld [vmem:[%s15 + $0x698] sm:$0xff]
    %v1923 = vld [vmem:[%s15 + $0x6a0] sm:$0xff]
    %v1924 = vld [vmem:[%s15 + $0x6a8] sm:$0xff]
    %v1925 = vld [vmem:[%s15 + $0x6b0] sm:$0xff]
    %v1926 = vld [vmem:[%s15 + $0x6b8] sm:$0xff]
    %v1927 = vld [vmem:[%s15 + $0x6c0] sm:$0xff]
    %v1928 = vld [vmem:[%s15 + $0x6c8] sm:$0xff]
    %v1929 = vld [vmem:[%s15 + $0x6d0] sm:$0xff]
    %v1930 = vld [vmem:[%s15 + $0x6d8] sm:$0xff]
    %v1931 = vld [vmem:[%s15 + $0x6e0] sm:$0xff]
    %v1932 = vld [vmem:[%s15 + $0x6e8] sm:$0xff]
    %v1933 = vld [vmem:[%s15 + $0x6f0] sm:$0xff]
    %v1934 = vld [vmem:[%s15 + $0x6f8] sm:$0xff]
    %v1935 = vld [vmem:[%s15 + $0x700] sm:$0xff]
    %v1936 = vld [vmem:[%s15 + $0x708] sm:$0xff]
    %v1937 = vld [vmem:[%s15 + $0x710] sm:$0xff]
    %v1938 = vld [vmem:[%s15 + $0x718] sm:$0xff]
    %v1939 = vld [vmem:[%s15 + $0x720] sm:$0xff]
    %v1940 = vld [vmem:[%s15 + $0x728] sm:$0xff]
    %v1941 = vld [vmem:[%s15 + $0x730] sm:$0xff]
    %v1942 = vld [vmem:[%s15 + $0x738] sm:$0xff]
    %v1943 = vld [vmem:[%s15 + $0x740] sm:$0xff]
    %v1944 = vld [vmem:[%s15 + $0x748] sm:$0xff]
    %v1945 = vld [vmem:[%s15 + $0x750] sm:$0xff]
    %v1946 = vld [vmem:[%s15 + $0x758] sm:$0xff]
    %v1947 = vld [vmem:[%s15 + $0x760] sm:$0xff]
    %v1948 = vld [vmem:[%s15 + $0x768] sm:$0xff]
    %v1949 = vld [vmem:[%s15 + $0x770] sm:$0xff]
    %v1950 = vld [vmem:[%s15 + $0x778] sm:$0xff]
    %v1951 = vld [vmem:[%s15 + $0x780] sm:$0xff]
    %v1952 = vld [vmem:[%s15 + $0x788] sm:$0xff]
    %v1953 = vld [vmem:[%s15 + $0x790] sm:$0xff]
    %v1954 = vld [vmem:[%s15 + $0x798] sm:$0xff]
    %v1955 = vld [vmem:[%s15 + $0x7a0] sm:$0xff]
    %v1956 = vld [vmem:[%s15 + $0x7a8] sm:$0xff]
    %v1957 = vld [vmem:[%s15 + $0x7b0] sm:$0xff]
    %v1958 = vld [vmem:[%s15 + $0x7b8] sm:$0xff]
    %v1959 = vld [vmem:[%s15 + $0x7c0] sm:$0xff]
    %v1960 = vld [vmem:[%s15 + $0x7c8] sm:$0xff]
    %v1961 = vld [vmem:[%s15 + $0x7d0] sm:$0xff]
    %v1962 = vld [vmem:[%s15 + $0x7d8] sm:$0xff]
    %v1963 = vld [vmem:[%s15 + $0x7e0] sm:$0xff]
    %v1964 = vld [vmem:[%s15 + $0x7e8] sm:$0xff]
    %v1965 = vld [vmem:[%s15 + $0x7f0] sm:$0xff]
    %v1966 = vld [vmem:[%s15 + $0x7f8] sm:$0xff]
    %1967 = vmatprep.subr.mxu0 %v1712
    %1968 = vmatpush1.msra.mxu0 %v1711
    %1969 = vmatprep.subr.mxu0 %v1716
    %1970 = vmatpush1.msra.mxu0 %v1715
    %1971 = vmatprep.subr.mxu0 %v1720
    %1972 = vmatpush1.msra.mxu0 %v1719
    %1973 = vmatprep.subr.mxu0 %v1724
    %1974 = vmatpush1.msra.mxu0 %v1723
    %1975 = vmatprep.subr.mxu0 %v1728
    %1976 = vmatpush1.msra.mxu0 %v1727
    %1977 = vmatprep.subr.mxu0 %v1732
    %1978 = vmatpush1.msra.mxu0 %v1731
    %1979 = vmatprep.subr.mxu0 %v1736
    %1980 = vmatpush1.msra.mxu0 %v1735
    %1981 = vmatprep.subr.mxu0 %v1740
    %1982 = vmatpush1.msra.mxu0 %v1739
    %1983 = vmatprep.subr.mxu0 %v1744
    %1984 = vmatpush1.msra.mxu0 %v1743
    %1985 = vmatprep.subr.mxu0 %v1748
    %1986 = vmatpush1.msra.mxu0 %v1747
    %1987 = vmatprep.subr.mxu0 %v1752
    %1988 = vmatpush1.msra.mxu0 %v1751
    %1989 = vmatprep.subr.mxu0 %v1756
    %1990 = vmatpush1.msra.mxu0 %v1755
    %1991 = vmatprep.subr.mxu0 %v1760
    %1992 = vmatpush1.msra.mxu0 %v1759
    %1993 = vmatprep.subr.mxu0 %v1764
    %1994 = vmatpush1.msra.mxu0 %v1763
    %1995 = vmatprep.subr.mxu0 %v1768
    %1996 = vmatpush1.msra.mxu0 %v1767
    %1997 = vmatprep.subr.mxu0 %v1772
    %1998 = vmatpush1.msra.mxu0 %v1771
    %1999 = vmatprep.subr.mxu0 %v1776
    %2000 = vmatpush1.msra.mxu0 %v1775
    %2001 = vmatprep.subr.mxu0 %v1780
    %2002 = vmatpush1.msra.mxu0 %v1779
    %2003 = vmatprep.subr.mxu0 %v1784
    %2004 = vmatpush1.msra.mxu0 %v1783
    %2005 = vmatprep.subr.mxu0 %v1788
    %2006 = vmatpush1.msra.mxu0 %v1787
    %2007 = vmatprep.subr.mxu0 %v1792
    %2008 = vmatpush1.msra.mxu0 %v1791
    %2009 = vmatprep.subr.mxu0 %v1796
    %2010 = vmatpush1.msra.mxu0 %v1795
    %2011 = vmatprep.subr.mxu0 %v1800
    %2012 = vmatpush1.msra.mxu0 %v1799
    %2013 = vmatprep.subr.mxu0 %v1804
    %2014 = vmatpush1.msra.mxu0 %v1803
    %2015 = vmatprep.subr.mxu0 %v1808
    %2016 = vmatpush1.msra.mxu0 %v1807
    %2017 = vmatprep.subr.mxu0 %v1812
    %2018 = vmatpush1.msra.mxu0 %v1811
    %2019 = vmatprep.subr.mxu0 %v1816
    %2020 = vmatpush1.msra.mxu0 %v1815
    %2021 = vmatprep.subr.mxu0 %v1820
    %2022 = vmatpush1.msra.mxu0 %v1819
    %2023 = vmatprep.subr.mxu0 %v1824
    %2024 = vmatpush1.msra.mxu0 %v1823
    %2025 = vmatprep.subr.mxu0 %v1828
    %2026 = vmatpush1.msra.mxu0 %v1827
    %2027 = vmatprep.subr.mxu0 %v1832
    %2028 = vmatpush1.msra.mxu0 %v1831
    %2029 = vmatprep.subr.mxu0 %v1836
    %2030 = vmatpush1.msra.mxu0 %v1835
    %2031 = vmatprep.mubr.f32.mxu0 %v1708
    %2032 = vmatmul.mubr.f32.gmra.mrb[0].mxu0 %v1707
    %v2033 = vpop.f32.mrb[0].mxu0
    %v2034 = vadd.f32 0.0, %v2033
    %v2035 = vpop.f32.mrb[0].mxu0
    %v2036 = vadd.f32 0.0, %v2035
    %2037 = vdwg.mxu0
    %2038 = vmatprep.subr.mxu0 %v1840
    %2039 = vmatpush1.msra.mxu0 %v1839
    %2040 = vmatprep.subr.mxu0 %v1844
    %2041 = vmatpush1.msra.mxu0 %v1843
    %2042 = vmatprep.subr.mxu0 %v1848
    %2043 = vmatpush1.msra.mxu0 %v1847
    %2044 = vmatprep.subr.mxu0 %v1852
    %2045 = vmatpush1.msra.mxu0 %v1851
    %2046 = vmatprep.subr.mxu0 %v1856
    %2047 = vmatpush1.msra.mxu0 %v1855
    %2048 = vmatprep.subr.mxu0 %v1860
    %2049 = vmatpush1.msra.mxu0 %v1859
    %2050 = vmatprep.subr.mxu0 %v1864
    %2051 = vmatpush1.msra.mxu0 %v1863
    %2052 = vmatprep.subr.mxu0 %v1868
    %2053 = vmatpush1.msra.mxu0 %v1867
    %2054 = vmatprep.subr.mxu0 %v1872
    %2055 = vmatpush1.msra.mxu0 %v1871
    %2056 = vmatprep.subr.mxu0 %v1876
    %2057 = vmatpush1.msra.mxu0 %v1875
    %2058 = vmatprep.subr.mxu0 %v1880
    %2059 = vmatpush1.msra.mxu0 %v1879
    %2060 = vmatprep.subr.mxu0 %v1884
    %2061 = vmatpush1.msra.mxu0 %v1883
    %2062 = vmatprep.subr.mxu0 %v1888
    %2063 = vmatpush1.msra.mxu0 %v1887
    %2064 = vmatprep.subr.mxu0 %v1892
    %2065 = vmatpush1.msra.mxu0 %v1891
    %2066 = vmatprep.subr.mxu0 %v1896
    %2067 = vmatpush1.msra.mxu0 %v1895
    %2068 = vmatprep.subr.mxu0 %v1900
    %2069 = vmatpush1.msra.mxu0 %v1899
    %2070 = vmatprep.subr.mxu0 %v1904
    %2071 = vmatpush1.msra.mxu0 %v1903
    %2072 = vmatprep.subr.mxu0 %v1908
    %2073 = vmatpush1.msra.mxu0 %v1907
    %2074 = vmatprep.subr.mxu0 %v1912
    %2075 = vmatpush1.msra.mxu0 %v1911
    %2076 = vmatprep.subr.mxu0 %v1916
    %2077 = vmatpush1.msra.mxu0 %v1915
    %2078 = vmatprep.subr.mxu0 %v1920
    %2079 = vmatpush1.msra.mxu0 %v1919
    %2080 = vmatprep.subr.mxu0 %v1924
    %2081 = vmatpush1.msra.mxu0 %v1923
    %2082 = vmatprep.subr.mxu0 %v1928
    %2083 = vmatpush1.msra.mxu0 %v1927
    %2084 = vmatprep.subr.mxu0 %v1932
    %2085 = vmatpush1.msra.mxu0 %v1931
    %2086 = vmatprep.subr.mxu0 %v1936
    %2087 = vmatpush1.msra.mxu0 %v1935
    %2088 = vmatprep.subr.mxu0 %v1940
    %2089 = vmatpush1.msra.mxu0 %v1939
    %2090 = vmatprep.subr.mxu0 %v1944
    %2091 = vmatpush1.msra.mxu0 %v1943
    %2092 = vmatprep.subr.mxu0 %v1948
    %2093 = vmatpush1.msra.mxu0 %v1947
    %2094 = vmatprep.subr.mxu0 %v1952
    %2095 = vmatpush1.msra.mxu0 %v1951
    %2096 = vmatprep.subr.mxu0 %v1956
    %2097 = vmatpush1.msra.mxu0 %v1955
    %2098 = vmatprep.subr.mxu0 %v1960
    %2099 = vmatpush1.msra.mxu0 %v1959
    %2100 = vmatprep.subr.mxu0 %v1964
    %2101 = vmatpush1.msra.mxu0 %v1963
    %2102 = vmatprep.mubr.f32.mxu0 %v1710
    %2103 = vmatmul.mubr.f32.gmra.mrb[0].mxu0 %v1709
    %v2104 = vpop.f32.mrb[0].mxu0
    %v2105 = vadd.f32 %v2034, %v2104
    %v2106 = vpop.f32.mrb[0].mxu0
    %v2107 = vadd.f32 %v2036, %v2106
    %2108 = vdwg.mxu0
    %2109 = vmatprep.subr.mxu0 %v1714
    %2110 = vmatpush1.msra.mxu0 %v1713
    %2111 = vmatprep.subr.mxu0 %v1718
    %2112 = vmatpush1.msra.mxu0 %v1717
    %2113 = vmatprep.subr.mxu0 %v1722
    %2114 = vmatpush1.msra.mxu0 %v1721
    %2115 = vmatprep.subr.mxu0 %v1726
    %2116 = vmatpush1.msra.mxu0 %v1725
    %2117 = vmatprep.subr.mxu0 %v1730
    %2118 = vmatpush1.msra.mxu0 %v1729
    %2119 = vmatprep.subr.mxu0 %v1734
    %2120 = vmatpush1.msra.mxu0 %v1733
    %2121 = vmatprep.subr.mxu0 %v1738
    %2122 = vmatpush1.msra.mxu0 %v1737
    %2123 = vmatprep.subr.mxu0 %v1742
    %2124 = vmatpush1.msra.mxu0 %v1741
    %2125 = vmatprep.subr.mxu0 %v1746
    %2126 = vmatpush1.msra.mxu0 %v1745
    %2127 = vmatprep.subr.mxu0 %v1750
    %2128 = vmatpush1.msra.mxu0 %v1749
    %2129 = vmatprep.subr.mxu0 %v1754
    %2130 = vmatpush1.msra.mxu0 %v1753
    %2131 = vmatprep.subr.mxu0 %v1758
    %2132 = vmatpush1.msra.mxu0 %v1757
    %2133 = vmatprep.subr.mxu0 %v1762
    %2134 = vmatpush1.msra.mxu0 %v1761
    %2135 = vmatprep.subr.mxu0 %v1766
    %2136 = vmatpush1.msra.mxu0 %v1765
    %2137 = vmatprep.subr.mxu0 %v1770
    %2138 = vmatpush1.msra.mxu0 %v1769
    %2139 = vmatprep.subr.mxu0 %v1774
    %2140 = vmatpush1.msra.mxu0 %v1773
    %2141 = vmatprep.subr.mxu0 %v1778
    %2142 = vmatpush1.msra.mxu0 %v1777
    %2143 = vmatprep.subr.mxu0 %v1782
    %2144 = vmatpush1.msra.mxu0 %v1781
    %2145 = vmatprep.subr.mxu0 %v1786
    %2146 = vmatpush1.msra.mxu0 %v1785
    %2147 = vmatprep.subr.mxu0 %v1790
    %2148 = vmatpush1.msra.mxu0 %v1789
    %2149 = vmatprep.subr.mxu0 %v1794
    %2150 = vmatpush1.msra.mxu0 %v1793
    %2151 = vmatprep.subr.mxu0 %v1798
    %2152 = vmatpush1.msra.mxu0 %v1797
    %2153 = vmatprep.subr.mxu0 %v1802
    %2154 = vmatpush1.msra.mxu0 %v1801
    %2155 = vmatprep.subr.mxu0 %v1806
    %2156 = vmatpush1.msra.mxu0 %v1805
    %2157 = vmatprep.subr.mxu0 %v1810
    %2158 = vmatpush1.msra.mxu0 %v1809
    %2159 = vmatprep.subr.mxu0 %v1814
    %2160 = vmatpush1.msra.mxu0 %v1813
    %2161 = vmatprep.subr.mxu0 %v1818
    %2162 = vmatpush1.msra.mxu0 %v1817
    %2163 = vmatprep.subr.mxu0 %v1822
    %2164 = vmatpush1.msra.mxu0 %v1821
    %2165 = vmatprep.subr.mxu0 %v1826
    %2166 = vmatpush1.msra.mxu0 %v1825
    %2167 = vmatprep.subr.mxu0 %v1830
    %2168 = vmatpush1.msra.mxu0 %v1829
    %2169 = vmatprep.subr.mxu0 %v1834
    %2170 = vmatpush1.msra.mxu0 %v1833
    %2171 = vmatprep.subr.mxu0 %v1838
    %2172 = vmatpush1.msra.mxu0 %v1837
    %2173 = vmatprep.mubr.f32.mxu0 %v1708
    %2174 = vmatmul.mubr.f32.gmra.mrb[0].mxu0 %v1707
    %v2175 = vpop.f32.mrb[0].mxu0
    %v2176 = vadd.f32 0.0, %v2175
    %v2177 = vpop.f32.mrb[0].mxu0
    %v2178 = vadd.f32 0.0, %v2177
    %2179 = vdwg.mxu0
    %2180 = vmatprep.subr.mxu0 %v1842
    %2181 = vmatpush1.msra.mxu0 %v1841
    %2182 = vmatprep.subr.mxu0 %v1846
    %2183 = vmatpush1.msra.mxu0 %v1845
    %2184 = vmatprep.subr.mxu0 %v1850
    %2185 = vmatpush1.msra.mxu0 %v1849
    %2186 = vmatprep.subr.mxu0 %v1854
    %2187 = vmatpush1.msra.mxu0 %v1853
    %2188 = vmatprep.subr.mxu0 %v1858
    %2189 = vmatpush1.msra.mxu0 %v1857
    %2190 = vmatprep.subr.mxu0 %v1862
    %2191 = vmatpush1.msra.mxu0 %v1861
    %2192 = vmatprep.subr.mxu0 %v1866
    %2193 = vmatpush1.msra.mxu0 %v1865
    %2194 = vmatprep.subr.mxu0 %v1870
    %2195 = vmatpush1.msra.mxu0 %v1869
    %2196 = vmatprep.subr.mxu0 %v1874
    %2197 = vmatpush1.msra.mxu0 %v1873
    %2198 = vmatprep.subr.mxu0 %v1878
    %2199 = vmatpush1.msra.mxu0 %v1877
    %2200 = vmatprep.subr.mxu0 %v1882
    %2201 = vmatpush1.msra.mxu0 %v1881
    %2202 = vmatprep.subr.mxu0 %v1886
    %2203 = vmatpush1.msra.mxu0 %v1885
    %2204 = vmatprep.subr.mxu0 %v1890
    %2205 = vmatpush1.msra.mxu0 %v1889
    %2206 = vmatprep.subr.mxu0 %v1894
    %2207 = vmatpush1.msra.mxu0 %v1893
    %2208 = vmatprep.subr.mxu0 %v1898
    %2209 = vmatpush1.msra.mxu0 %v1897
    %2210 = vmatprep.subr.mxu0 %v1902
    %2211 = vmatpush1.msra.mxu0 %v1901
    %2212 = vmatprep.subr.mxu0 %v1906
    %2213 = vmatpush1.msra.mxu0 %v1905
    %2214 = vmatprep.subr.mxu0 %v1910
    %2215 = vmatpush1.msra.mxu0 %v1909
    %2216 = vmatprep.subr.mxu0 %v1914
    %2217 = vmatpush1.msra.mxu0 %v1913
    %2218 = vmatprep.subr.mxu0 %v1918
    %2219 = vmatpush1.msra.mxu0 %v1917
    %2220 = vmatprep.subr.mxu0 %v1922
    %2221 = vmatpush1.msra.mxu0 %v1921
    %2222 = vmatprep.subr.mxu0 %v1926
    %2223 = vmatpush1.msra.mxu0 %v1925
    %2224 = vmatprep.subr.mxu0 %v1930
    %2225 = vmatpush1.msra.mxu0 %v1929
    %2226 = vmatprep.subr.mxu0 %v1934
    %2227 = vmatpush1.msra.mxu0 %v1933
    %2228 = vmatprep.subr.mxu0 %v1938
    %2229 = vmatpush1.msra.mxu0 %v1937
    %2230 = vmatprep.subr.mxu0 %v1942
    %2231 = vmatpush1.msra.mxu0 %v1941
    %2232 = vmatprep.subr.mxu0 %v1946
    %2233 = vmatpush1.msra.mxu0 %v1945
    %2234 = vmatprep.subr.mxu0 %v1950
    %2235 = vmatpush1.msra.mxu0 %v1949
    %2236 = vmatprep.subr.mxu0 %v1954
    %2237 = vmatpush1.msra.mxu0 %v1953
    %2238 = vmatprep.subr.mxu0 %v1958
    %2239 = vmatpush1.msra.mxu0 %v1957
    %2240 = vmatprep.subr.mxu0 %v1962
    %2241 = vmatpush1.msra.mxu0 %v1961
    %2242 = vmatprep.subr.mxu0 %v1966
    %2243 = vmatpush1.msra.mxu0 %v1965
    %2244 = vmatprep.mubr.f32.mxu0 %v1710
    %2245 = vmatmul.mubr.f32.gmra.mrb[0].mxu0 %v1709
    %v2246 = vpop.f32.mrb[0].mxu0
    %v2247 = vadd.f32 %v2176, %v2246
    %v2248 = vpop.f32.mrb[0].mxu0
    %v2249 = vadd.f32 %v2178, %v2248
    %2250 = vdwg.mxu0
    %v2251 = vld [vmem:[%s17] sm:$0x1]
    %v2252 = vld [vmem:[%s19] sm:$0x1]
    %v2253 = vld [vmem:[%s21] sm:$0xff]
    %v2254 = vld [vmem:[%s21 + $0x8] sm:$0xff]
    %v2255 = vld [vmem:[%s21 + $0x10] sm:$0xff]
    %v2256 = vld [vmem:[%s21 + $0x18] sm:$0xff]
    %v2257 = vld [vmem:[%s21 + $0x20] sm:$0xff]
    %v2258 = vld [vmem:[%s21 + $0x28] sm:$0xff]
    %v2259 = vld [vmem:[%s21 + $0x30] sm:$0xff]
    %v2260 = vld [vmem:[%s21 + $0x38] sm:$0xff]
    %v2261 = vld [vmem:[%s23] sm:$0xff]
    %v2262 = vld [vmem:[%s23 + $0x8] sm:$0xff]
    %v2263 = vld [vmem:[%s23 + $0x10] sm:$0xff]
    %v2264 = vld [vmem:[%s23 + $0x18] sm:$0xff]
    %v2265 = vld [vmem:[%s23 + $0x20] sm:$0xff]
    %v2266 = vld [vmem:[%s23 + $0x28] sm:$0xff]
    %v2267 = vld [vmem:[%s23 + $0x30] sm:$0xff]
    %v2268 = vld [vmem:[%s23 + $0x38] sm:$0xff]
    %v2269 = vld [vmem:[%s23 + $0x40] sm:$0xff]
    %v2270 = vld [vmem:[%s23 + $0x48] sm:$0xff]
    %v2271 = vld [vmem:[%s23 + $0x50] sm:$0xff]
    %v2272 = vld [vmem:[%s23 + $0x58] sm:$0xff]
    %v2273 = vld [vmem:[%s23 + $0x60] sm:$0xff]
    %v2274 = vld [vmem:[%s23 + $0x68] sm:$0xff]
    %v2275 = vld [vmem:[%s23 + $0x70] sm:$0xff]
    %v2276 = vld [vmem:[%s23 + $0x78] sm:$0xff]
    %v2277 = vld [vmem:[%s23 + $0x80] sm:$0xff]
    %v2278 = vld [vmem:[%s23 + $0x88] sm:$0xff]
    %v2279 = vld [vmem:[%s23 + $0x90] sm:$0xff]
    %v2280 = vld [vmem:[%s23 + $0x98] sm:$0xff]
    %v2281 = vld [vmem:[%s23 + $0xa0] sm:$0xff]
    %v2282 = vld [vmem:[%s23 + $0xa8] sm:$0xff]
    %v2283 = vld [vmem:[%s23 + $0xb0] sm:$0xff]
    %v2284 = vld [vmem:[%s23 + $0xb8] sm:$0xff]
    %v2285 = vld [vmem:[%s23 + $0xc0] sm:$0xff]
    %v2286 = vld [vmem:[%s23 + $0xc8] sm:$0xff]
    %v2287 = vld [vmem:[%s23 + $0xd0] sm:$0xff]
    %v2288 = vld [vmem:[%s23 + $0xd8] sm:$0xff]
    %v2289 = vld [vmem:[%s23 + $0xe0] sm:$0xff]
    %v2290 = vld [vmem:[%s23 + $0xe8] sm:$0xff]
    %v2291 = vld [vmem:[%s23 + $0xf0] sm:$0xff]
    %v2292 = vld [vmem:[%s23 + $0xf8] sm:$0xff]
    %v2293 = vld [vmem:[%s23 + $0x100] sm:$0xff]
    %v2294 = vld [vmem:[%s23 + $0x108] sm:$0xff]
    %v2295 = vld [vmem:[%s23 + $0x110] sm:$0xff]
    %v2296 = vld [vmem:[%s23 + $0x118] sm:$0xff]
    %v2297 = vld [vmem:[%s23 + $0x120] sm:$0xff]
    %v2298 = vld [vmem:[%s23 + $0x128] sm:$0xff]
    %v2299 = vld [vmem:[%s23 + $0x130] sm:$0xff]
    %v2300 = vld [vmem:[%s23 + $0x138] sm:$0xff]
    %v2301 = vld [vmem:[%s23 + $0x140] sm:$0xff]
    %v2302 = vld [vmem:[%s23 + $0x148] sm:$0xff]
    %v2303 = vld [vmem:[%s23 + $0x150] sm:$0xff]
    %v2304 = vld [vmem:[%s23 + $0x158] sm:$0xff]
    %v2305 = vld [vmem:[%s23 + $0x160] sm:$0xff]
    %v2306 = vld [vmem:[%s23 + $0x168] sm:$0xff]
    %v2307 = vld [vmem:[%s23 + $0x170] sm:$0xff]
    %v2308 = vld [vmem:[%s23 + $0x178] sm:$0xff]
    %v2309 = vld [vmem:[%s23 + $0x180] sm:$0xff]
    %v2310 = vld [vmem:[%s23 + $0x188] sm:$0xff]
    %vm2311 = vcmask 130048
    %v2313 = vsel %vm2311, %v2249, 0
    %2315 = vmatprep.subr.mxu0 0.0
    %2316 = vmatpush1.msra.mxu0 %v2261
    %2317 = vmatprep.subr.mxu0 0.0
    %2318 = vmatpush1.msra.mxu0 %v2262
    %2319 = vmatprep.subr.mxu0 0.0
    %2320 = vmatpush1.msra.mxu0 %v2263
    %2321 = vmatprep.subr.mxu0 0.0
    %2322 = vmatpush1.msra.mxu0 %v2264
    %2323 = vmatprep.subr.mxu0 0.0
    %2324 = vmatpush1.msra.mxu0 %v2265
    %2325 = vmatprep.subr.mxu0 0.0
    %2326 = vmatpush1.msra.mxu0 %v2266
    %2327 = vmatprep.subr.mxu0 0.0
    %2328 = vmatpush1.msra.mxu0 %v2267
    %2329 = vmatprep.subr.mxu0 0.0
    %2330 = vmatpush1.msra.mxu0 %v2268
    %2331 = vmatprep.subr.mxu0 0.0
    %2332 = vmatpush1.msra.mxu0 %v2269
    %2333 = vmatprep.subr.mxu0 0.0
    %2334 = vmatpush1.msra.mxu0 %v2270
    %2335 = vmatprep.subr.mxu0 0.0
    %2336 = vmatpush1.msra.mxu0 %v2271
    %2337 = vmatprep.subr.mxu0 0.0
    %2338 = vmatpush1.msra.mxu0 %v2272
    %2339 = vmatprep.subr.mxu0 0.0
    %2340 = vmatpush1.msra.mxu0 %v2273
    %2341 = vmatprep.subr.mxu0 0.0
    %2342 = vmatpush1.msra.mxu0 %v2274
    %2343 = vmatprep.subr.mxu0 0.0
    %2344 = vmatpush1.msra.mxu0 %v2275
    %2345 = vmatprep.subr.mxu0 0.0
    %2346 = vmatpush1.msra.mxu0 %v2276
    %2347 = vmatprep.subr.mxu0 0.0
    %2348 = vmatpush1.msra.mxu0 %v2277
    %2349 = vmatprep.subr.mxu0 0.0
    %2350 = vmatpush1.msra.mxu0 %v2278
    %2351 = vmatprep.subr.mxu0 0.0
    %2352 = vmatpush1.msra.mxu0 %v2279
    %2353 = vmatprep.subr.mxu0 0.0
    %2354 = vmatpush1.msra.mxu0 %v2280
    %2355 = vmatprep.subr.mxu0 0.0
    %2356 = vmatpush1.msra.mxu0 %v2281
    %2357 = vmatprep.subr.mxu0 0.0
    %2358 = vmatpush1.msra.mxu0 %v2282
    %2359 = vmatprep.subr.mxu0 0.0
    %2360 = vmatpush1.msra.mxu0 %v2283
    %2361 = vmatprep.subr.mxu0 0.0
    %2362 = vmatpush1.msra.mxu0 %v2284
    %2363 = vmatprep.subr.mxu0 0.0
    %2364 = vmatpush1.msra.mxu0 %v2285
    %2365 = vmatprep.subr.mxu0 0.0
    %2366 = vmatpush1.msra.mxu0 %v2286
    %2367 = vmatprep.subr.mxu0 0.0
    %2368 = vmatpush1.msra.mxu0 %v2287
    %2369 = vmatprep.subr.mxu0 0.0
    %2370 = vmatpush1.msra.mxu0 %v2288
    %2371 = vmatprep.subr.mxu0 0.0
    %2372 = vmatpush1.msra.mxu0 %v2289
    %2373 = vmatprep.subr.mxu0 0.0
    %2374 = vmatpush1.msra.mxu0 %v2290
    %2375 = vmatprep.subr.mxu0 0.0
    %2376 = vmatpush1.msra.mxu0 %v2291
    %2377 = vmatprep.subr.mxu0 0.0
    %2378 = vmatpush1.msra.mxu0 %v2292
    %2379 = vmatprep.mubr.f32.mxu0 %v2107
    %2380 = vmatmul.mubr.f32.gmra.mrb[0].mxu0 %v2105
    %v2381 = vpop.f32.mrb[0].mxu0
    %v2382 = vadd.f32 0.0, %v2381
    %v2383 = vpop.f32.mrb[0].mxu0
    %2384 = vdwg.mxu0
    %2385 = vmatprep.subr.mxu0 0.0
    %2386 = vmatpush1.msra.mxu0 %v2293
    %2387 = vmatprep.subr.mxu0 0.0
    %2388 = vmatpush1.msra.mxu0 %v2294
    %2389 = vmatprep.subr.mxu0 0.0
    %2390 = vmatpush1.msra.mxu0 %v2295
    %2391 = vmatprep.subr.mxu0 0.0
    %2392 = vmatpush1.msra.mxu0 %v2296
    %2393 = vmatprep.subr.mxu0 0.0
    %2394 = vmatpush1.msra.mxu0 %v2297
    %2395 = vmatprep.subr.mxu0 0.0
    %2396 = vmatpush1.msra.mxu0 %v2298
    %2397 = vmatprep.subr.mxu0 0.0
    %2398 = vmatpush1.msra.mxu0 %v2299
    %2399 = vmatprep.subr.mxu0 0.0
    %2400 = vmatpush1.msra.mxu0 %v2300
    %2401 = vmatprep.subr.mxu0 0.0
    %2402 = vmatpush1.msra.mxu0 %v2301
    %2403 = vmatprep.subr.mxu0 0.0
    %2404 = vmatpush1.msra.mxu0 %v2302
    %2405 = vmatprep.subr.mxu0 0.0
    %2406 = vmatpush1.msra.mxu0 %v2303
    %2407 = vmatprep.subr.mxu0 0.0
    %2408 = vmatpush1.msra.mxu0 %v2304
    %2409 = vmatprep.subr.mxu0 0.0
    %2410 = vmatpush1.msra.mxu0 %v2305
    %2411 = vmatprep.subr.mxu0 0.0
    %2412 = vmatpush1.msra.mxu0 %v2306
    %2413 = vmatprep.subr.mxu0 0.0
    %2414 = vmatpush1.msra.mxu0 %v2307
    %2415 = vmatprep.subr.mxu0 0.0
    %2416 = vmatpush1.msra.mxu0 %v2308
    %2417 = vmatprep.subr.mxu0 0.0
    %2418 = vmatpush1.msra.mxu0 %v2309
    %2419 = vmatprep.subr.mxu0 0.0
    %2420 = vmatpush1.msra.mxu0 %v2310
    %2421 = vmatprep.subr.mxu0 0.0
    %2422 = vmatpush1.msra.mxu0 0.0
    %2423 = vmatprep.subr.mxu0 0.0
    %2424 = vmatpush1.msra.mxu0 0.0
    %2425 = vmatprep.subr.mxu0 0.0
    %2426 = vmatpush1.msra.mxu0 0.0
    %2427 = vmatprep.subr.mxu0 0.0
    %2428 = vmatpush1.msra.mxu0 0.0
    %2429 = vmatprep.subr.mxu0 0.0
    %2430 = vmatpush1.msra.mxu0 0.0
    %2431 = vmatprep.subr.mxu0 0.0
    %2432 = vmatpush1.msra.mxu0 0.0
    %2433 = vmatprep.subr.mxu0 0.0
    %2434 = vmatpush1.msra.mxu0 0.0
    %2435 = vmatprep.subr.mxu0 0.0
    %2436 = vmatpush1.msra.mxu0 0.0
    %2437 = vmatprep.subr.mxu0 0.0
    %2438 = vmatpush1.msra.mxu0 0.0
    %2439 = vmatprep.subr.mxu0 0.0
    %2440 = vmatpush1.msra.mxu0 0.0
    %2441 = vmatprep.subr.mxu0 0.0
    %2442 = vmatpush1.msra.mxu0 0.0
    %2443 = vmatprep.subr.mxu0 0.0
    %2444 = vmatpush1.msra.mxu0 0.0
    %2445 = vmatprep.subr.mxu0 0.0
    %2446 = vmatpush1.msra.mxu0 0.0
    %2447 = vmatprep.subr.mxu0 0.0
    %2448 = vmatpush1.msra.mxu0 0.0
    %2449 = vmatprep.mubr.f32.mxu0 %v2313
    %2450 = vmatmul.mubr.f32.gmra.mrb[0].mxu0 %v2247
    %v2451 = vpop.f32.mrb[0].mxu0
    %v2452 = vadd.f32 %v2382, %v2451
    %v2453 = vpop.f32.mrb[0].mxu0
    %2454 = vdwg.mxu0
    %v2455 = vmul.f32 %v2105, %v2105
    %v2456 = vmul.f32 %v2107, %v2107
    %v2457 = vmul.f32 %v2247, %v2247
    %v2458 = vmul.f32 %v2249, %v2249
    %v2460 = vsel %vm2311, %v2458, 0
    %2462 = vmatprep.subr.mxu0 0.0
    %2463 = vmatpush1.msra.mxu0 %v2261
    %2464 = vmatprep.subr.mxu0 0.0
    %2465 = vmatpush1.msra.mxu0 %v2262
    %2466 = vmatprep.subr.mxu0 0.0
    %2467 = vmatpush1.msra.mxu0 %v2263
    %2468 = vmatprep.subr.mxu0 0.0
    %2469 = vmatpush1.msra.mxu0 %v2264
    %2470 = vmatprep.subr.mxu0 0.0
    %2471 = vmatpush1.msra.mxu0 %v2265
    %2472 = vmatprep.subr.mxu0 0.0
    %2473 = vmatpush1.msra.mxu0 %v2266
    %2474 = vmatprep.subr.mxu0 0.0
    %2475 = vmatpush1.msra.mxu0 %v2267
    %2476 = vmatprep.subr.mxu0 0.0
    %2477 = vmatpush1.msra.mxu0 %v2268
    %2478 = vmatprep.subr.mxu0 0.0
    %2479 = vmatpush1.msra.mxu0 %v2269
    %2480 = vmatprep.subr.mxu0 0.0
    %2481 = vmatpush1.msra.mxu0 %v2270
    %2482 = vmatprep.subr.mxu0 0.0
    %2483 = vmatpush1.msra.mxu0 %v2271
    %2484 = vmatprep.subr.mxu0 0.0
    %2485 = vmatpush1.msra.mxu0 %v2272
    %2486 = vmatprep.subr.mxu0 0.0
    %2487 = vmatpush1.msra.mxu0 %v2273
    %2488 = vmatprep.subr.mxu0 0.0
    %2489 = vmatpush1.msra.mxu0 %v2274
    %2490 = vmatprep.subr.mxu0 0.0
    %2491 = vmatpush1.msra.mxu0 %v2275
    %2492 = vmatprep.subr.mxu0 0.0
    %2493 = vmatpush1.msra.mxu0 %v2276
    %2494 = vmatprep.subr.mxu0 0.0
    %2495 = vmatpush1.msra.mxu0 %v2277
    %2496 = vmatprep.subr.mxu0 0.0
    %2497 = vmatpush1.msra.mxu0 %v2278
    %2498 = vmatprep.subr.mxu0 0.0
    %2499 = vmatpush1.msra.mxu0 %v2279
    %2500 = vmatprep.subr.mxu0 0.0
    %2501 = vmatpush1.msra.mxu0 %v2280
    %2502 = vmatprep.subr.mxu0 0.0
    %2503 = vmatpush1.msra.mxu0 %v2281
    %2504 = vmatprep.subr.mxu0 0.0
    %2505 = vmatpush1.msra.mxu0 %v2282
    %2506 = vmatprep.subr.mxu0 0.0
    %2507 = vmatpush1.msra.mxu0 %v2283
    %2508 = vmatprep.subr.mxu0 0.0
    %2509 = vmatpush1.msra.mxu0 %v2284
    %2510 = vmatprep.subr.mxu0 0.0
    %2511 = vmatpush1.msra.mxu0 %v2285
    %2512 = vmatprep.subr.mxu0 0.0
    %2513 = vmatpush1.msra.mxu0 %v2286
    %2514 = vmatprep.subr.mxu0 0.0
    %2515 = vmatpush1.msra.mxu0 %v2287
    %2516 = vmatprep.subr.mxu0 0.0
    %2517 = vmatpush1.msra.mxu0 %v2288
    %2518 = vmatprep.subr.mxu0 0.0
    %2519 = vmatpush1.msra.mxu0 %v2289
    %2520 = vmatprep.subr.mxu0 0.0
    %2521 = vmatpush1.msra.mxu0 %v2290
    %2522 = vmatprep.subr.mxu0 0.0
    %2523 = vmatpush1.msra.mxu0 %v2291
    %2524 = vmatprep.subr.mxu0 0.0
    %2525 = vmatpush1.msra.mxu0 %v2292
    %2526 = vmatprep.mubr.f32.mxu0 %v2456
    %2527 = vmatmul.mubr.f32.gmra.mrb[0].mxu0 %v2455
    %v2528 = vpop.f32.mrb[0].mxu0
    %v2529 = vadd.f32 0.0, %v2528
    %v2530 = vpop.f32.mrb[0].mxu0
    %2531 = vdwg.mxu0
    %2532 = vmatprep.subr.mxu0 0.0
    %2533 = vmatpush1.msra.mxu0 %v2293
    %2534 = vmatprep.subr.mxu0 0.0
    %2535 = vmatpush1.msra.mxu0 %v2294
    %2536 = vmatprep.subr.mxu0 0.0
    %2537 = vmatpush1.msra.mxu0 %v2295
    %2538 = vmatprep.subr.mxu0 0.0
    %2539 = vmatpush1.msra.mxu0 %v2296
    %2540 = vmatprep.subr.mxu0 0.0
    %2541 = vmatpush1.msra.mxu0 %v2297
    %2542 = vmatprep.subr.mxu0 0.0
    %2543 = vmatpush1.msra.mxu0 %v2298
    %2544 = vmatprep.subr.mxu0 0.0
    %2545 = vmatpush1.msra.mxu0 %v2299
    %2546 = vmatprep.subr.mxu0 0.0
    %2547 = vmatpush1.msra.mxu0 %v2300
    %2548 = vmatprep.subr.mxu0 0.0
    %2549 = vmatpush1.msra.mxu0 %v2301
    %2550 = vmatprep.subr.mxu0 0.0
    %2551 = vmatpush1.msra.mxu0 %v2302
    %2552 = vmatprep.subr.mxu0 0.0
    %2553 = vmatpush1.msra.mxu0 %v2303
    %2554 = vmatprep.subr.mxu0 0.0
    %2555 = vmatpush1.msra.mxu0 %v2304
    %2556 = vmatprep.subr.mxu0 0.0
    %2557 = vmatpush1.msra.mxu0 %v2305
    %2558 = vmatprep.subr.mxu0 0.0
    %2559 = vmatpush1.msra.mxu0 %v2306
    %2560 = vmatprep.subr.mxu0 0.0
    %2561 = vmatpush1.msra.mxu0 %v2307
    %2562 = vmatprep.subr.mxu0 0.0
    %2563 = vmatpush1.msra.mxu0 %v2308
    %2564 = vmatprep.subr.mxu0 0.0
    %2565 = vmatpush1.msra.mxu0 %v2309
    %2566 = vmatprep.subr.mxu0 0.0
    %2567 = vmatpush1.msra.mxu0 %v2310
    %2568 = vmatprep.subr.mxu0 0.0
    %2569 = vmatpush1.msra.mxu0 0.0
    %2570 = vmatprep.subr.mxu0 0.0
    %2571 = vmatpush1.msra.mxu0 0.0
    %2572 = vmatprep.subr.mxu0 0.0
    %2573 = vmatpush1.msra.mxu0 0.0
    %2574 = vmatprep.subr.mxu0 0.0
    %2575 = vmatpush1.msra.mxu0 0.0
    %2576 = vmatprep.subr.mxu0 0.0
    %2577 = vmatpush1.msra.mxu0 0.0
    %2578 = vmatprep.subr.mxu0 0.0
    %2579 = vmatpush1.msra.mxu0 0.0
    %2580 = vmatprep.subr.mxu0 0.0
    %2581 = vmatpush1.msra.mxu0 0.0
    %2582 = vmatprep.subr.mxu0 0.0
    %2583 = vmatpush1.msra.mxu0 0.0
    %2584 = vmatprep.subr.mxu0 0.0
    %2585 = vmatpush1.msra.mxu0 0.0
    %2586 = vmatprep.subr.mxu0 0.0
    %2587 = vmatpush1.msra.mxu0 0.0
    %2588 = vmatprep.subr.mxu0 0.0
    %2589 = vmatpush1.msra.mxu0 0.0
    %2590 = vmatprep.subr.mxu0 0.0
    %2591 = vmatpush1.msra.mxu0 0.0
    %2592 = vmatprep.subr.mxu0 0.0
    %2593 = vmatpush1.msra.mxu0 0.0
    %2594 = vmatprep.subr.mxu0 0.0
    %2595 = vmatpush1.msra.mxu0 0.0
    %2596 = vmatprep.mubr.f32.mxu0 %v2460
    %2597 = vmatmul.mubr.f32.gmra.mrb[0].mxu0 %v2457
    %v2598 = vpop.f32.mrb[0].mxu0
    %v2599 = vadd.f32 %v2529, %v2598
    %v2600 = vpop.f32.mrb[0].mxu0
    %2601 = vdwg.mxu0
    %vm2602 = vcmask 123904
    %v2603 = vsel %vm2602, %v2452, 0.0
    %v2604 = vrot.slane %v2603, 4
    %v2605 = vadd.f32 %v2603, %v2604
    %v2606 = vrot.slane %v2605, 2
    %v2607 = vadd.f32 %v2605, %v2606
    %v2608 = vrot.slane %v2607, 1
    %v2609 = vadd.f32 %v2607, %v2608
    %v2610 = vrcp.pop 50.0
    %v2611 = vmul.f32 %v2609, %v2610
    %v2612 = vsel %vm2602, %v2599, 0.0
    %v2613 = vrot.slane %v2612, 4
    %v2614 = vadd.f32 %v2612, %v2613
    %v2615 = vrot.slane %v2614, 2
    %v2616 = vadd.f32 %v2614, %v2615
    %v2617 = vrot.slane %v2616, 1
    %v2618 = vadd.f32 %v2616, %v2617
    %v2619 = vmul.f32 %v2618, %v2610
    %v2620 = vmul.f32 %v2611, %v2611
    %v2621 = vsub.f32 %v2619, %v2620
    %v2622 = vmax.f32 %v2621, 0.0
    %v2623 = vadd.f32 %v2622, 1e-05
    %v2624 = vrsqrt.pop %v2623
    %v2625 = vmul.f32 %v2251, %v2624
    %v2626 = vmul.f32 %v2611, %v2625
    %v2627 = vsub.f32 %v2252, %v2626
    %v2629 = vsel %vm2311, %v2625, 0
    %2631 = vmatprep.subr.mxu0 %v2254
    %2632 = vmatpush1.msra.mxu0 %v2253
    %2633 = vmatprep.subr.mxu0 %v2258
    %2634 = vmatpush1.msra.mxu0 %v2257
    %2635 = vmatprep.subr.mxu0 0.0
    %2636 = vmatpush1.msra.mxu0 0.0
    %2637 = vmatprep.subr.mxu0 0.0
    %2638 = vmatpush1.msra.mxu0 0.0
    %2639 = vmatprep.subr.mxu0 0.0
    %2640 = vmatpush1.msra.mxu0 0.0
    %2641 = vmatprep.subr.mxu0 0.0
    %2642 = vmatpush1.msra.mxu0 0.0
    %2643 = vmatprep.subr.mxu0 0.0
    %2644 = vmatpush1.msra.mxu0 0.0
    %2645 = vmatprep.subr.mxu0 0.0
    %2646 = vmatpush1.msra.mxu0 0.0
    %2647 = vmatprep.subr.mxu0 0.0
    %2648 = vmatpush1.msra.mxu0 0.0
    %2649 = vmatprep.subr.mxu0 0.0
    %2650 = vmatpush1.msra.mxu0 0.0
    %2651 = vmatprep.subr.mxu0 0.0
    %2652 = vmatpush1.msra.mxu0 0.0
    %2653 = vmatprep.subr.mxu0 0.0
    %2654 = vmatpush1.msra.mxu0 0.0
    %2655 = vmatprep.subr.mxu0 0.0
    %2656 = vmatpush1.msra.mxu0 0.0
    %2657 = vmatprep.subr.mxu0 0.0
    %2658 = vmatpush1.msra.mxu0 0.0
    %2659 = vmatprep.subr.mxu0 0.0
    %2660 = vmatpush1.msra.mxu0 0.0
    %2661 = vmatprep.subr.mxu0 0.0
    %2662 = vmatpush1.msra.mxu0 0.0
    %2663 = vmatprep.subr.mxu0 0.0
    %2664 = vmatpush1.msra.mxu0 0.0
    %2665 = vmatprep.subr.mxu0 0.0
    %2666 = vmatpush1.msra.mxu0 0.0
    %2667 = vmatprep.subr.mxu0 0.0
    %2668 = vmatpush1.msra.mxu0 0.0
    %2669 = vmatprep.subr.mxu0 0.0
    %2670 = vmatpush1.msra.mxu0 0.0
    %2671 = vmatprep.subr.mxu0 0.0
    %2672 = vmatpush1.msra.mxu0 0.0
    %2673 = vmatprep.subr.mxu0 0.0
    %2674 = vmatpush1.msra.mxu0 0.0
    %2675 = vmatprep.subr.mxu0 0.0
    %2676 = vmatpush1.msra.mxu0 0.0
    %2677 = vmatprep.subr.mxu0 0.0
    %2678 = vmatpush1.msra.mxu0 0.0
    %2679 = vmatprep.subr.mxu0 0.0
    %2680 = vmatpush1.msra.mxu0 0.0
    %2681 = vmatprep.subr.mxu0 0.0
    %2682 = vmatpush1.msra.mxu0 0.0
    %2683 = vmatprep.subr.mxu0 0.0
    %2684 = vmatpush1.msra.mxu0 0.0
    %2685 = vmatprep.subr.mxu0 0.0
    %2686 = vmatpush1.msra.mxu0 0.0
    %2687 = vmatprep.subr.mxu0 0.0
    %2688 = vmatpush1.msra.mxu0 0.0
    %2689 = vmatprep.subr.mxu0 0.0
    %2690 = vmatpush1.msra.mxu0 0.0
    %2691 = vmatprep.subr.mxu0 0.0
    %2692 = vmatpush1.msra.mxu0 0.0
    %2693 = vmatprep.subr.mxu0 0.0
    %2694 = vmatpush1.msra.mxu0 0.0
    %2695 = vmatprep.mubr.f32.mxu0 0.0
    %2696 = vmatmul.mubr.f32.gmra.mrb[0].mxu0 %v2629
    %v2697 = vpop.f32.mrb[0].mxu0
    %v2698 = vadd.f32 0.0, %v2697
    %v2699 = vpop.f32.mrb[0].mxu0
    %v2700 = vadd.f32 0.0, %v2699
    %2701 = vdwg.mxu0
    %2702 = vmatprep.subr.mxu0 %v2256
    %2703 = vmatpush1.msra.mxu0 %v2255
    %2704 = vmatprep.subr.mxu0 %v2260
    %2705 = vmatpush1.msra.mxu0 %v2259
    %2706 = vmatprep.subr.mxu0 0.0
    %2707 = vmatpush1.msra.mxu0 0.0
    %2708 = vmatprep.subr.mxu0 0.0
    %2709 = vmatpush1.msra.mxu0 0.0
    %2710 = vmatprep.subr.mxu0 0.0
    %2711 = vmatpush1.msra.mxu0 0.0
    %2712 = vmatprep.subr.mxu0 0.0
    %2713 = vmatpush1.msra.mxu0 0.0
    %2714 = vmatprep.subr.mxu0 0.0
    %2715 = vmatpush1.msra.mxu0 0.0
    %2716 = vmatprep.subr.mxu0 0.0
    %2717 = vmatpush1.msra.mxu0 0.0
    %2718 = vmatprep.subr.mxu0 0.0
    %2719 = vmatpush1.msra.mxu0 0.0
    %2720 = vmatprep.subr.mxu0 0.0
    %2721 = vmatpush1.msra.mxu0 0.0
    %2722 = vmatprep.subr.mxu0 0.0
    %2723 = vmatpush1.msra.mxu0 0.0
    %2724 = vmatprep.subr.mxu0 0.0
    %2725 = vmatpush1.msra.mxu0 0.0
    %2726 = vmatprep.subr.mxu0 0.0
    %2727 = vmatpush1.msra.mxu0 0.0
    %2728 = vmatprep.subr.mxu0 0.0
    %2729 = vmatpush1.msra.mxu0 0.0
    %2730 = vmatprep.subr.mxu0 0.0
    %2731 = vmatpush1.msra.mxu0 0.0
    %2732 = vmatprep.subr.mxu0 0.0
    %2733 = vmatpush1.msra.mxu0 0.0
    %2734 = vmatprep.subr.mxu0 0.0
    %2735 = vmatpush1.msra.mxu0 0.0
    %2736 = vmatprep.subr.mxu0 0.0
    %2737 = vmatpush1.msra.mxu0 0.0
    %2738 = vmatprep.subr.mxu0 0.0
    %2739 = vmatpush1.msra.mxu0 0.0
    %2740 = vmatprep.subr.mxu0 0.0
    %2741 = vmatpush1.msra.mxu0 0.0
    %2742 = vmatprep.subr.mxu0 0.0
    %2743 = vmatpush1.msra.mxu0 0.0
    %2744 = vmatprep.subr.mxu0 0.0
    %2745 = vmatpush1.msra.mxu0 0.0
    %2746 = vmatprep.subr.mxu0 0.0
    %2747 = vmatpush1.msra.mxu0 0.0
    %2748 = vmatprep.subr.mxu0 0.0
    %2749 = vmatpush1.msra.mxu0 0.0
    %2750 = vmatprep.subr.mxu0 0.0
    %2751 = vmatpush1.msra.mxu0 0.0
    %2752 = vmatprep.subr.mxu0 0.0
    %2753 = vmatpush1.msra.mxu0 0.0
    %2754 = vmatprep.subr.mxu0 0.0
    %2755 = vmatpush1.msra.mxu0 0.0
    %2756 = vmatprep.subr.mxu0 0.0
    %2757 = vmatpush1.msra.mxu0 0.0
    %2758 = vmatprep.subr.mxu0 0.0
    %2759 = vmatpush1.msra.mxu0 0.0
    %2760 = vmatprep.subr.mxu0 0.0
    %2761 = vmatpush1.msra.mxu0 0.0
    %2762 = vmatprep.subr.mxu0 0.0
    %2763 = vmatpush1.msra.mxu0 0.0
    %2764 = vmatprep.subr.mxu0 0.0
    %2765 = vmatpush1.msra.mxu0 0.0
    %2766 = vmatprep.mubr.f32.mxu0 0.0
    %2767 = vmatmul.mubr.f32.gmra.mrb[0].mxu0 %v2629
    %v2768 = vpop.f32.mrb[0].mxu0
    %v2769 = vadd.f32 0.0, %v2768
    %v2770 = vpop.f32.mrb[0].mxu0
    %v2771 = vadd.f32 0.0, %v2770
    %2772 = vdwg.mxu0
    %v2774 = vsel %vm2311, %v2627, 0
    %2776 = vmatprep.subr.mxu0 %v2254
    %2777 = vmatpush1.msra.mxu0 %v2253
    %2778 = vmatprep.subr.mxu0 %v2258
    %2779 = vmatpush1.msra.mxu0 %v2257
    %2780 = vmatprep.subr.mxu0 0.0
    %2781 = vmatpush1.msra.mxu0 0.0
    %2782 = vmatprep.subr.mxu0 0.0
    %2783 = vmatpush1.msra.mxu0 0.0
    %2784 = vmatprep.subr.mxu0 0.0
    %2785 = vmatpush1.msra.mxu0 0.0
    %2786 = vmatprep.subr.mxu0 0.0
    %2787 = vmatpush1.msra.mxu0 0.0
    %2788 = vmatprep.subr.mxu0 0.0
    %2789 = vmatpush1.msra.mxu0 0.0
    %2790 = vmatprep.subr.mxu0 0.0
    %2791 = vmatpush1.msra.mxu0 0.0
    %2792 = vmatprep.subr.mxu0 0.0
    %2793 = vmatpush1.msra.mxu0 0.0
    %2794 = vmatprep.subr.mxu0 0.0
    %2795 = vmatpush1.msra.mxu0 0.0
    %2796 = vmatprep.subr.mxu0 0.0
    %2797 = vmatpush1.msra.mxu0 0.0
    %2798 = vmatprep.subr.mxu0 0.0
    %2799 = vmatpush1.msra.mxu0 0.0
    %2800 = vmatprep.subr.mxu0 0.0
    %2801 = vmatpush1.msra.mxu0 0.0
    %2802 = vmatprep.subr.mxu0 0.0
    %2803 = vmatpush1.msra.mxu0 0.0
    %2804 = vmatprep.subr.mxu0 0.0
    %2805 = vmatpush1.msra.mxu0 0.0
    %2806 = vmatprep.subr.mxu0 0.0
    %2807 = vmatpush1.msra.mxu0 0.0
    %2808 = vmatprep.subr.mxu0 0.0
    %2809 = vmatpush1.msra.mxu0 0.0
    %2810 = vmatprep.subr.mxu0 0.0
    %2811 = vmatpush1.msra.mxu0 0.0
    %2812 = vmatprep.subr.mxu0 0.0
    %2813 = vmatpush1.msra.mxu0 0.0
    %2814 = vmatprep.subr.mxu0 0.0
    %2815 = vmatpush1.msra.mxu0 0.0
    %2816 = vmatprep.subr.mxu0 0.0
    %2817 = vmatpush1.msra.mxu0 0.0
    %2818 = vmatprep.subr.mxu0 0.0
    %2819 = vmatpush1.msra.mxu0 0.0
    %2820 = vmatprep.subr.mxu0 0.0
    %2821 = vmatpush1.msra.mxu0 0.0
    %2822 = vmatprep.subr.mxu0 0.0
    %2823 = vmatpush1.msra.mxu0 0.0
    %2824 = vmatprep.subr.mxu0 0.0
    %2825 = vmatpush1.msra.mxu0 0.0
    %2826 = vmatprep.subr.mxu0 0.0
    %2827 = vmatpush1.msra.mxu0 0.0
    %2828 = vmatprep.subr.mxu0 0.0
    %2829 = vmatpush1.msra.mxu0 0.0
    %2830 = vmatprep.subr.mxu0 0.0
    %2831 = vmatpush1.msra.mxu0 0.0
    %2832 = vmatprep.subr.mxu0 0.0
    %2833 = vmatpush1.msra.mxu0 0.0
    %2834 = vmatprep.subr.mxu0 0.0
    %2835 = vmatpush1.msra.mxu0 0.0
    %2836 = vmatprep.subr.mxu0 0.0
    %2837 = vmatpush1.msra.mxu0 0.0
    %2838 = vmatprep.subr.mxu0 0.0
    %2839 = vmatpush1.msra.mxu0 0.0
    %2840 = vmatprep.mubr.f32.mxu0 0.0
    %2841 = vmatmul.mubr.f32.gmra.mrb[0].mxu0 %v2774
    %v2842 = vpop.f32.mrb[0].mxu0
    %v2843 = vadd.f32 0.0, %v2842
    %v2844 = vpop.f32.mrb[0].mxu0
    %v2845 = vadd.f32 0.0, %v2844
    %2846 = vdwg.mxu0
    %2847 = vmatprep.subr.mxu0 %v2256
    %2848 = vmatpush1.msra.mxu0 %v2255
    %2849 = vmatprep.subr.mxu0 %v2260
    %2850 = vmatpush1.msra.mxu0 %v2259
    %2851 = vmatprep.subr.mxu0 0.0
    %2852 = vmatpush1.msra.mxu0 0.0
    %2853 = vmatprep.subr.mxu0 0.0
    %2854 = vmatpush1.msra.mxu0 0.0
    %2855 = vmatprep.subr.mxu0 0.0
    %2856 = vmatpush1.msra.mxu0 0.0
    %2857 = vmatprep.subr.mxu0 0.0
    %2858 = vmatpush1.msra.mxu0 0.0
    %2859 = vmatprep.subr.mxu0 0.0
    %2860 = vmatpush1.msra.mxu0 0.0
    %2861 = vmatprep.subr.mxu0 0.0
    %2862 = vmatpush1.msra.mxu0 0.0
    %2863 = vmatprep.subr.mxu0 0.0
    %2864 = vmatpush1.msra.mxu0 0.0
    %2865 = vmatprep.subr.mxu0 0.0
    %2866 = vmatpush1.msra.mxu0 0.0
    %2867 = vmatprep.subr.mxu0 0.0
    %2868 = vmatpush1.msra.mxu0 0.0
    %2869 = vmatprep.subr.mxu0 0.0
    %2870 = vmatpush1.msra.mxu0 0.0
    %2871 = vmatprep.subr.mxu0 0.0
    %2872 = vmatpush1.msra.mxu0 0.0
    %2873 = vmatprep.subr.mxu0 0.0
    %2874 = vmatpush1.msra.mxu0 0.0
    %2875 = vmatprep.subr.mxu0 0.0
    %2876 = vmatpush1.msra.mxu0 0.0
    %2877 = vmatprep.subr.mxu0 0.0
    %2878 = vmatpush1.msra.mxu0 0.0
    %2879 = vmatprep.subr.mxu0 0.0
    %2880 = vmatpush1.msra.mxu0 0.0
    %2881 = vmatprep.subr.mxu0 0.0
    %2882 = vmatpush1.msra.mxu0 0.0
    %2883 = vmatprep.subr.mxu0 0.0
    %2884 = vmatpush1.msra.mxu0 0.0
    %2885 = vmatprep.subr.mxu0 0.0
    %2886 = vmatpush1.msra.mxu0 0.0
    %2887 = vmatprep.subr.mxu0 0.0
    %2888 = vmatpush1.msra.mxu0 0.0
    %2889 = vmatprep.subr.mxu0 0.0
    %2890 = vmatpush1.msra.mxu0 0.0
    %2891 = vmatprep.subr.mxu0 0.0
    %2892 = vmatpush1.msra.mxu0 0.0
    %2893 = vmatprep.subr.mxu0 0.0
    %2894 = vmatpush1.msra.mxu0 0.0
    %2895 = vmatprep.subr.mxu0 0.0
    %2896 = vmatpush1.msra.mxu0 0.0
    %2897 = vmatprep.subr.mxu0 0.0
    %2898 = vmatpush1.msra.mxu0 0.0
    %2899 = vmatprep.subr.mxu0 0.0
    %2900 = vmatpush1.msra.mxu0 0.0
    %2901 = vmatprep.subr.mxu0 0.0
    %2902 = vmatpush1.msra.mxu0 0.0
    %2903 = vmatprep.subr.mxu0 0.0
    %2904 = vmatpush1.msra.mxu0 0.0
    %2905 = vmatprep.subr.mxu0 0.0
    %2906 = vmatpush1.msra.mxu0 0.0
    %2907 = vmatprep.subr.mxu0 0.0
    %2908 = vmatpush1.msra.mxu0 0.0
    %2909 = vmatprep.subr.mxu0 0.0
    %2910 = vmatpush1.msra.mxu0 0.0
    %2911 = vmatprep.mubr.f32.mxu0 0.0
    %2912 = vmatmul.mubr.f32.gmra.mrb[0].mxu0 %v2774
    %v2913 = vpop.f32.mrb[0].mxu0
    %v2914 = vadd.f32 0.0, %v2913
    %v2915 = vpop.f32.mrb[0].mxu0
    %v2916 = vadd.f32 0.0, %v2915
    %2917 = vdwg.mxu0
    %v2918 = vlaneseq
    %v2919 = vshrl.u32 %v2918, 7
    %v2920 = vsub.s32 0, %v2919
    %v2921 = vrot.slane %v2698, %v2920
    %v2922 = vlaneseq
    %v2923 = vshrl.u32 %v2922, 7
    %v2924 = vsub.s32 0, %v2923
    %v2925 = vrot.slane %v2700, %v2924
    %v2926 = vlaneseq
    %v2927 = vshrl.u32 %v2926, 7
    %v2928 = vsub.s32 0, %v2927
    %v2929 = vrot.slane %v2769, %v2928
    %v2930 = vlaneseq
    %v2931 = vshrl.u32 %v2930, 7
    %v2932 = vsub.s32 0, %v2931
    %v2933 = vrot.slane %v2771, %v2932
    %v2934 = vmul.f32 %v2105, %v2921
    %v2935 = vmul.f32 %v2107, %v2925
    %v2936 = vmul.f32 %v2247, %v2929
    %v2937 = vmul.f32 %v2249, %v2933
    %v2938 = vlaneseq
    %v2939 = vshrl.u32 %v2938, 7
    %v2940 = vsub.s32 0, %v2939
    %v2941 = vrot.slane %v2843, %v2940
    %v2942 = vlaneseq
    %v2943 = vshrl.u32 %v2942, 7
    %v2944 = vsub.s32 0, %v2943
    %v2945 = vrot.slane %v2845, %v2944
    %v2946 = vlaneseq
    %v2947 = vshrl.u32 %v2946, 7
    %v2948 = vsub.s32 0, %v2947
    %v2949 = vrot.slane %v2914, %v2948
    %v2950 = vlaneseq
    %v2951 = vshrl.u32 %v2950, 7
    %v2952 = vsub.s32 0, %v2951
    %v2953 = vrot.slane %v2916, %v2952
    %v2954 = vadd.f32 %v2934, %v2941
    %v2955 = vadd.f32 %v2935, %v2945
    %v2956 = vadd.f32 %v2936, %v2949
    %v2957 = vadd.f32 %v2937, %v2953
    %v2958 = vmax.f32 %v2954, 0.0
    %v2959 = vmax.f32 %v2955, 0.0
    %v2960 = vmax.f32 %v2956, 0.0
    %v2961 = vmax.f32 %v2957, 0.0
    %v2962 = vld [vmem:[%s25] sm:$0xff]
    %v2963 = vld [vmem:[%s25 + $0x8] sm:$0xff]
    %v2964 = vld [vmem:[%s25 + $0x10] sm:$0xff]
    %v2965 = vld [vmem:[%s25 + $0x18] sm:$0xff]
    %v2966 = vld [vmem:[%s25 + $0x20] sm:$0xff]
    %v2967 = vld [vmem:[%s25 + $0x28] sm:$0xff]
    %v2968 = vld [vmem:[%s25 + $0x30] sm:$0xff]
    %v2969 = vld [vmem:[%s25 + $0x38] sm:$0xff]
    %v2970 = vld [vmem:[%s25 + $0x40] sm:$0xff]
    %v2971 = vld [vmem:[%s25 + $0x48] sm:$0xff]
    %v2972 = vld [vmem:[%s25 + $0x50] sm:$0xff]
    %v2973 = vld [vmem:[%s25 + $0x58] sm:$0xff]
    %v2974 = vld [vmem:[%s25 + $0x60] sm:$0xff]
    %v2975 = vld [vmem:[%s25 + $0x68] sm:$0xff]
    %v2976 = vld [vmem:[%s25 + $0x70] sm:$0xff]
    %v2977 = vld [vmem:[%s25 + $0x78] sm:$0xff]
    %v2978 = vld [vmem:[%s25 + $0x80] sm:$0xff]
    %v2979 = vld [vmem:[%s25 + $0x88] sm:$0xff]
    %v2980 = vld [vmem:[%s25 + $0x90] sm:$0xff]
    %v2981 = vld [vmem:[%s25 + $0x98] sm:$0xff]
    %v2982 = vld [vmem:[%s25 + $0xa0] sm:$0xff]
    %v2983 = vld [vmem:[%s25 + $0xa8] sm:$0xff]
    %v2984 = vld [vmem:[%s25 + $0xb0] sm:$0xff]
    %v2985 = vld [vmem:[%s25 + $0xb8] sm:$0xff]
    %v2986 = vld [vmem:[%s25 + $0xc0] sm:$0xff]
    %v2987 = vld [vmem:[%s25 + $0xc8] sm:$0xff]
    %v2988 = vld [vmem:[%s25 + $0xd0] sm:$0xff]
    %v2989 = vld [vmem:[%s25 + $0xd8] sm:$0xff]
    %v2990 = vld [vmem:[%s25 + $0xe0] sm:$0xff]
    %v2991 = vld [vmem:[%s25 + $0xe8] sm:$0xff]
    %v2992 = vld [vmem:[%s25 + $0xf0] sm:$0xff]
    %v2993 = vld [vmem:[%s25 + $0xf8] sm:$0xff]
    %v2994 = vld [vmem:[%s25 + $0x100] sm:$0xff]
    %v2995 = vld [vmem:[%s25 + $0x108] sm:$0xff]
    %v2996 = vld [vmem:[%s25 + $0x110] sm:$0xff]
    %v2997 = vld [vmem:[%s25 + $0x118] sm:$0xff]
    %v2998 = vld [vmem:[%s25 + $0x120] sm:$0xff]
    %v2999 = vld [vmem:[%s25 + $0x128] sm:$0xff]
    %v3000 = vld [vmem:[%s25 + $0x130] sm:$0xff]
    %v3001 = vld [vmem:[%s25 + $0x138] sm:$0xff]
    %v3002 = vld [vmem:[%s25 + $0x140] sm:$0xff]
    %v3003 = vld [vmem:[%s25 + $0x148] sm:$0xff]
    %v3004 = vld [vmem:[%s25 + $0x150] sm:$0xff]
    %v3005 = vld [vmem:[%s25 + $0x158] sm:$0xff]
    %v3006 = vld [vmem:[%s25 + $0x160] sm:$0xff]
    %v3007 = vld [vmem:[%s25 + $0x168] sm:$0xff]
    %v3008 = vld [vmem:[%s25 + $0x170] sm:$0xff]
    %v3009 = vld [vmem:[%s25 + $0x178] sm:$0xff]
    %v3010 = vld [vmem:[%s25 + $0x180] sm:$0xff]
    %v3011 = vld [vmem:[%s25 + $0x188] sm:$0xff]
    %v3012 = vld [vmem:[%s27] sm:$0x1]
    %v3014 = vlaneseq
    %v3015 = vshrl.u32 %v3014, 7
    %v3016 = vsub.s32 0, %v3015
    %v3017 = vrot.slane %v3012, %v3016
    %v3020 = vsel %vm2311, %v2961, 0
    %3022 = vmatprep.subr.mxu0 0.0
    %3023 = vmatpush1.msra.mxu0 %v2962
    %3024 = vmatprep.subr.mxu0 0.0
    %3025 = vmatpush1.msra.mxu0 %v2963
    %3026 = vmatprep.subr.mxu0 0.0
    %3027 = vmatpush1.msra.mxu0 %v2964
    %3028 = vmatprep.subr.mxu0 0.0
    %3029 = vmatpush1.msra.mxu0 %v2965
    %3030 = vmatprep.subr.mxu0 0.0
    %3031 = vmatpush1.msra.mxu0 %v2966
    %3032 = vmatprep.subr.mxu0 0.0
    %3033 = vmatpush1.msra.mxu0 %v2967
    %3034 = vmatprep.subr.mxu0 0.0
    %3035 = vmatpush1.msra.mxu0 %v2968
    %3036 = vmatprep.subr.mxu0 0.0
    %3037 = vmatpush1.msra.mxu0 %v2969
    %3038 = vmatprep.subr.mxu0 0.0
    %3039 = vmatpush1.msra.mxu0 %v2970
    %3040 = vmatprep.subr.mxu0 0.0
    %3041 = vmatpush1.msra.mxu0 %v2971
    %3042 = vmatprep.subr.mxu0 0.0
    %3043 = vmatpush1.msra.mxu0 %v2972
    %3044 = vmatprep.subr.mxu0 0.0
    %3045 = vmatpush1.msra.mxu0 %v2973
    %3046 = vmatprep.subr.mxu0 0.0
    %3047 = vmatpush1.msra.mxu0 %v2974
    %3048 = vmatprep.subr.mxu0 0.0
    %3049 = vmatpush1.msra.mxu0 %v2975
    %3050 = vmatprep.subr.mxu0 0.0
    %3051 = vmatpush1.msra.mxu0 %v2976
    %3052 = vmatprep.subr.mxu0 0.0
    %3053 = vmatpush1.msra.mxu0 %v2977
    %3054 = vmatprep.subr.mxu0 0.0
    %3055 = vmatpush1.msra.mxu0 %v2978
    %3056 = vmatprep.subr.mxu0 0.0
    %3057 = vmatpush1.msra.mxu0 %v2979
    %3058 = vmatprep.subr.mxu0 0.0
    %3059 = vmatpush1.msra.mxu0 %v2980
    %3060 = vmatprep.subr.mxu0 0.0
    %3061 = vmatpush1.msra.mxu0 %v2981
    %3062 = vmatprep.subr.mxu0 0.0
    %3063 = vmatpush1.msra.mxu0 %v2982
    %3064 = vmatprep.subr.mxu0 0.0
    %3065 = vmatpush1.msra.mxu0 %v2983
    %3066 = vmatprep.subr.mxu0 0.0
    %3067 = vmatpush1.msra.mxu0 %v2984
    %3068 = vmatprep.subr.mxu0 0.0
    %3069 = vmatpush1.msra.mxu0 %v2985
    %3070 = vmatprep.subr.mxu0 0.0
    %3071 = vmatpush1.msra.mxu0 %v2986
    %3072 = vmatprep.subr.mxu0 0.0
    %3073 = vmatpush1.msra.mxu0 %v2987
    %3074 = vmatprep.subr.mxu0 0.0
    %3075 = vmatpush1.msra.mxu0 %v2988
    %3076 = vmatprep.subr.mxu0 0.0
    %3077 = vmatpush1.msra.mxu0 %v2989
    %3078 = vmatprep.subr.mxu0 0.0
    %3079 = vmatpush1.msra.mxu0 %v2990
    %3080 = vmatprep.subr.mxu0 0.0
    %3081 = vmatpush1.msra.mxu0 %v2991
    %3082 = vmatprep.subr.mxu0 0.0
    %3083 = vmatpush1.msra.mxu0 %v2992
    %3084 = vmatprep.subr.mxu0 0.0
    %3085 = vmatpush1.msra.mxu0 %v2993
    %3086 = vmatprep.mubr.f32.mxu0 %v2959
    %3087 = vmatmul.mubr.f32.gmra.mrb[0].mxu0 %v2958
    %v3088 = vpop.f32.mrb[0].mxu0
    %v3089 = vadd.f32 %v3017, %v3088
    %v3090 = vpop.f32.mrb[0].mxu0
    %3091 = vdwg.mxu0
    %3092 = vmatprep.subr.mxu0 0.0
    %3093 = vmatpush1.msra.mxu0 %v2994
    %3094 = vmatprep.subr.mxu0 0.0
    %3095 = vmatpush1.msra.mxu0 %v2995
    %3096 = vmatprep.subr.mxu0 0.0
    %3097 = vmatpush1.msra.mxu0 %v2996
    %3098 = vmatprep.subr.mxu0 0.0
    %3099 = vmatpush1.msra.mxu0 %v2997
    %3100 = vmatprep.subr.mxu0 0.0
    %3101 = vmatpush1.msra.mxu0 %v2998
    %3102 = vmatprep.subr.mxu0 0.0
    %3103 = vmatpush1.msra.mxu0 %v2999
    %3104 = vmatprep.subr.mxu0 0.0
    %3105 = vmatpush1.msra.mxu0 %v3000
    %3106 = vmatprep.subr.mxu0 0.0
    %3107 = vmatpush1.msra.mxu0 %v3001
    %3108 = vmatprep.subr.mxu0 0.0
    %3109 = vmatpush1.msra.mxu0 %v3002
    %3110 = vmatprep.subr.mxu0 0.0
    %3111 = vmatpush1.msra.mxu0 %v3003
    %3112 = vmatprep.subr.mxu0 0.0
    %3113 = vmatpush1.msra.mxu0 %v3004
    %3114 = vmatprep.subr.mxu0 0.0
    %3115 = vmatpush1.msra.mxu0 %v3005
    %3116 = vmatprep.subr.mxu0 0.0
    %3117 = vmatpush1.msra.mxu0 %v3006
    %3118 = vmatprep.subr.mxu0 0.0
    %3119 = vmatpush1.msra.mxu0 %v3007
    %3120 = vmatprep.subr.mxu0 0.0
    %3121 = vmatpush1.msra.mxu0 %v3008
    %3122 = vmatprep.subr.mxu0 0.0
    %3123 = vmatpush1.msra.mxu0 %v3009
    %3124 = vmatprep.subr.mxu0 0.0
    %3125 = vmatpush1.msra.mxu0 %v3010
    %3126 = vmatprep.subr.mxu0 0.0
    %3127 = vmatpush1.msra.mxu0 %v3011
    %3128 = vmatprep.subr.mxu0 0.0
    %3129 = vmatpush1.msra.mxu0 0.0
    %3130 = vmatprep.subr.mxu0 0.0
    %3131 = vmatpush1.msra.mxu0 0.0
    %3132 = vmatprep.subr.mxu0 0.0
    %3133 = vmatpush1.msra.mxu0 0.0
    %3134 = vmatprep.subr.mxu0 0.0
    %3135 = vmatpush1.msra.mxu0 0.0
    %3136 = vmatprep.subr.mxu0 0.0
    %3137 = vmatpush1.msra.mxu0 0.0
    %3138 = vmatprep.subr.mxu0 0.0
    %3139 = vmatpush1.msra.mxu0 0.0
    %3140 = vmatprep.subr.mxu0 0.0
    %3141 = vmatpush1.msra.mxu0 0.0
    %3142 = vmatprep.subr.mxu0 0.0
    %3143 = vmatpush1.msra.mxu0 0.0
    %3144 = vmatprep.subr.mxu0 0.0
    %3145 = vmatpush1.msra.mxu0 0.0
    %3146 = vmatprep.subr.mxu0 0.0
    %3147 = vmatpush1.msra.mxu0 0.0
    %3148 = vmatprep.subr.mxu0 0.0
    %3149 = vmatpush1.msra.mxu0 0.0
    %3150 = vmatprep.subr.mxu0 0.0
    %3151 = vmatpush1.msra.mxu0 0.0
    %3152 = vmatprep.subr.mxu0 0.0
    %3153 = vmatpush1.msra.mxu0 0.0
    %3154 = vmatprep.subr.mxu0 0.0
    %3155 = vmatpush1.msra.mxu0 0.0
    %3156 = vmatprep.mubr.f32.mxu0 %v3020
    %3157 = vmatmul.mubr.f32.gmra.mrb[0].mxu0 %v2960
    %v3158 = vpop.f32.mrb[0].mxu0
    %v3159 = vadd.f32 %v3089, %v3158
    %v3160 = vpop.f32.mrb[0].mxu0
    %3161 = vdwg.mxu0
    %v3162 = vld [vmem:[%s29] sm:$0x1]
    %v3163 = vld [vmem:[%s31] sm:$0x1]
    %v3164 = vsel %vm1350, %v3159, 0.0
    %v3165 = vrot.slane %v3164, 4
    %v3166 = vadd.f32 %v3164, %v3165
    %v3167 = vrot.slane %v3166, 2
    %v3168 = vadd.f32 %v3166, %v3167
    %v3169 = vrot.slane %v3168, 1
    %v3170 = vadd.f32 %v3168, %v3169
    %v3171 = vrcp.pop 2.0
    %v3172 = vmul.f32 %v3170, %v3171
    %v3173 = vmul.f32 %v3159, %v3159
    %v3174 = vsel %vm1350, %v3173, 0.0
    %v3175 = vrot.slane %v3174, 4
    %v3176 = vadd.f32 %v3174, %v3175
    %v3177 = vrot.slane %v3176, 2
    %v3178 = vadd.f32 %v3176, %v3177
    %v3179 = vrot.slane %v3178, 1
    %v3180 = vadd.f32 %v3178, %v3179
    %v3181 = vmul.f32 %v3180, %v3171
    %v3182 = vmul.f32 %v3172, %v3172
    %v3183 = vsub.f32 %v3181, %v3182
    %v3184 = vmax.f32 %v3183, 0.0
    %v3185 = vadd.f32 %v3184, 1e-05
    %v3186 = vrsqrt.pop %v3185
    %v3187 = vmul.f32 %v3162, %v3186
    %v3189 = vlaneseq
    %v3190 = vshrl.u32 %v3189, 7
    %v3191 = vsub.s32 0, %v3190
    %v3192 = vrot.slane %v3187, %v3191
    %v3194 = vmul.f32 %v3159, %v3192
    %v3195 = vmul.f32 %v3172, %v3187
    %v3196 = vsub.f32 %v3163, %v3195
    %v3198 = vlaneseq
    %v3199 = vshrl.u32 %v3198, 7
    %v3200 = vsub.s32 0, %v3199
    %v3201 = vrot.slane %v3196, %v3200
    %v3203 = vadd.f32 %v3194, %v3201
    %v3204 = vmax.f32 %v3203, 0.0
    %v3205 = vld [vmem:[%s33] sm:$0xff]
    %v3206 = vld [vmem:[%s33 + $0x8] sm:$0xff]
    %v3207 = vld [vmem:[%s33 + $0x10] sm:$0xff]
    %v3208 = vld [vmem:[%s33 + $0x18] sm:$0xff]
    %v3209 = vld [vmem:[%s33 + $0x20] sm:$0xff]
    %v3210 = vld [vmem:[%s33 + $0x28] sm:$0xff]
    %v3211 = vld [vmem:[%s33 + $0x30] sm:$0xff]
    %v3212 = vld [vmem:[%s33 + $0x38] sm:$0xff]
    %v3213 = vld [vmem:[%s33 + $0x40] sm:$0xff]
    %v3214 = vld [vmem:[%s33 + $0x48] sm:$0xff]
    %v3215 = vld [vmem:[%s33 + $0x50] sm:$0xff]
    %v3216 = vld [vmem:[%s33 + $0x58] sm:$0xff]
    %v3217 = vld [vmem:[%s33 + $0x60] sm:$0xff]
    %v3218 = vld [vmem:[%s33 + $0x68] sm:$0xff]
    %v3219 = vld [vmem:[%s33 + $0x70] sm:$0xff]
    %v3220 = vld [vmem:[%s33 + $0x78] sm:$0xff]
    %v3221 = vld [vmem:[%s33 + $0x80] sm:$0xff]
    %v3222 = vld [vmem:[%s33 + $0x88] sm:$0xff]
    %v3223 = vld [vmem:[%s33 + $0x90] sm:$0xff]
    %v3224 = vld [vmem:[%s33 + $0x98] sm:$0xff]
    %v3225 = vld [vmem:[%s33 + $0xa0] sm:$0xff]
    %v3226 = vld [vmem:[%s33 + $0xa8] sm:$0xff]
    %v3227 = vld [vmem:[%s33 + $0xb0] sm:$0xff]
    %v3228 = vld [vmem:[%s33 + $0xb8] sm:$0xff]
    %v3229 = vld [vmem:[%s33 + $0xc0] sm:$0xff]
    %v3230 = vld [vmem:[%s33 + $0xc8] sm:$0xff]
    %v3231 = vld [vmem:[%s33 + $0xd0] sm:$0xff]
    %v3232 = vld [vmem:[%s33 + $0xd8] sm:$0xff]
    %v3233 = vld [vmem:[%s33 + $0xe0] sm:$0xff]
    %v3234 = vld [vmem:[%s33 + $0xe8] sm:$0xff]
    %v3235 = vld [vmem:[%s33 + $0xf0] sm:$0xff]
    %v3236 = vld [vmem:[%s33 + $0xf8] sm:$0xff]
    %v3237 = vld [vmem:[%s33 + $0x100] sm:$0xff]
    %v3238 = vld [vmem:[%s33 + $0x108] sm:$0xff]
    %v3239 = vld [vmem:[%s33 + $0x110] sm:$0xff]
    %v3240 = vld [vmem:[%s33 + $0x118] sm:$0xff]
    %v3241 = vld [vmem:[%s33 + $0x120] sm:$0xff]
    %v3242 = vld [vmem:[%s33 + $0x128] sm:$0xff]
    %v3243 = vld [vmem:[%s33 + $0x130] sm:$0xff]
    %v3244 = vld [vmem:[%s33 + $0x138] sm:$0xff]
    %v3245 = vld [vmem:[%s33 + $0x140] sm:$0xff]
    %v3246 = vld [vmem:[%s33 + $0x148] sm:$0xff]
    %v3247 = vld [vmem:[%s33 + $0x150] sm:$0xff]
    %v3248 = vld [vmem:[%s33 + $0x158] sm:$0xff]
    %v3249 = vld [vmem:[%s33 + $0x160] sm:$0xff]
    %v3250 = vld [vmem:[%s33 + $0x168] sm:$0xff]
    %v3251 = vld [vmem:[%s33 + $0x170] sm:$0xff]
    %v3252 = vld [vmem:[%s33 + $0x178] sm:$0xff]
    %v3253 = vld [vmem:[%s33 + $0x180] sm:$0xff]
    %v3254 = vld [vmem:[%s33 + $0x188] sm:$0xff]
    %v3255 = vld [vmem:[%s35] sm:$0x1]
    %v3257 = vlaneseq
    %v3258 = vshrl.u32 %v3257, 7
    %v3259 = vsub.s32 0, %v3258
    %v3260 = vrot.slane %v3255, %v3259
    %3262 = vmatprep.subr.mxu0 0.0
    %3263 = vmatpush1.msra.mxu0 %v3205
    %3264 = vmatprep.subr.mxu0 0.0
    %3265 = vmatpush1.msra.mxu0 %v3206
    %3266 = vmatprep.subr.mxu0 0.0
    %3267 = vmatpush1.msra.mxu0 %v3207
    %3268 = vmatprep.subr.mxu0 0.0
    %3269 = vmatpush1.msra.mxu0 %v3208
    %3270 = vmatprep.subr.mxu0 0.0
    %3271 = vmatpush1.msra.mxu0 %v3209
    %3272 = vmatprep.subr.mxu0 0.0
    %3273 = vmatpush1.msra.mxu0 %v3210
    %3274 = vmatprep.subr.mxu0 0.0
    %3275 = vmatpush1.msra.mxu0 %v3211
    %3276 = vmatprep.subr.mxu0 0.0
    %3277 = vmatpush1.msra.mxu0 %v3212
    %3278 = vmatprep.subr.mxu0 0.0
    %3279 = vmatpush1.msra.mxu0 %v3213
    %3280 = vmatprep.subr.mxu0 0.0
    %3281 = vmatpush1.msra.mxu0 %v3214
    %3282 = vmatprep.subr.mxu0 0.0
    %3283 = vmatpush1.msra.mxu0 %v3215
    %3284 = vmatprep.subr.mxu0 0.0
    %3285 = vmatpush1.msra.mxu0 %v3216
    %3286 = vmatprep.subr.mxu0 0.0
    %3287 = vmatpush1.msra.mxu0 %v3217
    %3288 = vmatprep.subr.mxu0 0.0
    %3289 = vmatpush1.msra.mxu0 %v3218
    %3290 = vmatprep.subr.mxu0 0.0
    %3291 = vmatpush1.msra.mxu0 %v3219
    %3292 = vmatprep.subr.mxu0 0.0
    %3293 = vmatpush1.msra.mxu0 %v3220
    %3294 = vmatprep.subr.mxu0 0.0
    %3295 = vmatpush1.msra.mxu0 %v3221
    %3296 = vmatprep.subr.mxu0 0.0
    %3297 = vmatpush1.msra.mxu0 %v3222
    %3298 = vmatprep.subr.mxu0 0.0
    %3299 = vmatpush1.msra.mxu0 %v3223
    %3300 = vmatprep.subr.mxu0 0.0
    %3301 = vmatpush1.msra.mxu0 %v3224
    %3302 = vmatprep.subr.mxu0 0.0
    %3303 = vmatpush1.msra.mxu0 %v3225
    %3304 = vmatprep.subr.mxu0 0.0
    %3305 = vmatpush1.msra.mxu0 %v3226
    %3306 = vmatprep.subr.mxu0 0.0
    %3307 = vmatpush1.msra.mxu0 %v3227
    %3308 = vmatprep.subr.mxu0 0.0
    %3309 = vmatpush1.msra.mxu0 %v3228
    %3310 = vmatprep.subr.mxu0 0.0
    %3311 = vmatpush1.msra.mxu0 %v3229
    %3312 = vmatprep.subr.mxu0 0.0
    %3313 = vmatpush1.msra.mxu0 %v3230
    %3314 = vmatprep.subr.mxu0 0.0
    %3315 = vmatpush1.msra.mxu0 %v3231
    %3316 = vmatprep.subr.mxu0 0.0
    %3317 = vmatpush1.msra.mxu0 %v3232
    %3318 = vmatprep.subr.mxu0 0.0
    %3319 = vmatpush1.msra.mxu0 %v3233
    %3320 = vmatprep.subr.mxu0 0.0
    %3321 = vmatpush1.msra.mxu0 %v3234
    %3322 = vmatprep.subr.mxu0 0.0
    %3323 = vmatpush1.msra.mxu0 %v3235
    %3324 = vmatprep.subr.mxu0 0.0
    %3325 = vmatpush1.msra.mxu0 %v3236
    %3326 = vmatprep.mubr.f32.mxu0 %v2959
    %3327 = vmatmul.mubr.f32.gmra.mrb[0].mxu0 %v2958
    %v3328 = vpop.f32.mrb[0].mxu0
    %v3329 = vadd.f32 %v3260, %v3328
    %v3330 = vpop.f32.mrb[0].mxu0
    %3331 = vdwg.mxu0
    %3332 = vmatprep.subr.mxu0 0.0
    %3333 = vmatpush1.msra.mxu0 %v3237
    %3334 = vmatprep.subr.mxu0 0.0
    %3335 = vmatpush1.msra.mxu0 %v3238
    %3336 = vmatprep.subr.mxu0 0.0
    %3337 = vmatpush1.msra.mxu0 %v3239
    %3338 = vmatprep.subr.mxu0 0.0
    %3339 = vmatpush1.msra.mxu0 %v3240
    %3340 = vmatprep.subr.mxu0 0.0
    %3341 = vmatpush1.msra.mxu0 %v3241
    %3342 = vmatprep.subr.mxu0 0.0
    %3343 = vmatpush1.msra.mxu0 %v3242
    %3344 = vmatprep.subr.mxu0 0.0
    %3345 = vmatpush1.msra.mxu0 %v3243
    %3346 = vmatprep.subr.mxu0 0.0
    %3347 = vmatpush1.msra.mxu0 %v3244
    %3348 = vmatprep.subr.mxu0 0.0
    %3349 = vmatpush1.msra.mxu0 %v3245
    %3350 = vmatprep.subr.mxu0 0.0
    %3351 = vmatpush1.msra.mxu0 %v3246
    %3352 = vmatprep.subr.mxu0 0.0
    %3353 = vmatpush1.msra.mxu0 %v3247
    %3354 = vmatprep.subr.mxu0 0.0
    %3355 = vmatpush1.msra.mxu0 %v3248
    %3356 = vmatprep.subr.mxu0 0.0
    %3357 = vmatpush1.msra.mxu0 %v3249
    %3358 = vmatprep.subr.mxu0 0.0
    %3359 = vmatpush1.msra.mxu0 %v3250
    %3360 = vmatprep.subr.mxu0 0.0
    %3361 = vmatpush1.msra.mxu0 %v3251
    %3362 = vmatprep.subr.mxu0 0.0
    %3363 = vmatpush1.msra.mxu0 %v3252
    %3364 = vmatprep.subr.mxu0 0.0
    %3365 = vmatpush1.msra.mxu0 %v3253
    %3366 = vmatprep.subr.mxu0 0.0
    %3367 = vmatpush1.msra.mxu0 %v3254
    %3368 = vmatprep.subr.mxu0 0.0
    %3369 = vmatpush1.msra.mxu0 0.0
    %3370 = vmatprep.subr.mxu0 0.0
    %3371 = vmatpush1.msra.mxu0 0.0
    %3372 = vmatprep.subr.mxu0 0.0
    %3373 = vmatpush1.msra.mxu0 0.0
    %3374 = vmatprep.subr.mxu0 0.0
    %3375 = vmatpush1.msra.mxu0 0.0
    %3376 = vmatprep.subr.mxu0 0.0
    %3377 = vmatpush1.msra.mxu0 0.0
    %3378 = vmatprep.subr.mxu0 0.0
    %3379 = vmatpush1.msra.mxu0 0.0
    %3380 = vmatprep.subr.mxu0 0.0
    %3381 = vmatpush1.msra.mxu0 0.0
    %3382 = vmatprep.subr.mxu0 0.0
    %3383 = vmatpush1.msra.mxu0 0.0
    %3384 = vmatprep.subr.mxu0 0.0
    %3385 = vmatpush1.msra.mxu0 0.0
    %3386 = vmatprep.subr.mxu0 0.0
    %3387 = vmatpush1.msra.mxu0 0.0
    %3388 = vmatprep.subr.mxu0 0.0
    %3389 = vmatpush1.msra.mxu0 0.0
    %3390 = vmatprep.subr.mxu0 0.0
    %3391 = vmatpush1.msra.mxu0 0.0
    %3392 = vmatprep.subr.mxu0 0.0
    %3393 = vmatpush1.msra.mxu0 0.0
    %3394 = vmatprep.subr.mxu0 0.0
    %3395 = vmatpush1.msra.mxu0 0.0
    %3396 = vmatprep.mubr.f32.mxu0 %v3020
    %3397 = vmatmul.mubr.f32.gmra.mrb[0].mxu0 %v2960
    %v3398 = vpop.f32.mrb[0].mxu0
    %v3399 = vadd.f32 %v3329, %v3398
    %v3400 = vpop.f32.mrb[0].mxu0
    %3401 = vdwg.mxu0
    %v3402 = vld [vmem:[%s37] sm:$0x1]
    %v3403 = vld [vmem:[%s39] sm:$0x1]
    %v3404 = vsel %vm1350, %v3399, 0.0
    %v3405 = vrot.slane %v3404, 4
    %v3406 = vadd.f32 %v3404, %v3405
    %v3407 = vrot.slane %v3406, 2
    %v3408 = vadd.f32 %v3406, %v3407
    %v3409 = vrot.slane %v3408, 1
    %v3410 = vadd.f32 %v3408, %v3409
    %v3411 = vmul.f32 %v3410, %v3171
    %v3412 = vmul.f32 %v3399, %v3399
    %v3413 = vsel %vm1350, %v3412, 0.0
    %v3414 = vrot.slane %v3413, 4
    %v3415 = vadd.f32 %v3413, %v3414
    %v3416 = vrot.slane %v3415, 2
    %v3417 = vadd.f32 %v3415, %v3416
    %v3418 = vrot.slane %v3417, 1
    %v3419 = vadd.f32 %v3417, %v3418
    %v3420 = vmul.f32 %v3419, %v3171
    %v3421 = vmul.f32 %v3411, %v3411
    %v3422 = vsub.f32 %v3420, %v3421
    %v3423 = vmax.f32 %v3422, 0.0
    %v3424 = vadd.f32 %v3423, 1e-05
    %v3425 = vrsqrt.pop %v3424
    %v3426 = vmul.f32 %v3402, %v3425
    %v3428 = vlaneseq
    %v3429 = vshrl.u32 %v3428, 7
    %v3430 = vsub.s32 0, %v3429
    %v3431 = vrot.slane %v3426, %v3430
    %v3433 = vmul.f32 %v3399, %v3431
    %v3434 = vmul.f32 %v3411, %v3426
    %v3435 = vsub.f32 %v3403, %v3434
    %v3437 = vlaneseq
    %v3438 = vshrl.u32 %v3437, 7
    %v3439 = vsub.s32 0, %v3438
    %v3440 = vrot.slane %v3435, %v3439
    %v3442 = vadd.f32 %v3433, %v3440
    %v3443 = vmax.f32 %v3442, 0.0
    %3444 = vst.msk [vmem:[#allocation5] sm:$0x3] %vm1350, %v3204
    %3445 = vst.msk [vmem:[#allocation6] sm:$0x3] %vm1350, %v3443
    %v3446 = vld [vmem:[%s3] sm:$0x3]
    %v3447 = vmul.f32 %v3443, 0.5
    %v3448 = vmul.f32 %v3447, 1.442695
    %v3449 = vpow.pop %v3448
    %v3450 = vmul.f32 %v3446, %v3449
    %v3451 = vadd.f32 %v3450, %v3204
    %v3452 = vld [vmem:[%s41] sm:$0xff]
    %v3454 = vsel %vm1376, %v3451, 0
    %3456 = vmatprep.subr.mxu0 0.0
    %3457 = vmatpush1.msra.mxu0 %v3452
    %3458 = vmatprep.subr.mxu0 0.0
    %3459 = vmatpush1.msra.mxu0 0.0
    %3460 = vmatprep.subr.mxu0 0.0
    %3461 = vmatpush1.msra.mxu0 0.0
    %3462 = vmatprep.subr.mxu0 0.0
    %3463 = vmatpush1.msra.mxu0 0.0
    %3464 = vmatprep.subr.mxu0 0.0
    %3465 = vmatpush1.msra.mxu0 0.0
    %3466 = vmatprep.subr.mxu0 0.0
    %3467 = vmatpush1.msra.mxu0 0.0
    %3468 = vmatprep.subr.mxu0 0.0
    %3469 = vmatpush1.msra.mxu0 0.0
    %3470 = vmatprep.subr.mxu0 0.0
    %3471 = vmatpush1.msra.mxu0 0.0
    %3472 = vmatprep.subr.mxu0 0.0
    %3473 = vmatpush1.msra.mxu0 0.0
    %3474 = vmatprep.subr.mxu0 0.0
    %3475 = vmatpush1.msra.mxu0 0.0
    %3476 = vmatprep.subr.mxu0 0.0
    %3477 = vmatpush1.msra.mxu0 0.0
    %3478 = vmatprep.subr.mxu0 0.0
    %3479 = vmatpush1.msra.mxu0 0.0
    %3480 = vmatprep.subr.mxu0 0.0
    %3481 = vmatpush1.msra.mxu0 0.0
    %3482 = vmatprep.subr.mxu0 0.0
    %3483 = vmatpush1.msra.mxu0 0.0
    %3484 = vmatprep.subr.mxu0 0.0
    %3485 = vmatpush1.msra.mxu0 0.0
    %3486 = vmatprep.subr.mxu0 0.0
    %3487 = vmatpush1.msra.mxu0 0.0
    %3488 = vmatprep.subr.mxu0 0.0
    %3489 = vmatpush1.msra.mxu0 0.0
    %3490 = vmatprep.subr.mxu0 0.0
    %3491 = vmatpush1.msra.mxu0 0.0
    %3492 = vmatprep.subr.mxu0 0.0
    %3493 = vmatpush1.msra.mxu0 0.0
    %3494 = vmatprep.subr.mxu0 0.0
    %3495 = vmatpush1.msra.mxu0 0.0
    %3496 = vmatprep.subr.mxu0 0.0
    %3497 = vmatpush1.msra.mxu0 0.0
    %3498 = vmatprep.subr.mxu0 0.0
    %3499 = vmatpush1.msra.mxu0 0.0
    %3500 = vmatprep.subr.mxu0 0.0
    %3501 = vmatpush1.msra.mxu0 0.0
    %3502 = vmatprep.subr.mxu0 0.0
    %3503 = vmatpush1.msra.mxu0 0.0
    %3504 = vmatprep.subr.mxu0 0.0
    %3505 = vmatpush1.msra.mxu0 0.0
    %3506 = vmatprep.subr.mxu0 0.0
    %3507 = vmatpush1.msra.mxu0 0.0
    %3508 = vmatprep.subr.mxu0 0.0
    %3509 = vmatpush1.msra.mxu0 0.0
    %3510 = vmatprep.subr.mxu0 0.0
    %3511 = vmatpush1.msra.mxu0 0.0
    %3512 = vmatprep.subr.mxu0 0.0
    %3513 = vmatpush1.msra.mxu0 0.0
    %3514 = vmatprep.subr.mxu0 0.0
    %3515 = vmatpush1.msra.mxu0 0.0
    %3516 = vmatprep.subr.mxu0 0.0
    %3517 = vmatpush1.msra.mxu0 0.0
    %3518 = vmatprep.subr.mxu0 0.0
    %3519 = vmatpush1.msra.mxu0 0.0
    %3520 = vmatprep.mubr.f32.mxu0 0.0
    %3521 = vmatmul.mubr.f32.gmra.mrb[0].mxu0 %v3454
    %v3522 = vpop.f32.mrb[0].mxu0
    %v3523 = vadd.f32 0.0, %v3522
    %v3524 = vpop.f32.mrb[0].mxu0
    %3525 = vdwg.mxu0
    %v3526 = vld [vmem:[%s43] sm:$0x1]
    %v3527 = vld [vmem:[%s45] sm:$0x1]
    %v3528 = vld [vmem:[%s47] sm:$0xff]
    %v3529 = vld [vmem:[%s49] sm:$0xff]
    %v3530 = vld [vmem:[%s49 + $0x8] sm:$0xff]
    %v3531 = vld [vmem:[%s49 + $0x10] sm:$0xff]
    %v3532 = vld [vmem:[%s49 + $0x18] sm:$0xff]
    %v3533 = vld [vmem:[%s49 + $0x20] sm:$0xff]
    %v3534 = vld [vmem:[%s49 + $0x28] sm:$0xff]
    %v3535 = vld [vmem:[%s49 + $0x30] sm:$0xff]
    %v3536 = vld [vmem:[%s49 + $0x38] sm:$0xff]
    %v3537 = vld [vmem:[%s49 + $0x40] sm:$0xff]
    %v3538 = vld [vmem:[%s49 + $0x48] sm:$0xff]
    %v3539 = vld [vmem:[%s49 + $0x50] sm:$0xff]
    %v3540 = vld [vmem:[%s49 + $0x58] sm:$0xff]
    %v3541 = vld [vmem:[%s49 + $0x60] sm:$0xff]
    %v3542 = vld [vmem:[%s49 + $0x68] sm:$0xff]
    %v3543 = vld [vmem:[%s49 + $0x70] sm:$0xff]
    %v3544 = vld [vmem:[%s49 + $0x78] sm:$0xff]
    %3545 = vmatprep.subr.mxu0 0.0
    %3546 = vmatpush1.msra.mxu0 %v3529
    %3547 = vmatprep.subr.mxu0 0.0
    %3548 = vmatpush1.msra.mxu0 %v3530
    %3549 = vmatprep.subr.mxu0 0.0
    %3550 = vmatpush1.msra.mxu0 %v3531
    %3551 = vmatprep.subr.mxu0 0.0
    %3552 = vmatpush1.msra.mxu0 %v3532
    %3553 = vmatprep.subr.mxu0 0.0
    %3554 = vmatpush1.msra.mxu0 %v3533
    %3555 = vmatprep.subr.mxu0 0.0
    %3556 = vmatpush1.msra.mxu0 %v3534
    %3557 = vmatprep.subr.mxu0 0.0
    %3558 = vmatpush1.msra.mxu0 %v3535
    %3559 = vmatprep.subr.mxu0 0.0
    %3560 = vmatpush1.msra.mxu0 %v3536
    %3561 = vmatprep.subr.mxu0 0.0
    %3562 = vmatpush1.msra.mxu0 %v3537
    %3563 = vmatprep.subr.mxu0 0.0
    %3564 = vmatpush1.msra.mxu0 %v3538
    %3565 = vmatprep.subr.mxu0 0.0
    %3566 = vmatpush1.msra.mxu0 %v3539
    %3567 = vmatprep.subr.mxu0 0.0
    %3568 = vmatpush1.msra.mxu0 %v3540
    %3569 = vmatprep.subr.mxu0 0.0
    %3570 = vmatpush1.msra.mxu0 %v3541
    %3571 = vmatprep.subr.mxu0 0.0
    %3572 = vmatpush1.msra.mxu0 %v3542
    %3573 = vmatprep.subr.mxu0 0.0
    %3574 = vmatpush1.msra.mxu0 %v3543
    %3575 = vmatprep.subr.mxu0 0.0
    %3576 = vmatpush1.msra.mxu0 %v3544
    %3577 = vmatprep.subr.mxu0 0.0
    %3578 = vmatpush1.msra.mxu0 0.0
    %3579 = vmatprep.subr.mxu0 0.0
    %3580 = vmatpush1.msra.mxu0 0.0
    %3581 = vmatprep.subr.mxu0 0.0
    %3582 = vmatpush1.msra.mxu0 0.0
    %3583 = vmatprep.subr.mxu0 0.0
    %3584 = vmatpush1.msra.mxu0 0.0
    %3585 = vmatprep.subr.mxu0 0.0
    %3586 = vmatpush1.msra.mxu0 0.0
    %3587 = vmatprep.subr.mxu0 0.0
    %3588 = vmatpush1.msra.mxu0 0.0
    %3589 = vmatprep.subr.mxu0 0.0
    %3590 = vmatpush1.msra.mxu0 0.0
    %3591 = vmatprep.subr.mxu0 0.0
    %3592 = vmatpush1.msra.mxu0 0.0
    %3593 = vmatprep.subr.mxu0 0.0
    %3594 = vmatpush1.msra.mxu0 0.0
    %3595 = vmatprep.subr.mxu0 0.0
    %3596 = vmatpush1.msra.mxu0 0.0
    %3597 = vmatprep.subr.mxu0 0.0
    %3598 = vmatpush1.msra.mxu0 0.0
    %3599 = vmatprep.subr.mxu0 0.0
    %3600 = vmatpush1.msra.mxu0 0.0
    %3601 = vmatprep.subr.mxu0 0.0
    %3602 = vmatpush1.msra.mxu0 0.0
    %3603 = vmatprep.subr.mxu0 0.0
    %3604 = vmatpush1.msra.mxu0 0.0
    %3605 = vmatprep.subr.mxu0 0.0
    %3606 = vmatpush1.msra.mxu0 0.0
    %3607 = vmatprep.subr.mxu0 0.0
    %3608 = vmatpush1.msra.mxu0 0.0
    %3609 = vmatprep.mubr.f32.mxu0 0.0
    %3610 = vmatmul.mubr.f32.gmra.mrb[0].mxu0 %v3523
    %v3611 = vpop.f32.mrb[0].mxu0
    %v3612 = vadd.f32 0.0, %v3611
    %v3613 = vpop.f32.mrb[0].mxu0
    %3614 = vdwg.mxu0
    %v3615 = vmul.f32 %v3523, %v3523
    %3616 = vmatprep.subr.mxu0 0.0
    %3617 = vmatpush1.msra.mxu0 %v3529
    %3618 = vmatprep.subr.mxu0 0.0
    %3619 = vmatpush1.msra.mxu0 %v3530
    %3620 = vmatprep.subr.mxu0 0.0
    %3621 = vmatpush1.msra.mxu0 %v3531
    %3622 = vmatprep.subr.mxu0 0.0
    %3623 = vmatpush1.msra.mxu0 %v3532
    %3624 = vmatprep.subr.mxu0 0.0
    %3625 = vmatpush1.msra.mxu0 %v3533
    %3626 = vmatprep.subr.mxu0 0.0
    %3627 = vmatpush1.msra.mxu0 %v3534
    %3628 = vmatprep.subr.mxu0 0.0
    %3629 = vmatpush1.msra.mxu0 %v3535
    %3630 = vmatprep.subr.mxu0 0.0
    %3631 = vmatpush1.msra.mxu0 %v3536
    %3632 = vmatprep.subr.mxu0 0.0
    %3633 = vmatpush1.msra.mxu0 %v3537
    %3634 = vmatprep.subr.mxu0 0.0
    %3635 = vmatpush1.msra.mxu0 %v3538
    %3636 = vmatprep.subr.mxu0 0.0
    %3637 = vmatpush1.msra.mxu0 %v3539
    %3638 = vmatprep.subr.mxu0 0.0
    %3639 = vmatpush1.msra.mxu0 %v3540
    %3640 = vmatprep.subr.mxu0 0.0
    %3641 = vmatpush1.msra.mxu0 %v3541
    %3642 = vmatprep.subr.mxu0 0.0
    %3643 = vmatpush1.msra.mxu0 %v3542
    %3644 = vmatprep.subr.mxu0 0.0
    %3645 = vmatpush1.msra.mxu0 %v3543
    %3646 = vmatprep.subr.mxu0 0.0
    %3647 = vmatpush1.msra.mxu0 %v3544
    %3648 = vmatprep.subr.mxu0 0.0
    %3649 = vmatpush1.msra.mxu0 0.0
    %3650 = vmatprep.subr.mxu0 0.0
    %3651 = vmatpush1.msra.mxu0 0.0
    %3652 = vmatprep.subr.mxu0 0.0
    %3653 = vmatpush1.msra.mxu0 0.0
    %3654 = vmatprep.subr.mxu0 0.0
    %3655 = vmatpush1.msra.mxu0 0.0
    %3656 = vmatprep.subr.mxu0 0.0
    %3657 = vmatpush1.msra.mxu0 0.0
    %3658 = vmatprep.subr.mxu0 0.0
    %3659 = vmatpush1.msra.mxu0 0.0
    %3660 = vmatprep.subr.mxu0 0.0
    %3661 = vmatpush1.msra.mxu0 0.0
    %3662 = vmatprep.subr.mxu0 0.0
    %3663 = vmatpush1.msra.mxu0 0.0
    %3664 = vmatprep.subr.mxu0 0.0
    %3665 = vmatpush1.msra.mxu0 0.0
    %3666 = vmatprep.subr.mxu0 0.0
    %3667 = vmatpush1.msra.mxu0 0.0
    %3668 = vmatprep.subr.mxu0 0.0
    %3669 = vmatpush1.msra.mxu0 0.0
    %3670 = vmatprep.subr.mxu0 0.0
    %3671 = vmatpush1.msra.mxu0 0.0
    %3672 = vmatprep.subr.mxu0 0.0
    %3673 = vmatpush1.msra.mxu0 0.0
    %3674 = vmatprep.subr.mxu0 0.0
    %3675 = vmatpush1.msra.mxu0 0.0
    %3676 = vmatprep.subr.mxu0 0.0
    %3677 = vmatpush1.msra.mxu0 0.0
    %3678 = vmatprep.subr.mxu0 0.0
    %3679 = vmatpush1.msra.mxu0 0.0
    %3680 = vmatprep.mubr.f32.mxu0 0.0
    %3681 = vmatmul.mubr.f32.gmra.mrb[0].mxu0 %v3615
    %v3682 = vpop.f32.mrb[0].mxu0
    %v3683 = vadd.f32 0.0, %v3682
    %v3684 = vpop.f32.mrb[0].mxu0
    %3685 = vdwg.mxu0
    %v3686 = vsel %vm1350, %v3612, 0.0
    %v3687 = vrot.slane %v3686, 4
    %v3688 = vadd.f32 %v3686, %v3687
    %v3689 = vrot.slane %v3688, 2
    %v3690 = vadd.f32 %v3688, %v3689
    %v3691 = vrot.slane %v3690, 1
    %v3692 = vadd.f32 %v3690, %v3691
    %v3693 = vrcp.pop 32.0
    %v3694 = vmul.f32 %v3692, %v3693
    %v3695 = vsel %vm1350, %v3683, 0.0
    %v3696 = vrot.slane %v3695, 4
    %v3697 = vadd.f32 %v3695, %v3696
    %v3698 = vrot.slane %v3697, 2
    %v3699 = vadd.f32 %v3697, %v3698
    %v3700 = vrot.slane %v3699, 1
    %v3701 = vadd.f32 %v3699, %v3700
    %v3702 = vmul.f32 %v3701, %v3693
    %v3703 = vmul.f32 %v3694, %v3694
    %v3704 = vsub.f32 %v3702, %v3703
    %v3705 = vmax.f32 %v3704, 0.0
    %v3706 = vadd.f32 %v3705, 1e-05
    %v3707 = vrsqrt.pop %v3706
    %v3708 = vmul.f32 %v3526, %v3707
    %v3709 = vmul.f32 %v3694, %v3708
    %v3710 = vsub.f32 %v3527, %v3709
    %v3712 = vsel %vm1376, %v3708, 0
    %3714 = vmatprep.subr.mxu0 0.0
    %3715 = vmatpush1.msra.mxu0 %v3528
    %3716 = vmatprep.subr.mxu0 0.0
    %3717 = vmatpush1.msra.mxu0 0.0
    %3718 = vmatprep.subr.mxu0 0.0
    %3719 = vmatpush1.msra.mxu0 0.0
    %3720 = vmatprep.subr.mxu0 0.0
    %3721 = vmatpush1.msra.mxu0 0.0
    %3722 = vmatprep.subr.mxu0 0.0
    %3723 = vmatpush1.msra.mxu0 0.0
    %3724 = vmatprep.subr.mxu0 0.0
    %3725 = vmatpush1.msra.mxu0 0.0
    %3726 = vmatprep.subr.mxu0 0.0
    %3727 = vmatpush1.msra.mxu0 0.0
    %3728 = vmatprep.subr.mxu0 0.0
    %3729 = vmatpush1.msra.mxu0 0.0
    %3730 = vmatprep.subr.mxu0 0.0
    %3731 = vmatpush1.msra.mxu0 0.0
    %3732 = vmatprep.subr.mxu0 0.0
    %3733 = vmatpush1.msra.mxu0 0.0
    %3734 = vmatprep.subr.mxu0 0.0
    %3735 = vmatpush1.msra.mxu0 0.0
    %3736 = vmatprep.subr.mxu0 0.0
    %3737 = vmatpush1.msra.mxu0 0.0
    %3738 = vmatprep.subr.mxu0 0.0
    %3739 = vmatpush1.msra.mxu0 0.0
    %3740 = vmatprep.subr.mxu0 0.0
    %3741 = vmatpush1.msra.mxu0 0.0
    %3742 = vmatprep.subr.mxu0 0.0
    %3743 = vmatpush1.msra.mxu0 0.0
    %3744 = vmatprep.subr.mxu0 0.0
    %3745 = vmatpush1.msra.mxu0 0.0
    %3746 = vmatprep.subr.mxu0 0.0
    %3747 = vmatpush1.msra.mxu0 0.0
    %3748 = vmatprep.subr.mxu0 0.0
    %3749 = vmatpush1.msra.mxu0 0.0
    %3750 = vmatprep.subr.mxu0 0.0
    %3751 = vmatpush1.msra.mxu0 0.0
    %3752 = vmatprep.subr.mxu0 0.0
    %3753 = vmatpush1.msra.mxu0 0.0
    %3754 = vmatprep.subr.mxu0 0.0
    %3755 = vmatpush1.msra.mxu0 0.0
    %3756 = vmatprep.subr.mxu0 0.0
    %3757 = vmatpush1.msra.mxu0 0.0
    %3758 = vmatprep.subr.mxu0 0.0
    %3759 = vmatpush1.msra.mxu0 0.0
    %3760 = vmatprep.subr.mxu0 0.0
    %3761 = vmatpush1.msra.mxu0 0.0
    %3762 = vmatprep.subr.mxu0 0.0
    %3763 = vmatpush1.msra.mxu0 0.0
    %3764 = vmatprep.subr.mxu0 0.0
    %3765 = vmatpush1.msra.mxu0 0.0
    %3766 = vmatprep.subr.mxu0 0.0
    %3767 = vmatpush1.msra.mxu0 0.0
    %3768 = vmatprep.subr.mxu0 0.0
    %3769 = vmatpush1.msra.mxu0 0.0
    %3770 = vmatprep.subr.mxu0 0.0
    %3771 = vmatpush1.msra.mxu0 0.0
    %3772 = vmatprep.subr.mxu0 0.0
    %3773 = vmatpush1.msra.mxu0 0.0
    %3774 = vmatprep.subr.mxu0 0.0
    %3775 = vmatpush1.msra.mxu0 0.0
    %3776 = vmatprep.subr.mxu0 0.0
    %3777 = vmatpush1.msra.mxu0 0.0
    %3778 = vmatprep.mubr.f32.mxu0 0.0
    %3779 = vmatmul.mubr.f32.gmra.mrb[0].mxu0 %v3712
    %v3780 = vpop.f32.mrb[0].mxu0
    %v3781 = vadd.f32 0.0, %v3780
    %v3782 = vpop.f32.mrb[0].mxu0
    %3783 = vdwg.mxu0
    %v3785 = vsel %vm1376, %v3710, 0
    %3787 = vmatprep.subr.mxu0 0.0
    %3788 = vmatpush1.msra.mxu0 %v3528
    %3789 = vmatprep.subr.mxu0 0.0
    %3790 = vmatpush1.msra.mxu0 0.0
    %3791 = vmatprep.subr.mxu0 0.0
    %3792 = vmatpush1.msra.mxu0 0.0
    %3793 = vmatprep.subr.mxu0 0.0
    %3794 = vmatpush1.msra.mxu0 0.0
    %3795 = vmatprep.subr.mxu0 0.0
    %3796 = vmatpush1.msra.mxu0 0.0
    %3797 = vmatprep.subr.mxu0 0.0
    %3798 = vmatpush1.msra.mxu0 0.0
    %3799 = vmatprep.subr.mxu0 0.0
    %3800 = vmatpush1.msra.mxu0 0.0
    %3801 = vmatprep.subr.mxu0 0.0
    %3802 = vmatpush1.msra.mxu0 0.0
    %3803 = vmatprep.subr.mxu0 0.0
    %3804 = vmatpush1.msra.mxu0 0.0
    %3805 = vmatprep.subr.mxu0 0.0
    %3806 = vmatpush1.msra.mxu0 0.0
    %3807 = vmatprep.subr.mxu0 0.0
    %3808 = vmatpush1.msra.mxu0 0.0
    %3809 = vmatprep.subr.mxu0 0.0
    %3810 = vmatpush1.msra.mxu0 0.0
    %3811 = vmatprep.subr.mxu0 0.0
    %3812 = vmatpush1.msra.mxu0 0.0
    %3813 = vmatprep.subr.mxu0 0.0
    %3814 = vmatpush1.msra.mxu0 0.0
    %3815 = vmatprep.subr.mxu0 0.0
    %3816 = vmatpush1.msra.mxu0 0.0
    %3817 = vmatprep.subr.mxu0 0.0
    %3818 = vmatpush1.msra.mxu0 0.0
    %3819 = vmatprep.subr.mxu0 0.0
    %3820 = vmatpush1.msra.mxu0 0.0
    %3821 = vmatprep.subr.mxu0 0.0
    %3822 = vmatpush1.msra.mxu0 0.0
    %3823 = vmatprep.subr.mxu0 0.0
    %3824 = vmatpush1.msra.mxu0 0.0
    %3825 = vmatprep.subr.mxu0 0.0
    %3826 = vmatpush1.msra.mxu0 0.0
    %3827 = vmatprep.subr.mxu0 0.0
    %3828 = vmatpush1.msra.mxu0 0.0
    %3829 = vmatprep.subr.mxu0 0.0
    %3830 = vmatpush1.msra.mxu0 0.0
    %3831 = vmatprep.subr.mxu0 0.0
    %3832 = vmatpush1.msra.mxu0 0.0
    %3833 = vmatprep.subr.mxu0 0.0
    %3834 = vmatpush1.msra.mxu0 0.0
    %3835 = vmatprep.subr.mxu0 0.0
    %3836 = vmatpush1.msra.mxu0 0.0
    %3837 = vmatprep.subr.mxu0 0.0
    %3838 = vmatpush1.msra.mxu0 0.0
    %3839 = vmatprep.subr.mxu0 0.0
    %3840 = vmatpush1.msra.mxu0 0.0
    %3841 = vmatprep.subr.mxu0 0.0
    %3842 = vmatpush1.msra.mxu0 0.0
    %3843 = vmatprep.subr.mxu0 0.0
    %3844 = vmatpush1.msra.mxu0 0.0
    %3845 = vmatprep.subr.mxu0 0.0
    %3846 = vmatpush1.msra.mxu0 0.0
    %3847 = vmatprep.subr.mxu0 0.0
    %3848 = vmatpush1.msra.mxu0 0.0
    %3849 = vmatprep.subr.mxu0 0.0
    %3850 = vmatpush1.msra.mxu0 0.0
    %3851 = vmatprep.mubr.f32.mxu0 0.0
    %3852 = vmatmul.mubr.f32.gmra.mrb[0].mxu0 %v3785
    %v3853 = vpop.f32.mrb[0].mxu0
    %v3854 = vadd.f32 0.0, %v3853
    %v3855 = vpop.f32.mrb[0].mxu0
    %3856 = vdwg.mxu0
    %v3857 = vlaneseq
    %v3858 = vshrl.u32 %v3857, 7
    %v3859 = vsub.s32 0, %v3858
    %v3860 = vrot.slane %v3781, %v3859
    %v3861 = vmul.f32 %v3523, %v3860
    %v3862 = vlaneseq
    %v3863 = vshrl.u32 %v3862, 7
    %v3864 = vsub.s32 0, %v3863
    %v3865 = vrot.slane %v3854, %v3864
    %v3866 = vadd.f32 %v3861, %v3865
    %v3867 = vmax.f32 %v3866, 0.0
    %v3868 = vld [vmem:[%s51] sm:$0xff]
    %v3869 = vld [vmem:[%s51 + $0x8] sm:$0xff]
    %v3870 = vld [vmem:[%s51 + $0x10] sm:$0xff]
    %v3871 = vld [vmem:[%s51 + $0x18] sm:$0xff]
    %v3872 = vld [vmem:[%s51 + $0x20] sm:$0xff]
    %v3873 = vld [vmem:[%s51 + $0x28] sm:$0xff]
    %v3874 = vld [vmem:[%s51 + $0x30] sm:$0xff]
    %v3875 = vld [vmem:[%s51 + $0x38] sm:$0xff]
    %v3876 = vld [vmem:[%s51 + $0x40] sm:$0xff]
    %v3877 = vld [vmem:[%s51 + $0x48] sm:$0xff]
    %v3878 = vld [vmem:[%s51 + $0x50] sm:$0xff]
    %v3879 = vld [vmem:[%s51 + $0x58] sm:$0xff]
    %v3880 = vld [vmem:[%s51 + $0x60] sm:$0xff]
    %v3881 = vld [vmem:[%s51 + $0x68] sm:$0xff]
    %v3882 = vld [vmem:[%s51 + $0x70] sm:$0xff]
    %v3883 = vld [vmem:[%s51 + $0x78] sm:$0xff]
    %v3884 = vld [vmem:[%s51 + $0x80] sm:$0xff]
    %v3885 = vld [vmem:[%s51 + $0x88] sm:$0xff]
    %v3886 = vld [vmem:[%s51 + $0x90] sm:$0xff]
    %v3887 = vld [vmem:[%s51 + $0x98] sm:$0xff]
    %v3888 = vld [vmem:[%s51 + $0xa0] sm:$0xff]
    %v3889 = vld [vmem:[%s51 + $0xa8] sm:$0xff]
    %v3890 = vld [vmem:[%s51 + $0xb0] sm:$0xff]
    %v3891 = vld [vmem:[%s51 + $0xb8] sm:$0xff]
    %v3892 = vld [vmem:[%s51 + $0xc0] sm:$0xff]
    %v3893 = vld [vmem:[%s51 + $0xc8] sm:$0xff]
    %v3894 = vld [vmem:[%s51 + $0xd0] sm:$0xff]
    %v3895 = vld [vmem:[%s51 + $0xd8] sm:$0xff]
    %v3896 = vld [vmem:[%s51 + $0xe0] sm:$0xff]
    %v3897 = vld [vmem:[%s51 + $0xe8] sm:$0xff]
    %v3898 = vld [vmem:[%s51 + $0xf0] sm:$0xff]
    %v3899 = vld [vmem:[%s51 + $0xf8] sm:$0xff]
    %3900 = vmatprep.subr.mxu0 %v3869
    %3901 = vmatpush1.msra.mxu0 %v3868
    %3902 = vmatprep.subr.mxu0 %v3871
    %3903 = vmatpush1.msra.mxu0 %v3870
    %3904 = vmatprep.subr.mxu0 %v3873
    %3905 = vmatpush1.msra.mxu0 %v3872
    %3906 = vmatprep.subr.mxu0 %v3875
    %3907 = vmatpush1.msra.mxu0 %v3874
    %3908 = vmatprep.subr.mxu0 %v3877
    %3909 = vmatpush1.msra.mxu0 %v3876
    %3910 = vmatprep.subr.mxu0 %v3879
    %3911 = vmatpush1.msra.mxu0 %v3878
    %3912 = vmatprep.subr.mxu0 %v3881
    %3913 = vmatpush1.msra.mxu0 %v3880
    %3914 = vmatprep.subr.mxu0 %v3883
    %3915 = vmatpush1.msra.mxu0 %v3882
    %3916 = vmatprep.subr.mxu0 %v3885
    %3917 = vmatpush1.msra.mxu0 %v3884
    %3918 = vmatprep.subr.mxu0 %v3887
    %3919 = vmatpush1.msra.mxu0 %v3886
    %3920 = vmatprep.subr.mxu0 %v3889
    %3921 = vmatpush1.msra.mxu0 %v3888
    %3922 = vmatprep.subr.mxu0 %v3891
    %3923 = vmatpush1.msra.mxu0 %v3890
    %3924 = vmatprep.subr.mxu0 %v3893
    %3925 = vmatpush1.msra.mxu0 %v3892
    %3926 = vmatprep.subr.mxu0 %v3895
    %3927 = vmatpush1.msra.mxu0 %v3894
    %3928 = vmatprep.subr.mxu0 %v3897
    %3929 = vmatpush1.msra.mxu0 %v3896
    %3930 = vmatprep.subr.mxu0 %v3899
    %3931 = vmatpush1.msra.mxu0 %v3898
    %3932 = vmatprep.subr.mxu0 0.0
    %3933 = vmatpush1.msra.mxu0 0.0
    %3934 = vmatprep.subr.mxu0 0.0
    %3935 = vmatpush1.msra.mxu0 0.0
    %3936 = vmatprep.subr.mxu0 0.0
    %3937 = vmatpush1.msra.mxu0 0.0
    %3938 = vmatprep.subr.mxu0 0.0
    %3939 = vmatpush1.msra.mxu0 0.0
    %3940 = vmatprep.subr.mxu0 0.0
    %3941 = vmatpush1.msra.mxu0 0.0
    %3942 = vmatprep.subr.mxu0 0.0
    %3943 = vmatpush1.msra.mxu0 0.0
    %3944 = vmatprep.subr.mxu0 0.0
    %3945 = vmatpush1.msra.mxu0 0.0
    %3946 = vmatprep.subr.mxu0 0.0
    %3947 = vmatpush1.msra.mxu0 0.0
    %3948 = vmatprep.subr.mxu0 0.0
    %3949 = vmatpush1.msra.mxu0 0.0
    %3950 = vmatprep.subr.mxu0 0.0
    %3951 = vmatpush1.msra.mxu0 0.0
    %3952 = vmatprep.subr.mxu0 0.0
    %3953 = vmatpush1.msra.mxu0 0.0
    %3954 = vmatprep.subr.mxu0 0.0
    %3955 = vmatpush1.msra.mxu0 0.0
    %3956 = vmatprep.subr.mxu0 0.0
    %3957 = vmatpush1.msra.mxu0 0.0
    %3958 = vmatprep.subr.mxu0 0.0
    %3959 = vmatpush1.msra.mxu0 0.0
    %3960 = vmatprep.subr.mxu0 0.0
    %3961 = vmatpush1.msra.mxu0 0.0
    %3962 = vmatprep.subr.mxu0 0.0
    %3963 = vmatpush1.msra.mxu0 0.0
    %3964 = vmatprep.mubr.f32.mxu0 0.0
    %3965 = vmatmul.mubr.f32.gmra.mrb[0].mxu0 %v3867
    %v3966 = vpop.f32.mrb[0].mxu0
    %v3967 = vadd.f32 0.0, %v3966
    %v3968 = vpop.f32.mrb[0].mxu0
    %v3969 = vadd.f32 0.0, %v3968
    %3970 = vdwg.mxu0
    %v3971 = vld [vmem:[%s53] sm:$0x1]
    %v3972 = vld [vmem:[%s55] sm:$0x1]
    %v3973 = vld [vmem:[%s57] sm:$0xff]
    %v3974 = vld [vmem:[%s59] sm:$0xff]
    %v3975 = vld [vmem:[%s59 + $0x8] sm:$0xff]
    %v3976 = vld [vmem:[%s59 + $0x10] sm:$0xff]
    %v3977 = vld [vmem:[%s59 + $0x18] sm:$0xff]
    %v3978 = vld [vmem:[%s59 + $0x20] sm:$0xff]
    %v3979 = vld [vmem:[%s59 + $0x28] sm:$0xff]
    %v3980 = vld [vmem:[%s59 + $0x30] sm:$0xff]
    %v3981 = vld [vmem:[%s59 + $0x38] sm:$0xff]
    %v3982 = vld [vmem:[%s59 + $0x40] sm:$0xff]
    %v3983 = vld [vmem:[%s59 + $0x48] sm:$0xff]
    %v3984 = vld [vmem:[%s59 + $0x50] sm:$0xff]
    %v3985 = vld [vmem:[%s59 + $0x58] sm:$0xff]
    %v3986 = vld [vmem:[%s59 + $0x60] sm:$0xff]
    %v3987 = vld [vmem:[%s59 + $0x68] sm:$0xff]
    %v3988 = vld [vmem:[%s59 + $0x70] sm:$0xff]
    %v3989 = vld [vmem:[%s59 + $0x78] sm:$0xff]
    %v3990 = vld [vmem:[%s59 + $0x80] sm:$0xff]
    %v3991 = vld [vmem:[%s59 + $0x88] sm:$0xff]
    %v3992 = vld [vmem:[%s59 + $0x90] sm:$0xff]
    %v3993 = vld [vmem:[%s59 + $0x98] sm:$0xff]
    %v3994 = vld [vmem:[%s59 + $0xa0] sm:$0xff]
    %v3995 = vld [vmem:[%s59 + $0xa8] sm:$0xff]
    %v3996 = vld [vmem:[%s59 + $0xb0] sm:$0xff]
    %v3997 = vld [vmem:[%s59 + $0xb8] sm:$0xff]
    %v3998 = vld [vmem:[%s59 + $0xc0] sm:$0xff]
    %v3999 = vld [vmem:[%s59 + $0xc8] sm:$0xff]
    %v4000 = vld [vmem:[%s59 + $0xd0] sm:$0xff]
    %v4001 = vld [vmem:[%s59 + $0xd8] sm:$0xff]
    %v4002 = vld [vmem:[%s59 + $0xe0] sm:$0xff]
    %v4003 = vld [vmem:[%s59 + $0xe8] sm:$0xff]
    %v4004 = vld [vmem:[%s59 + $0xf0] sm:$0xff]
    %v4005 = vld [vmem:[%s59 + $0xf8] sm:$0xff]
    %4006 = vmatprep.subr.mxu0 0.0
    %4007 = vmatpush1.msra.mxu0 %v3974
    %4008 = vmatprep.subr.mxu0 0.0
    %4009 = vmatpush1.msra.mxu0 %v3975
    %4010 = vmatprep.subr.mxu0 0.0
    %4011 = vmatpush1.msra.mxu0 %v3976
    %4012 = vmatprep.subr.mxu0 0.0
    %4013 = vmatpush1.msra.mxu0 %v3977
    %4014 = vmatprep.subr.mxu0 0.0
    %4015 = vmatpush1.msra.mxu0 %v3978
    %4016 = vmatprep.subr.mxu0 0.0
    %4017 = vmatpush1.msra.mxu0 %v3979
    %4018 = vmatprep.subr.mxu0 0.0
    %4019 = vmatpush1.msra.mxu0 %v3980
    %4020 = vmatprep.subr.mxu0 0.0
    %4021 = vmatpush1.msra.mxu0 %v3981
    %4022 = vmatprep.subr.mxu0 0.0
    %4023 = vmatpush1.msra.mxu0 %v3982
    %4024 = vmatprep.subr.mxu0 0.0
    %4025 = vmatpush1.msra.mxu0 %v3983
    %4026 = vmatprep.subr.mxu0 0.0
    %4027 = vmatpush1.msra.mxu0 %v3984
    %4028 = vmatprep.subr.mxu0 0.0
    %4029 = vmatpush1.msra.mxu0 %v3985
    %4030 = vmatprep.subr.mxu0 0.0
    %4031 = vmatpush1.msra.mxu0 %v3986
    %4032 = vmatprep.subr.mxu0 0.0
    %4033 = vmatpush1.msra.mxu0 %v3987
    %4034 = vmatprep.subr.mxu0 0.0
    %4035 = vmatpush1.msra.mxu0 %v3988
    %4036 = vmatprep.subr.mxu0 0.0
    %4037 = vmatpush1.msra.mxu0 %v3989
    %4038 = vmatprep.subr.mxu0 0.0
    %4039 = vmatpush1.msra.mxu0 %v3990
    %4040 = vmatprep.subr.mxu0 0.0
    %4041 = vmatpush1.msra.mxu0 %v3991
    %4042 = vmatprep.subr.mxu0 0.0
    %4043 = vmatpush1.msra.mxu0 %v3992
    %4044 = vmatprep.subr.mxu0 0.0
    %4045 = vmatpush1.msra.mxu0 %v3993
    %4046 = vmatprep.subr.mxu0 0.0
    %4047 = vmatpush1.msra.mxu0 %v3994
    %4048 = vmatprep.subr.mxu0 0.0
    %4049 = vmatpush1.msra.mxu0 %v3995
    %4050 = vmatprep.subr.mxu0 0.0
    %4051 = vmatpush1.msra.mxu0 %v3996
    %4052 = vmatprep.subr.mxu0 0.0
    %4053 = vmatpush1.msra.mxu0 %v3997
    %4054 = vmatprep.subr.mxu0 0.0
    %4055 = vmatpush1.msra.mxu0 %v3998
    %4056 = vmatprep.subr.mxu0 0.0
    %4057 = vmatpush1.msra.mxu0 %v3999
    %4058 = vmatprep.subr.mxu0 0.0
    %4059 = vmatpush1.msra.mxu0 %v4000
    %4060 = vmatprep.subr.mxu0 0.0
    %4061 = vmatpush1.msra.mxu0 %v4001
    %4062 = vmatprep.subr.mxu0 0.0
    %4063 = vmatpush1.msra.mxu0 %v4002
    %4064 = vmatprep.subr.mxu0 0.0
    %4065 = vmatpush1.msra.mxu0 %v4003
    %4066 = vmatprep.subr.mxu0 0.0
    %4067 = vmatpush1.msra.mxu0 %v4004
    %4068 = vmatprep.subr.mxu0 0.0
    %4069 = vmatpush1.msra.mxu0 %v4005
    %4070 = vmatprep.mubr.f32.mxu0 %v3969
    %4071 = vmatmul.mubr.f32.gmra.mrb[0].mxu0 %v3967
    %v4072 = vpop.f32.mrb[0].mxu0
    %v4073 = vadd.f32 0.0, %v4072
    %v4074 = vpop.f32.mrb[0].mxu0
    %4075 = vdwg.mxu0
    %v4076 = vmul.f32 %v3967, %v3967
    %v4077 = vmul.f32 %v3969, %v3969
    %4078 = vmatprep.subr.mxu0 0.0
    %4079 = vmatpush1.msra.mxu0 %v3974
    %4080 = vmatprep.subr.mxu0 0.0
    %4081 = vmatpush1.msra.mxu0 %v3975
    %4082 = vmatprep.subr.mxu0 0.0
    %4083 = vmatpush1.msra.mxu0 %v3976
    %4084 = vmatprep.subr.mxu0 0.0
    %4085 = vmatpush1.msra.mxu0 %v3977
    %4086 = vmatprep.subr.mxu0 0.0
    %4087 = vmatpush1.msra.mxu0 %v3978
    %4088 = vmatprep.subr.mxu0 0.0
    %4089 = vmatpush1.msra.mxu0 %v3979
    %4090 = vmatprep.subr.mxu0 0.0
    %4091 = vmatpush1.msra.mxu0 %v3980
    %4092 = vmatprep.subr.mxu0 0.0
    %4093 = vmatpush1.msra.mxu0 %v3981
    %4094 = vmatprep.subr.mxu0 0.0
    %4095 = vmatpush1.msra.mxu0 %v3982
    %4096 = vmatprep.subr.mxu0 0.0
    %4097 = vmatpush1.msra.mxu0 %v3983
    %4098 = vmatprep.subr.mxu0 0.0
    %4099 = vmatpush1.msra.mxu0 %v3984
    %4100 = vmatprep.subr.mxu0 0.0
    %4101 = vmatpush1.msra.mxu0 %v3985
    %4102 = vmatprep.subr.mxu0 0.0
    %4103 = vmatpush1.msra.mxu0 %v3986
    %4104 = vmatprep.subr.mxu0 0.0
    %4105 = vmatpush1.msra.mxu0 %v3987
    %4106 = vmatprep.subr.mxu0 0.0
    %4107 = vmatpush1.msra.mxu0 %v3988
    %4108 = vmatprep.subr.mxu0 0.0
    %4109 = vmatpush1.msra.mxu0 %v3989
    %4110 = vmatprep.subr.mxu0 0.0
    %4111 = vmatpush1.msra.mxu0 %v3990
    %4112 = vmatprep.subr.mxu0 0.0
    %4113 = vmatpush1.msra.mxu0 %v3991
    %4114 = vmatprep.subr.mxu0 0.0
    %4115 = vmatpush1.msra.mxu0 %v3992
    %4116 = vmatprep.subr.mxu0 0.0
    %4117 = vmatpush1.msra.mxu0 %v3993
    %4118 = vmatprep.subr.mxu0 0.0
    %4119 = vmatpush1.msra.mxu0 %v3994
    %4120 = vmatprep.subr.mxu0 0.0
    %4121 = vmatpush1.msra.mxu0 %v3995
    %4122 = vmatprep.subr.mxu0 0.0
    %4123 = vmatpush1.msra.mxu0 %v3996
    %4124 = vmatprep.subr.mxu0 0.0
    %4125 = vmatpush1.msra.mxu0 %v3997
    %4126 = vmatprep.subr.mxu0 0.0
    %4127 = vmatpush1.msra.mxu0 %v3998
    %4128 = vmatprep.subr.mxu0 0.0
    %4129 = vmatpush1.msra.mxu0 %v3999
    %4130 = vmatprep.subr.mxu0 0.0
    %4131 = vmatpush1.msra.mxu0 %v4000
    %4132 = vmatprep.subr.mxu0 0.0
    %4133 = vmatpush1.msra.mxu0 %v4001
    %4134 = vmatprep.subr.mxu0 0.0
    %4135 = vmatpush1.msra.mxu0 %v4002
    %4136 = vmatprep.subr.mxu0 0.0
    %4137 = vmatpush1.msra.mxu0 %v4003
    %4138 = vmatprep.subr.mxu0 0.0
    %4139 = vmatpush1.msra.mxu0 %v4004
    %4140 = vmatprep.subr.mxu0 0.0
    %4141 = vmatpush1.msra.mxu0 %v4005
    %4142 = vmatprep.mubr.f32.mxu0 %v4077
    %4143 = vmatmul.mubr.f32.gmra.mrb[0].mxu0 %v4076
    %v4144 = vpop.f32.mrb[0].mxu0
    %v4145 = vadd.f32 0.0, %v4144
    %v4146 = vpop.f32.mrb[0].mxu0
    %4147 = vdwg.mxu0
    %vm4148 = vcmask 25600
    %v4149 = vsel %vm4148, %v4073, 0.0
    %v4150 = vrot.slane %v4149, 4
    %v4151 = vadd.f32 %v4149, %v4150
    %v4152 = vrot.slane %v4151, 2
    %v4153 = vadd.f32 %v4151, %v4152
    %v4154 = vrot.slane %v4153, 1
    %v4155 = vadd.f32 %v4153, %v4154
    %v4156 = vmul.f32 %v4155, %v1358
    %v4157 = vsel %vm4148, %v4145, 0.0
    %v4158 = vrot.slane %v4157, 4
    %v4159 = vadd.f32 %v4157, %v4158
    %v4160 = vrot.slane %v4159, 2
    %v4161 = vadd.f32 %v4159, %v4160
    %v4162 = vrot.slane %v4161, 1
    %v4163 = vadd.f32 %v4161, %v4162
    %v4164 = vmul.f32 %v4163, %v1358
    %v4165 = vmul.f32 %v4156, %v4156
    %v4166 = vsub.f32 %v4164, %v4165
    %v4167 = vmax.f32 %v4166, 0.0
    %v4168 = vadd.f32 %v4167, 1e-05
    %v4169 = vrsqrt.pop %v4168
    %v4170 = vmul.f32 %v3971, %v4169
    %v4171 = vmul.f32 %v4156, %v4170
    %v4172 = vsub.f32 %v3972, %v4171
    %v4174 = vcombine.high %v3973, %v3973
    %vm4175 = vcmask 31744
    %v4177 = vsel %vm4175, %v4170, 0
    %vm4179 = vcmask 1043456
    %v4180 = vsel %vm4179, %v3973, 0
    %v4182 = vsel %vm4179, %v4174, 0
    %4184 = vmatprep.subr.mxu0 %v4182
    %4185 = vmatpush1.msra.mxu0 %v4180
    %4186 = vmatprep.subr.mxu0 0.0
    %4187 = vmatpush1.msra.mxu0 0.0
    %4188 = vmatprep.subr.mxu0 0.0
    %4189 = vmatpush1.msra.mxu0 0.0
    %4190 = vmatprep.subr.mxu0 0.0
    %4191 = vmatpush1.msra.mxu0 0.0
    %4192 = vmatprep.subr.mxu0 0.0
    %4193 = vmatpush1.msra.mxu0 0.0
    %4194 = vmatprep.subr.mxu0 0.0
    %4195 = vmatpush1.msra.mxu0 0.0
    %4196 = vmatprep.subr.mxu0 0.0
    %4197 = vmatpush1.msra.mxu0 0.0
    %4198 = vmatprep.subr.mxu0 0.0
    %4199 = vmatpush1.msra.mxu0 0.0
    %4200 = vmatprep.subr.mxu0 0.0
    %4201 = vmatpush1.msra.mxu0 0.0
    %4202 = vmatprep.subr.mxu0 0.0
    %4203 = vmatpush1.msra.mxu0 0.0
    %4204 = vmatprep.subr.mxu0 0.0
    %4205 = vmatpush1.msra.mxu0 0.0
    %4206 = vmatprep.subr.mxu0 0.0
    %4207 = vmatpush1.msra.mxu0 0.0
    %4208 = vmatprep.subr.mxu0 0.0
    %4209 = vmatpush1.msra.mxu0 0.0
    %4210 = vmatprep.subr.mxu0 0.0
    %4211 = vmatpush1.msra.mxu0 0.0
    %4212 = vmatprep.subr.mxu0 0.0
    %4213 = vmatpush1.msra.mxu0 0.0
    %4214 = vmatprep.subr.mxu0 0.0
    %4215 = vmatpush1.msra.mxu0 0.0
    %4216 = vmatprep.subr.mxu0 0.0
    %4217 = vmatpush1.msra.mxu0 0.0
    %4218 = vmatprep.subr.mxu0 0.0
    %4219 = vmatpush1.msra.mxu0 0.0
    %4220 = vmatprep.subr.mxu0 0.0
    %4221 = vmatpush1.msra.mxu0 0.0
    %4222 = vmatprep.subr.mxu0 0.0
    %4223 = vmatpush1.msra.mxu0 0.0
    %4224 = vmatprep.subr.mxu0 0.0
    %4225 = vmatpush1.msra.mxu0 0.0
    %4226 = vmatprep.subr.mxu0 0.0
    %4227 = vmatpush1.msra.mxu0 0.0
    %4228 = vmatprep.subr.mxu0 0.0
    %4229 = vmatpush1.msra.mxu0 0.0
    %4230 = vmatprep.subr.mxu0 0.0
    %4231 = vmatpush1.msra.mxu0 0.0
    %4232 = vmatprep.subr.mxu0 0.0
    %4233 = vmatpush1.msra.mxu0 0.0
    %4234 = vmatprep.subr.mxu0 0.0
    %4235 = vmatpush1.msra.mxu0 0.0
    %4236 = vmatprep.subr.mxu0 0.0
    %4237 = vmatpush1.msra.mxu0 0.0
    %4238 = vmatprep.subr.mxu0 0.0
    %4239 = vmatpush1.msra.mxu0 0.0
    %4240 = vmatprep.subr.mxu0 0.0
    %4241 = vmatpush1.msra.mxu0 0.0
    %4242 = vmatprep.subr.mxu0 0.0
    %4243 = vmatpush1.msra.mxu0 0.0
    %4244 = vmatprep.subr.mxu0 0.0
    %4245 = vmatpush1.msra.mxu0 0.0
    %4246 = vmatprep.subr.mxu0 0.0
    %4247 = vmatpush1.msra.mxu0 0.0
    %4248 = vmatprep.mubr.f32.mxu0 0.0
    %4249 = vmatmul.mubr.f32.gmra.mrb[0].mxu0 %v4177
    %v4250 = vpop.f32.mrb[0].mxu0
    %v4251 = vadd.f32 0.0, %v4250
    %v4252 = vpop.f32.mrb[0].mxu0
    %v4253 = vadd.f32 0.0, %v4252
    %4254 = vdwg.mxu0
    %v4256 = vsel %vm4175, %v4172, 0
    %4258 = vmatprep.subr.mxu0 %v4182
    %4259 = vmatpush1.msra.mxu0 %v4180
    %4260 = vmatprep.subr.mxu0 0.0
    %4261 = vmatpush1.msra.mxu0 0.0
    %4262 = vmatprep.subr.mxu0 0.0
    %4263 = vmatpush1.msra.mxu0 0.0
    %4264 = vmatprep.subr.mxu0 0.0
    %4265 = vmatpush1.msra.mxu0 0.0
    %4266 = vmatprep.subr.mxu0 0.0
    %4267 = vmatpush1.msra.mxu0 0.0
    %4268 = vmatprep.subr.mxu0 0.0
    %4269 = vmatpush1.msra.mxu0 0.0
    %4270 = vmatprep.subr.mxu0 0.0
    %4271 = vmatpush1.msra.mxu0 0.0
    %4272 = vmatprep.subr.mxu0 0.0
    %4273 = vmatpush1.msra.mxu0 0.0
    %4274 = vmatprep.subr.mxu0 0.0
    %4275 = vmatpush1.msra.mxu0 0.0
    %4276 = vmatprep.subr.mxu0 0.0
    %4277 = vmatpush1.msra.mxu0 0.0
    %4278 = vmatprep.subr.mxu0 0.0
    %4279 = vmatpush1.msra.mxu0 0.0
    %4280 = vmatprep.subr.mxu0 0.0
    %4281 = vmatpush1.msra.mxu0 0.0
    %4282 = vmatprep.subr.mxu0 0.0
    %4283 = vmatpush1.msra.mxu0 0.0
    %4284 = vmatprep.subr.mxu0 0.0
    %4285 = vmatpush1.msra.mxu0 0.0
    %4286 = vmatprep.subr.mxu0 0.0
    %4287 = vmatpush1.msra.mxu0 0.0
    %4288 = vmatprep.subr.mxu0 0.0
    %4289 = vmatpush1.msra.mxu0 0.0
    %4290 = vmatprep.subr.mxu0 0.0
    %4291 = vmatpush1.msra.mxu0 0.0
    %4292 = vmatprep.subr.mxu0 0.0
    %4293 = vmatpush1.msra.mxu0 0.0
    %4294 = vmatprep.subr.mxu0 0.0
    %4295 = vmatpush1.msra.mxu0 0.0
    %4296 = vmatprep.subr.mxu0 0.0
    %4297 = vmatpush1.msra.mxu0 0.0
    %4298 = vmatprep.subr.mxu0 0.0
    %4299 = vmatpush1.msra.mxu0 0.0
    %4300 = vmatprep.subr.mxu0 0.0
    %4301 = vmatpush1.msra.mxu0 0.0
    %4302 = vmatprep.subr.mxu0 0.0
    %4303 = vmatpush1.msra.mxu0 0.0
    %4304 = vmatprep.subr.mxu0 0.0
    %4305 = vmatpush1.msra.mxu0 0.0
    %4306 = vmatprep.subr.mxu0 0.0
    %4307 = vmatpush1.msra.mxu0 0.0
    %4308 = vmatprep.subr.mxu0 0.0
    %4309 = vmatpush1.msra.mxu0 0.0
    %4310 = vmatprep.subr.mxu0 0.0
    %4311 = vmatpush1.msra.mxu0 0.0
    %4312 = vmatprep.subr.mxu0 0.0
    %4313 = vmatpush1.msra.mxu0 0.0
    %4314 = vmatprep.subr.mxu0 0.0
    %4315 = vmatpush1.msra.mxu0 0.0
    %4316 = vmatprep.subr.mxu0 0.0
    %4317 = vmatpush1.msra.mxu0 0.0
    %4318 = vmatprep.subr.mxu0 0.0
    %4319 = vmatpush1.msra.mxu0 0.0
    %4320 = vmatprep.subr.mxu0 0.0
    %4321 = vmatpush1.msra.mxu0 0.0
    %4322 = vmatprep.mubr.f32.mxu0 0.0
    %4323 = vmatmul.mubr.f32.gmra.mrb[0].mxu0 %v4256
    %v4324 = vpop.f32.mrb[0].mxu0
    %v4325 = vadd.f32 0.0, %v4324
    %v4326 = vpop.f32.mrb[0].mxu0
    %v4327 = vadd.f32 0.0, %v4326
    %4328 = vdwg.mxu0
    %v4329 = vlaneseq
    %v4330 = vshrl.u32 %v4329, 7
    %v4331 = vsub.s32 0, %v4330
    %v4332 = vrot.slane %v4251, %v4331
    %v4333 = vlaneseq
    %v4334 = vshrl.u32 %v4333, 7
    %v4335 = vsub.s32 0, %v4334
    %v4336 = vrot.slane %v4253, %v4335
    %v4337 = vmul.f32 %v3967, %v4332
    %v4338 = vmul.f32 %v3969, %v4336
    %v4339 = vlaneseq
    %v4340 = vshrl.u32 %v4339, 7
    %v4341 = vsub.s32 0, %v4340
    %v4342 = vrot.slane %v4325, %v4341
    %v4343 = vlaneseq
    %v4344 = vshrl.u32 %v4343, 7
    %v4345 = vsub.s32 0, %v4344
    %v4346 = vrot.slane %v4327, %v4345
    %v4347 = vadd.f32 %v4337, %v4342
    %v4348 = vadd.f32 %v4338, %v4346
    %v4349 = vmax.f32 %v4347, 0.0
    %v4350 = vmax.f32 %v4348, 0.0
    %v4351 = vld [vmem:[#allocation2] sm:$0xff]
    %v4352 = vld [vmem:[#allocation2 + $0x8] sm:$0xff]
    %v4353 = vld [vmem:[#allocation2 + $0x10] sm:$0xff]
    %v4354 = vld [vmem:[#allocation2 + $0x18] sm:$0xff]
    %v4355 = vld [vmem:[#allocation2 + $0x20] sm:$0xff]
    %v4356 = vld [vmem:[#allocation2 + $0x28] sm:$0xff]
    %v4357 = vld [vmem:[#allocation2 + $0x30] sm:$0xff]
    %v4358 = vld [vmem:[#allocation2 + $0x38] sm:$0xff]
    %v4359 = vld [vmem:[#allocation2 + $0x40] sm:$0xff]
    %v4360 = vld [vmem:[#allocation2 + $0x48] sm:$0xff]
    %v4361 = vld [vmem:[#allocation2 + $0x50] sm:$0xff]
    %v4362 = vld [vmem:[#allocation2 + $0x58] sm:$0xff]
    %v4363 = vld [vmem:[#allocation2 + $0x60] sm:$0xff]
    %v4364 = vld [vmem:[#allocation2 + $0x68] sm:$0xff]
    %v4365 = vld [vmem:[#allocation2 + $0x70] sm:$0xff]
    %v4366 = vld [vmem:[#allocation2 + $0x78] sm:$0xff]
    %v4367 = vld [vmem:[#allocation2 + $0x80] sm:$0xff]
    %v4368 = vld [vmem:[#allocation2 + $0x88] sm:$0xff]
    %v4369 = vld [vmem:[#allocation2 + $0x90] sm:$0xff]
    %v4370 = vld [vmem:[#allocation2 + $0x98] sm:$0xff]
    %v4371 = vld [vmem:[#allocation2 + $0xa0] sm:$0xff]
    %v4372 = vld [vmem:[#allocation2 + $0xa8] sm:$0xff]
    %v4373 = vld [vmem:[#allocation2 + $0xb0] sm:$0xff]
    %v4374 = vld [vmem:[#allocation2 + $0xb8] sm:$0xff]
    %v4375 = vld [vmem:[#allocation2 + $0xc0] sm:$0xff]
    %v4376 = vld [vmem:[#allocation2 + $0xc8] sm:$0xff]
    %v4377 = vld [vmem:[#allocation2 + $0xd0] sm:$0xff]
    %v4378 = vld [vmem:[#allocation2 + $0xd8] sm:$0xff]
    %v4379 = vld [vmem:[#allocation2 + $0xe0] sm:$0xff]
    %v4380 = vld [vmem:[#allocation2 + $0xe8] sm:$0xff]
    %v4381 = vld [vmem:[#allocation2 + $0xf0] sm:$0xff]
    %v4382 = vld [vmem:[#allocation2 + $0xf8] sm:$0xff]
    %v4383 = vld [vmem:[#allocation2 + $0x100] sm:$0xff]
    %v4384 = vld [vmem:[#allocation2 + $0x108] sm:$0xff]
    %v4385 = vld [vmem:[#allocation2 + $0x110] sm:$0xff]
    %v4386 = vld [vmem:[#allocation2 + $0x118] sm:$0xff]
    %v4387 = vld [vmem:[#allocation2 + $0x120] sm:$0xff]
    %v4388 = vld [vmem:[#allocation2 + $0x128] sm:$0xff]
    %v4389 = vld [vmem:[#allocation2 + $0x130] sm:$0xff]
    %v4390 = vld [vmem:[#allocation2 + $0x138] sm:$0xff]
    %v4391 = vld [vmem:[#allocation2 + $0x140] sm:$0xff]
    %v4392 = vld [vmem:[#allocation2 + $0x148] sm:$0xff]
    %v4393 = vld [vmem:[#allocation2 + $0x150] sm:$0xff]
    %v4394 = vld [vmem:[#allocation2 + $0x158] sm:$0xff]
    %v4395 = vld [vmem:[#allocation2 + $0x160] sm:$0xff]
    %v4396 = vld [vmem:[#allocation2 + $0x168] sm:$0xff]
    %v4397 = vld [vmem:[#allocation2 + $0x170] sm:$0xff]
    %v4398 = vld [vmem:[#allocation2 + $0x178] sm:$0xff]
    %v4399 = vld [vmem:[#allocation2 + $0x180] sm:$0xff]
    %v4400 = vld [vmem:[#allocation2 + $0x188] sm:$0xff]
    %v4401 = vld [vmem:[#allocation2 + $0x190] sm:$0xff]
    %v4402 = vld [vmem:[#allocation2 + $0x198] sm:$0xff]
    %v4403 = vld [vmem:[#allocation2 + $0x1a0] sm:$0xff]
    %v4404 = vld [vmem:[#allocation2 + $0x1a8] sm:$0xff]
    %v4405 = vld [vmem:[#allocation2 + $0x1b0] sm:$0xff]
    %v4406 = vld [vmem:[#allocation2 + $0x1b8] sm:$0xff]
    %v4407 = vld [vmem:[#allocation2 + $0x1c0] sm:$0xff]
    %v4408 = vld [vmem:[#allocation2 + $0x1c8] sm:$0xff]
    %v4409 = vld [vmem:[#allocation2 + $0x1d0] sm:$0xff]
    %v4410 = vld [vmem:[#allocation2 + $0x1d8] sm:$0xff]
    %v4411 = vld [vmem:[#allocation2 + $0x1e0] sm:$0xff]
    %v4412 = vld [vmem:[#allocation2 + $0x1e8] sm:$0xff]
    %v4413 = vld [vmem:[#allocation2 + $0x1f0] sm:$0xff]
    %v4414 = vld [vmem:[#allocation2 + $0x1f8] sm:$0xff]
    %v4415 = vld [vmem:[#allocation2 + $0x200] sm:$0xff]
    %v4416 = vld [vmem:[#allocation2 + $0x208] sm:$0xff]
    %v4417 = vld [vmem:[#allocation2 + $0x210] sm:$0xff]
    %v4418 = vld [vmem:[#allocation2 + $0x218] sm:$0xff]
    %v4419 = vld [vmem:[#allocation2 + $0x220] sm:$0xff]
    %v4420 = vld [vmem:[#allocation2 + $0x228] sm:$0xff]
    %v4421 = vld [vmem:[#allocation2 + $0x230] sm:$0xff]
    %v4422 = vld [vmem:[#allocation2 + $0x238] sm:$0xff]
    %v4423 = vld [vmem:[#allocation2 + $0x240] sm:$0xff]
    %v4424 = vld [vmem:[#allocation2 + $0x248] sm:$0xff]
    %v4425 = vld [vmem:[#allocation2 + $0x250] sm:$0xff]
    %v4426 = vld [vmem:[#allocation2 + $0x258] sm:$0xff]
    %v4427 = vld [vmem:[#allocation2 + $0x260] sm:$0xff]
    %v4428 = vld [vmem:[#allocation2 + $0x268] sm:$0xff]
    %v4429 = vld [vmem:[#allocation2 + $0x270] sm:$0xff]
    %v4430 = vld [vmem:[#allocation2 + $0x278] sm:$0xff]
    %v4431 = vld [vmem:[#allocation2 + $0x280] sm:$0xff]
    %v4432 = vld [vmem:[#allocation2 + $0x288] sm:$0xff]
    %v4433 = vld [vmem:[#allocation2 + $0x290] sm:$0xff]
    %v4434 = vld [vmem:[#allocation2 + $0x298] sm:$0xff]
    %v4435 = vld [vmem:[#allocation2 + $0x2a0] sm:$0xff]
    %v4436 = vld [vmem:[#allocation2 + $0x2a8] sm:$0xff]
    %v4437 = vld [vmem:[#allocation2 + $0x2b0] sm:$0xff]
    %v4438 = vld [vmem:[#allocation2 + $0x2b8] sm:$0xff]
    %v4439 = vld [vmem:[#allocation2 + $0x2c0] sm:$0xff]
    %v4440 = vld [vmem:[#allocation2 + $0x2c8] sm:$0xff]
    %v4441 = vld [vmem:[#allocation2 + $0x2d0] sm:$0xff]
    %v4442 = vld [vmem:[#allocation2 + $0x2d8] sm:$0xff]
    %v4443 = vld [vmem:[#allocation2 + $0x2e0] sm:$0xff]
    %v4444 = vld [vmem:[#allocation2 + $0x2e8] sm:$0xff]
    %v4445 = vld [vmem:[#allocation2 + $0x2f0] sm:$0xff]
    %v4446 = vld [vmem:[#allocation2 + $0x2f8] sm:$0xff]
    %v4447 = vld [vmem:[#allocation2 + $0x300] sm:$0xff]
    %v4448 = vld [vmem:[#allocation2 + $0x308] sm:$0xff]
    %v4449 = vld [vmem:[#allocation2 + $0x310] sm:$0xff]
    %v4450 = vld [vmem:[#allocation2 + $0x318] sm:$0xff]
    %v4451 = vld [vmem:[#allocation2 + $0x320] sm:$0xff]
    %v4452 = vld [vmem:[#allocation2 + $0x328] sm:$0xff]
    %v4453 = vld [vmem:[#allocation2 + $0x330] sm:$0xff]
    %v4454 = vld [vmem:[#allocation2 + $0x338] sm:$0xff]
    %v4455 = vld [vmem:[#allocation2 + $0x340] sm:$0xff]
    %v4456 = vld [vmem:[#allocation2 + $0x348] sm:$0xff]
    %v4457 = vld [vmem:[#allocation2 + $0x350] sm:$0xff]
    %v4458 = vld [vmem:[#allocation2 + $0x358] sm:$0xff]
    %v4459 = vld [vmem:[#allocation2 + $0x360] sm:$0xff]
    %v4460 = vld [vmem:[#allocation2 + $0x368] sm:$0xff]
    %v4461 = vld [vmem:[#allocation2 + $0x370] sm:$0xff]
    %v4462 = vld [vmem:[#allocation2 + $0x378] sm:$0xff]
    %v4463 = vld [vmem:[#allocation2 + $0x380] sm:$0xff]
    %v4464 = vld [vmem:[#allocation2 + $0x388] sm:$0xff]
    %v4465 = vld [vmem:[#allocation2 + $0x390] sm:$0xff]
    %v4466 = vld [vmem:[#allocation2 + $0x398] sm:$0xff]
    %v4467 = vld [vmem:[#allocation2 + $0x3a0] sm:$0xff]
    %v4468 = vld [vmem:[#allocation2 + $0x3a8] sm:$0xff]
    %v4469 = vld [vmem:[#allocation2 + $0x3b0] sm:$0xff]
    %v4470 = vld [vmem:[#allocation2 + $0x3b8] sm:$0xff]
    %v4471 = vld [vmem:[#allocation2 + $0x3c0] sm:$0xff]
    %v4472 = vld [vmem:[#allocation2 + $0x3c8] sm:$0xff]
    %v4473 = vld [vmem:[#allocation2 + $0x3d0] sm:$0xff]
    %v4474 = vld [vmem:[#allocation2 + $0x3d8] sm:$0xff]
    %v4475 = vld [vmem:[#allocation2 + $0x3e0] sm:$0xff]
    %v4476 = vld [vmem:[#allocation2 + $0x3e8] sm:$0xff]
    %v4477 = vld [vmem:[#allocation2 + $0x3f0] sm:$0xff]
    %v4478 = vld [vmem:[#allocation2 + $0x3f8] sm:$0xff]
    %v4479 = vld [vmem:[#allocation2 + $0x400] sm:$0xff]
    %v4480 = vld [vmem:[#allocation2 + $0x408] sm:$0xff]
    %v4481 = vld [vmem:[#allocation2 + $0x410] sm:$0xff]
    %v4482 = vld [vmem:[#allocation2 + $0x418] sm:$0xff]
    %v4483 = vld [vmem:[#allocation2 + $0x420] sm:$0xff]
    %v4484 = vld [vmem:[#allocation2 + $0x428] sm:$0xff]
    %v4485 = vld [vmem:[#allocation2 + $0x430] sm:$0xff]
    %v4486 = vld [vmem:[#allocation2 + $0x438] sm:$0xff]
    %v4487 = vld [vmem:[#allocation2 + $0x440] sm:$0xff]
    %v4488 = vld [vmem:[#allocation2 + $0x448] sm:$0xff]
    %v4489 = vld [vmem:[#allocation2 + $0x450] sm:$0xff]
    %v4490 = vld [vmem:[#allocation2 + $0x458] sm:$0xff]
    %v4491 = vld [vmem:[#allocation2 + $0x460] sm:$0xff]
    %v4492 = vld [vmem:[#allocation2 + $0x468] sm:$0xff]
    %v4493 = vld [vmem:[#allocation2 + $0x470] sm:$0xff]
    %v4494 = vld [vmem:[#allocation2 + $0x478] sm:$0xff]
    %v4495 = vld [vmem:[#allocation2 + $0x480] sm:$0xff]
    %v4496 = vld [vmem:[#allocation2 + $0x488] sm:$0xff]
    %v4497 = vld [vmem:[#allocation2 + $0x490] sm:$0xff]
    %v4498 = vld [vmem:[#allocation2 + $0x498] sm:$0xff]
    %v4499 = vld [vmem:[#allocation2 + $0x4a0] sm:$0xff]
    %v4500 = vld [vmem:[#allocation2 + $0x4a8] sm:$0xff]
    %v4501 = vld [vmem:[#allocation2 + $0x4b0] sm:$0xff]
    %v4502 = vld [vmem:[#allocation2 + $0x4b8] sm:$0xff]
    %v4503 = vld [vmem:[#allocation2 + $0x4c0] sm:$0xff]
    %v4504 = vld [vmem:[#allocation2 + $0x4c8] sm:$0xff]
    %v4505 = vld [vmem:[#allocation2 + $0x4d0] sm:$0xff]
    %v4506 = vld [vmem:[#allocation2 + $0x4d8] sm:$0xff]
    %v4507 = vld [vmem:[#allocation2 + $0x4e0] sm:$0xff]
    %v4508 = vld [vmem:[#allocation2 + $0x4e8] sm:$0xff]
    %v4509 = vld [vmem:[#allocation2 + $0x4f0] sm:$0xff]
    %v4510 = vld [vmem:[#allocation2 + $0x4f8] sm:$0xff]
    %v4511 = vld [vmem:[#allocation2 + $0x500] sm:$0xff]
    %v4512 = vld [vmem:[#allocation2 + $0x508] sm:$0xff]
    %v4513 = vld [vmem:[#allocation2 + $0x510] sm:$0xff]
    %v4514 = vld [vmem:[#allocation2 + $0x518] sm:$0xff]
    %v4515 = vld [vmem:[#allocation2 + $0x520] sm:$0xff]
    %v4516 = vld [vmem:[#allocation2 + $0x528] sm:$0xff]
    %v4517 = vld [vmem:[#allocation2 + $0x530] sm:$0xff]
    %v4518 = vld [vmem:[#allocation2 + $0x538] sm:$0xff]
    %v4519 = vld [vmem:[#allocation2 + $0x540] sm:$0xff]
    %v4520 = vld [vmem:[#allocation2 + $0x548] sm:$0xff]
    %v4521 = vld [vmem:[#allocation2 + $0x550] sm:$0xff]
    %v4522 = vld [vmem:[#allocation2 + $0x558] sm:$0xff]
    %v4523 = vld [vmem:[#allocation2 + $0x560] sm:$0xff]
    %v4524 = vld [vmem:[#allocation2 + $0x568] sm:$0xff]
    %v4525 = vld [vmem:[#allocation2 + $0x570] sm:$0xff]
    %v4526 = vld [vmem:[#allocation2 + $0x578] sm:$0xff]
    %v4527 = vld [vmem:[#allocation2 + $0x580] sm:$0xff]
    %v4528 = vld [vmem:[#allocation2 + $0x588] sm:$0xff]
    %v4529 = vld [vmem:[#allocation2 + $0x590] sm:$0xff]
    %v4530 = vld [vmem:[#allocation2 + $0x598] sm:$0xff]
    %v4531 = vld [vmem:[#allocation2 + $0x5a0] sm:$0xff]
    %v4532 = vld [vmem:[#allocation2 + $0x5a8] sm:$0xff]
    %v4533 = vld [vmem:[#allocation2 + $0x5b0] sm:$0xff]
    %v4534 = vld [vmem:[#allocation2 + $0x5b8] sm:$0xff]
    %v4535 = vld [vmem:[#allocation2 + $0x5c0] sm:$0xff]
    %v4536 = vld [vmem:[#allocation2 + $0x5c8] sm:$0xff]
    %v4537 = vld [vmem:[#allocation2 + $0x5d0] sm:$0xff]
    %v4538 = vld [vmem:[#allocation2 + $0x5d8] sm:$0xff]
    %v4539 = vld [vmem:[#allocation2 + $0x5e0] sm:$0xff]
    %v4540 = vld [vmem:[#allocation2 + $0x5e8] sm:$0xff]
    %v4541 = vld [vmem:[#allocation2 + $0x5f0] sm:$0xff]
    %v4542 = vld [vmem:[#allocation2 + $0x5f8] sm:$0xff]
    %4543 = vmatprep.subr.mxu0 %v4352
    %4544 = vmatpush1.msra.mxu0 %v4351
    %4545 = vmatprep.subr.mxu0 %v4358
    %4546 = vmatpush1.msra.mxu0 %v4357
    %4547 = vmatprep.subr.mxu0 %v4364
    %4548 = vmatpush1.msra.mxu0 %v4363
    %4549 = vmatprep.subr.mxu0 %v4370
    %4550 = vmatpush1.msra.mxu0 %v4369
    %4551 = vmatprep.subr.mxu0 %v4376
    %4552 = vmatpush1.msra.mxu0 %v4375
    %4553 = vmatprep.subr.mxu0 %v4382
    %4554 = vmatpush1.msra.mxu0 %v4381
    %4555 = vmatprep.subr.mxu0 %v4388
    %4556 = vmatpush1.msra.mxu0 %v4387
    %4557 = vmatprep.subr.mxu0 %v4394
    %4558 = vmatpush1.msra.mxu0 %v4393
    %4559 = vmatprep.subr.mxu0 %v4400
    %4560 = vmatpush1.msra.mxu0 %v4399
    %4561 = vmatprep.subr.mxu0 %v4406
    %4562 = vmatpush1.msra.mxu0 %v4405
    %4563 = vmatprep.subr.mxu0 %v4412
    %4564 = vmatpush1.msra.mxu0 %v4411
    %4565 = vmatprep.subr.mxu0 %v4418
    %4566 = vmatpush1.msra.mxu0 %v4417
    %4567 = vmatprep.subr.mxu0 %v4424
    %4568 = vmatpush1.msra.mxu0 %v4423
    %4569 = vmatprep.subr.mxu0 %v4430
    %4570 = vmatpush1.msra.mxu0 %v4429
    %4571 = vmatprep.subr.mxu0 %v4436
    %4572 = vmatpush1.msra.mxu0 %v4435
    %4573 = vmatprep.subr.mxu0 %v4442
    %4574 = vmatpush1.msra.mxu0 %v4441
    %4575 = vmatprep.subr.mxu0 %v4448
    %4576 = vmatpush1.msra.mxu0 %v4447
    %4577 = vmatprep.subr.mxu0 %v4454
    %4578 = vmatpush1.msra.mxu0 %v4453
    %4579 = vmatprep.subr.mxu0 %v4460
    %4580 = vmatpush1.msra.mxu0 %v4459
    %4581 = vmatprep.subr.mxu0 %v4466
    %4582 = vmatpush1.msra.mxu0 %v4465
    %4583 = vmatprep.subr.mxu0 %v4472
    %4584 = vmatpush1.msra.mxu0 %v4471
    %4585 = vmatprep.subr.mxu0 %v4478
    %4586 = vmatpush1.msra.mxu0 %v4477
    %4587 = vmatprep.subr.mxu0 %v4484
    %4588 = vmatpush1.msra.mxu0 %v4483
    %4589 = vmatprep.subr.mxu0 %v4490
    %4590 = vmatpush1.msra.mxu0 %v4489
    %4591 = vmatprep.subr.mxu0 %v4496
    %4592 = vmatpush1.msra.mxu0 %v4495
    %4593 = vmatprep.subr.mxu0 %v4502
    %4594 = vmatpush1.msra.mxu0 %v4501
    %4595 = vmatprep.subr.mxu0 %v4508
    %4596 = vmatpush1.msra.mxu0 %v4507
    %4597 = vmatprep.subr.mxu0 %v4514
    %4598 = vmatpush1.msra.mxu0 %v4513
    %4599 = vmatprep.subr.mxu0 %v4520
    %4600 = vmatpush1.msra.mxu0 %v4519
    %4601 = vmatprep.subr.mxu0 %v4526
    %4602 = vmatpush1.msra.mxu0 %v4525
    %4603 = vmatprep.subr.mxu0 %v4532
    %4604 = vmatpush1.msra.mxu0 %v4531
    %4605 = vmatprep.subr.mxu0 %v4538
    %4606 = vmatpush1.msra.mxu0 %v4537
    %4607 = vmatprep.mubr.f32.mxu0 %v4350
    %4608 = vmatmul.mubr.f32.gmra.mrb[0].mxu0 %v4349
    %v4609 = vpop.f32.mrb[0].mxu0
    %v4610 = vadd.f32 0.0, %v4609
    %v4611 = vpop.f32.mrb[0].mxu0
    %v4612 = vadd.f32 0.0, %v4611
    %4613 = vdwg.mxu0
    %4614 = vmatprep.subr.mxu0 %v4354
    %4615 = vmatpush1.msra.mxu0 %v4353
    %4616 = vmatprep.subr.mxu0 %v4360
    %4617 = vmatpush1.msra.mxu0 %v4359
    %4618 = vmatprep.subr.mxu0 %v4366
    %4619 = vmatpush1.msra.mxu0 %v4365
    %4620 = vmatprep.subr.mxu0 %v4372
    %4621 = vmatpush1.msra.mxu0 %v4371
    %4622 = vmatprep.subr.mxu0 %v4378
    %4623 = vmatpush1.msra.mxu0 %v4377
    %4624 = vmatprep.subr.mxu0 %v4384
    %4625 = vmatpush1.msra.mxu0 %v4383
    %4626 = vmatprep.subr.mxu0 %v4390
    %4627 = vmatpush1.msra.mxu0 %v4389
    %4628 = vmatprep.subr.mxu0 %v4396
    %4629 = vmatpush1.msra.mxu0 %v4395
    %4630 = vmatprep.subr.mxu0 %v4402
    %4631 = vmatpush1.msra.mxu0 %v4401
    %4632 = vmatprep.subr.mxu0 %v4408
    %4633 = vmatpush1.msra.mxu0 %v4407
    %4634 = vmatprep.subr.mxu0 %v4414
    %4635 = vmatpush1.msra.mxu0 %v4413
    %4636 = vmatprep.subr.mxu0 %v4420
    %4637 = vmatpush1.msra.mxu0 %v4419
    %4638 = vmatprep.subr.mxu0 %v4426
    %4639 = vmatpush1.msra.mxu0 %v4425
    %4640 = vmatprep.subr.mxu0 %v4432
    %4641 = vmatpush1.msra.mxu0 %v4431
    %4642 = vmatprep.subr.mxu0 %v4438
    %4643 = vmatpush1.msra.mxu0 %v4437
    %4644 = vmatprep.subr.mxu0 %v4444
    %4645 = vmatpush1.msra.mxu0 %v4443
    %4646 = vmatprep.subr.mxu0 %v4450
    %4647 = vmatpush1.msra.mxu0 %v4449
    %4648 = vmatprep.subr.mxu0 %v4456
    %4649 = vmatpush1.msra.mxu0 %v4455
    %4650 = vmatprep.subr.mxu0 %v4462
    %4651 = vmatpush1.msra.mxu0 %v4461
    %4652 = vmatprep.subr.mxu0 %v4468
    %4653 = vmatpush1.msra.mxu0 %v4467
    %4654 = vmatprep.subr.mxu0 %v4474
    %4655 = vmatpush1.msra.mxu0 %v4473
    %4656 = vmatprep.subr.mxu0 %v4480
    %4657 = vmatpush1.msra.mxu0 %v4479
    %4658 = vmatprep.subr.mxu0 %v4486
    %4659 = vmatpush1.msra.mxu0 %v4485
    %4660 = vmatprep.subr.mxu0 %v4492
    %4661 = vmatpush1.msra.mxu0 %v4491
    %4662 = vmatprep.subr.mxu0 %v4498
    %4663 = vmatpush1.msra.mxu0 %v4497
    %4664 = vmatprep.subr.mxu0 %v4504
    %4665 = vmatpush1.msra.mxu0 %v4503
    %4666 = vmatprep.subr.mxu0 %v4510
    %4667 = vmatpush1.msra.mxu0 %v4509
    %4668 = vmatprep.subr.mxu0 %v4516
    %4669 = vmatpush1.msra.mxu0 %v4515
    %4670 = vmatprep.subr.mxu0 %v4522
    %4671 = vmatpush1.msra.mxu0 %v4521
    %4672 = vmatprep.subr.mxu0 %v4528
    %4673 = vmatpush1.msra.mxu0 %v4527
    %4674 = vmatprep.subr.mxu0 %v4534
    %4675 = vmatpush1.msra.mxu0 %v4533
    %4676 = vmatprep.subr.mxu0 %v4540
    %4677 = vmatpush1.msra.mxu0 %v4539
    %4678 = vmatprep.mubr.f32.mxu0 %v4350
    %4679 = vmatmul.mubr.f32.gmra.mrb[0].mxu0 %v4349
    %v4680 = vpop.f32.mrb[0].mxu0
    %v4681 = vadd.f32 0.0, %v4680
    %v4682 = vpop.f32.mrb[0].mxu0
    %v4683 = vadd.f32 0.0, %v4682
    %4684 = vdwg.mxu0
    %4685 = vmatprep.subr.mxu0 %v4356
    %4686 = vmatpush1.msra.mxu0 %v4355
    %4687 = vmatprep.subr.mxu0 %v4362
    %4688 = vmatpush1.msra.mxu0 %v4361
    %4689 = vmatprep.subr.mxu0 %v4368
    %4690 = vmatpush1.msra.mxu0 %v4367
    %4691 = vmatprep.subr.mxu0 %v4374
    %4692 = vmatpush1.msra.mxu0 %v4373
    %4693 = vmatprep.subr.mxu0 %v4380
    %4694 = vmatpush1.msra.mxu0 %v4379
    %4695 = vmatprep.subr.mxu0 %v4386
    %4696 = vmatpush1.msra.mxu0 %v4385
    %4697 = vmatprep.subr.mxu0 %v4392
    %4698 = vmatpush1.msra.mxu0 %v4391
    %4699 = vmatprep.subr.mxu0 %v4398
    %4700 = vmatpush1.msra.mxu0 %v4397
    %4701 = vmatprep.subr.mxu0 %v4404
    %4702 = vmatpush1.msra.mxu0 %v4403
    %4703 = vmatprep.subr.mxu0 %v4410
    %4704 = vmatpush1.msra.mxu0 %v4409
    %4705 = vmatprep.subr.mxu0 %v4416
    %4706 = vmatpush1.msra.mxu0 %v4415
    %4707 = vmatprep.subr.mxu0 %v4422
    %4708 = vmatpush1.msra.mxu0 %v4421
    %4709 = vmatprep.subr.mxu0 %v4428
    %4710 = vmatpush1.msra.mxu0 %v4427
    %4711 = vmatprep.subr.mxu0 %v4434
    %4712 = vmatpush1.msra.mxu0 %v4433
    %4713 = vmatprep.subr.mxu0 %v4440
    %4714 = vmatpush1.msra.mxu0 %v4439
    %4715 = vmatprep.subr.mxu0 %v4446
    %4716 = vmatpush1.msra.mxu0 %v4445
    %4717 = vmatprep.subr.mxu0 %v4452
    %4718 = vmatpush1.msra.mxu0 %v4451
    %4719 = vmatprep.subr.mxu0 %v4458
    %4720 = vmatpush1.msra.mxu0 %v4457
    %4721 = vmatprep.subr.mxu0 %v4464
    %4722 = vmatpush1.msra.mxu0 %v4463
    %4723 = vmatprep.subr.mxu0 %v4470
    %4724 = vmatpush1.msra.mxu0 %v4469
    %4725 = vmatprep.subr.mxu0 %v4476
    %4726 = vmatpush1.msra.mxu0 %v4475
    %4727 = vmatprep.subr.mxu0 %v4482
    %4728 = vmatpush1.msra.mxu0 %v4481
    %4729 = vmatprep.subr.mxu0 %v4488
    %4730 = vmatpush1.msra.mxu0 %v4487
    %4731 = vmatprep.subr.mxu0 %v4494
    %4732 = vmatpush1.msra.mxu0 %v4493
    %4733 = vmatprep.subr.mxu0 %v4500
    %4734 = vmatpush1.msra.mxu0 %v4499
    %4735 = vmatprep.subr.mxu0 %v4506
    %4736 = vmatpush1.msra.mxu0 %v4505
    %4737 = vmatprep.subr.mxu0 %v4512
    %4738 = vmatpush1.msra.mxu0 %v4511
    %4739 = vmatprep.subr.mxu0 %v4518
    %4740 = vmatpush1.msra.mxu0 %v4517
    %4741 = vmatprep.subr.mxu0 %v4524
    %4742 = vmatpush1.msra.mxu0 %v4523
    %4743 = vmatprep.subr.mxu0 %v4530
    %4744 = vmatpush1.msra.mxu0 %v4529
    %4745 = vmatprep.subr.mxu0 %v4536
    %4746 = vmatpush1.msra.mxu0 %v4535
    %4747 = vmatprep.subr.mxu0 %v4542
    %4748 = vmatpush1.msra.mxu0 %v4541
    %4749 = vmatprep.mubr.f32.mxu0 %v4350
    %4750 = vmatmul.mubr.f32.gmra.mrb[0].mxu0 %v4349
    %v4751 = vpop.f32.mrb[0].mxu0
    %v4752 = vadd.f32 0.0, %v4751
    %v4753 = vpop.f32.mrb[0].mxu0
    %v4754 = vadd.f32 0.0, %v4753
    %4755 = vdwg.mxu0
    %v4756 = vtanh.pop %v4610
    %v4757 = vtanh.pop %v4612
    %v4758 = vtanh.pop %v4681
    %v4759 = vtanh.pop %v4683
    %v4760 = vtanh.pop %v4752
    %v4761 = vtanh.pop %v4754
    %v4768 = vcombine.low %v4756, %v4757
    %v4769 = vcombine.low %v4758, %v4759
    %v4771 = vunpack.c.l.s4 1983009808
    %v4772 = vunpack.c.0.s8 %v4771
    %v4773 = vlaneseq
    %v4774 = vshrl.u32 %v4773, 7
    %v4775 = vsub.s32 %v4772, %v4774
    %v4776 = vrot.slane %v4768, %v4775
    %v4778 = vunpack.c.l.s4 1983009808
    %v4779 = vunpack.c.0.s8 %v4778
    %v4780 = vlaneseq
    %v4781 = vshrl.u32 %v4780, 7
    %v4782 = vsub.s32 %v4779, %v4781
    %v4783 = vrot.slane %v4769, %v4782
    %v4784 = vcombine.low %v4776, %v4783
    %v4785 = vcombine.low %v4760, %v4761
    %v4787 = vunpack.c.l.s4 1983009808
    %v4788 = vunpack.c.0.s8 %v4787
    %v4789 = vlaneseq
    %v4790 = vshrl.u32 %v4789, 7
    %v4791 = vsub.s32 %v4788, %v4790
    %v4792 = vrot.slane %v4785, %v4791
    %4795 = vst [vmem:[%s63] sm:$0xff] %v4784
    %4796 = vst [vmem:[%s63 + $0x8] sm:$0xf] %v4792
    // Predicated region
    $region130: #{generator_forward.1} parent=1 // pred_check
      _
    $region131: #{generator_forward.1} parent=1 // pred_check_branch
      %4798 = sbr.rel (0) target = $region133
    $region132: #{generator_forward.1} parent=1 // pred_region
      _
    $region133: #{generator_forward.1} parent=1 // pred_fallthru
      _
    // Predicated region
    $region134: #{generator_forward.1} parent=1 // pred_check
      _
    $region135: #{generator_forward.1} parent=1 // pred_check_branch
      %4800 = sbr.rel (0) target = $region137
    $region136: #{generator_forward.1} parent=1 // pred_region
      %s4802 = ssub.s32 32, 32
      %4803 = vsyncadd [#allocation4], %s4802
      %s4805 = sshll.u32 [#allocation5], 4
      %s4806 = int_to_ptr.vmem [resolvable:$true] %s4805
      %4808 = dma.vmem_to_hbm [thread:$0]  %s4806, 32, %s65, [#allocation4]
    $region137: #{generator_forward.1} parent=1 // pred_fallthru
      _
    // Predicated region
    $region138: #{generator_forward.1} parent=1 // pred_check
      _
    $region139: #{generator_forward.1} parent=1 // pred_check_branch
      %4810 = sbr.rel (0) target = $region141
    $region140: #{generator_forward.1} parent=1 // pred_region
      %s4812 = ssub.s32 32, 32
      %4813 = vsyncadd [#allocation7], %s4812
      %s4815 = sshll.u32 [#allocation6], 4
      %s4816 = int_to_ptr.vmem [resolvable:$true] %s4815
      %4818 = dma.vmem_to_hbm [thread:$0]  %s4816, 32, %s67, [#allocation7]
    $region141: #{generator_forward.1} parent=1 // pred_fallthru
      _
    // Predicated region
    $region142: #{generator_forward.1} parent=1 // pred_check
      _
    $region143: #{generator_forward.1} parent=1 // pred_check_branch
      %4820 = sbr.rel (0) target = $region145
    $region144: #{generator_forward.1} parent=1 // pred_region
      _
    $region145: #{generator_forward.1} parent=1 // pred_fallthru
      _
    // Predicated region
    $region146: #{generator_forward.1} parent=1 // pred_check
      _
    $region147: #{generator_forward.1} parent=1 // pred_check_branch
      %4822 = sbr.rel (0) target = $region149
    $region148: #{generator_forward.1} parent=1 // pred_region
      %4823 = dma.done [#allocation4], 32
    $region149: #{generator_forward.1} parent=1 // pred_fallthru
      _
    // Predicated region
    $region150: #{generator_forward.1} parent=1 // pred_check
      _
    $region151: #{generator_forward.1} parent=1 // pred_check_branch
      %4825 = sbr.rel (0) target = $region153
    $region152: #{generator_forward.1} parent=1 // pred_region
      %4826 = dma.done [#allocation7], 32
    $region153: #{generator_forward.1} parent=1 // pred_fallthru
      _
    %4827 = vsyncpa [#allocation3], 1
    %4828 = vsyncpa [#allocation4], 1
    %4829 = vsyncpa [#allocation7], 1

</llo_original>
